<compile_context>
chip_gen: v6e
topology: v6e:2x2x1
jax: 0.10.0
libtpu: 0.0.40
codegen_flags: <defaults>
</compile_context>

<pallas_src>
import jax
import jax.numpy as jnp
from jax import lax
from jax.experimental import pallas as pl
from jax.experimental.pallas import tpu as pltpu

LANE = 128                    # TPU lane width (last dim)
SUBLANE = 8                   # sublane granularity (second-to-last dim)
MATMUL_DTYPE = jnp.bfloat16   # MXU operand dtype; accumulation stays f32
MAX_B_TILE = 128              # per-step MXU rows are ~flat up to ~128
MAX_T_CHUNK = 512             # cap on the streamed time chunk


def _round_up(n, m):
    return (n + m - 1) // m * m


def _vmem_capacity_bytes():
    """Per-core VMEM capacity; conservative fallback (v7x = 64 MiB) if the
    query is unavailable on this jax build."""
    try:
        info = pltpu.get_tpu_info()
        cap = getattr(info, "vmem_capacity_bytes", None)
        if cap:
            return int(cap)
    except Exception:
        pass
    return 64 * 1024 * 1024


def _choose_batch_tile(Bp):
    """Largest batch tile (multiple of 8, divisor of Bp, <= MAX_B_TILE) that
    still leaves >= 2 grid programs when the batch allows it (v7x: 2 TCs)."""
    m = Bp // SUBLANE
    cands = [SUBLANE * d for d in range(1, m + 1)
             if m % d == 0 and SUBLANE * d <= MAX_B_TILE]
    if Bp >= 2 * SUBLANE:
        two = [c for c in cands if Bp // c >= 2]
        if two:
            return max(two)
    return max(cands)


def _choose_time_chunk(T, Bt, Dp, Hp, Np, budget_bytes):
    """Pick the largest time chunk whose per-chunk VMEM (bf16 x tile x2 bufs +
    f32 gi scratch) plus resident weights fits the budget."""
    w_bytes = (Dp * 3 * Hp + Hp * 3 * Hp + Hp * Np) * 2          # bf16 weights
    misc = (Bt * Hp + 2 * Bt * Np + 4 * 3 * Hp + Np) * 4 + (1 << 20)
    per_t = Bt * Dp * 2 * 2 + Bt * 3 * Hp * 4                    # x (x2) + gi
    avail = max(budget_bytes - w_bytes - misc, per_t)
    tc = int(min(avail // per_t, MAX_T_CHUNK, T))
    tc = max(tc, 1)
    n_chunks = -(-T // tc)
    tc = -(-T // n_chunks)        # rebalance chunks
    return tc, n_chunks


def _make_gru_kernel(t_valid, mask_tail, unroll):
    """GRU recurrence over one time chunk + final Linear on the last chunk.

    Kernel refs:
      x_ref  : (Tc, Bt, Dp)   time-major bf16 input chunk
      wih_ref: (Dp, 3*Hp)     input->hidden weights, gate blocks [r|z|n] (bf16)
      whh_ref: (Hp, 3*Hp)     hidden->hidden weights, gate blocks [r|z|n] (bf16)
      bih_ref: (1, 3*Hp)      input bias  (f32)
      bhh_ref: (1, 3*Hp)      hidden bias (f32)
      wfc_ref: (Hp, Np)       fc weight (pre-transposed vs. PyTorch) (bf16)
      bfc_ref: (1, Np)        fc bias (f32)
      out_ref: (Bt, Np)       fc(h_T) for this batch tile (f32)
      gi_ref : (Tc, Bt, 3*Hp) VMEM scratch: hoisted input projection (f32)
      h_ref  : (Bt, Hp)       VMEM scratch: hidden state, persists across chunks
    """

    def kernel(x_ref, wih_ref, whh_ref, bih_ref, bhh_ref, wfc_ref, bfc_ref,
               out_ref, gi_ref, h_ref):
        Tc, Bt, Dp = x_ref.shape
        Hp = whh_ref.shape[0]
        tc_idx = pl.program_id(1)
        n_tc = pl.num_programs(1)

        @pl.when(tc_idx == 0)
        def _init():
            h_ref[...] = jnp.zeros_like(h_ref)

        # Hoisted input projection for this chunk: independent of h, so it runs
        # off the serial critical path as one big MXU matmul (bf16 operands,
        # f32 accumulation) with b_ih folded in once.
        x_all = x_ref[...].reshape(Tc * Bt, Dp)                 # bf16 already
        gi_all = jnp.dot(x_all, wih_ref[...], preferred_element_type=jnp.float32)
        gi_all = gi_all + bih_ref[...]
        # TODO(synk): optionally store gi as bf16 to halve this scratch on v7x.
        gi_ref[...] = gi_all.reshape(Tc, Bt, 3 * Hp)

        # Hoist the hidden-bias broadcast out of the loop (JAX does not CSE
        # broadcast_in_dim).
        b_hh = jnp.broadcast_to(bhh_ref[...], (Bt, 3 * Hp))

        # TODO(synk): for tiny batch tiles (Bt < ~32) keep W_hh MXU-resident via
        # pltpu.matmul_push_rhs / matmul_acc_lhs / matmul_pop instead of
        # re-pushing the RHS every step; unnecessary once Bt >= 128.
        def step(t, carry):
            h = h_ref[...]
            gi = gi_ref[t]                                       # (Bt, 3*Hp) f32
            gh = jnp.dot(h.astype(MATMUL_DTYPE), whh_ref[...],
                         preferred_element_type=jnp.float32) + b_hh
            gi_r, gi_z, gi_n = gi[:, :Hp], gi[:, Hp:2 * Hp], gi[:, 2 * Hp:]
            gh_r, gh_z, gh_n = gh[:, :Hp], gh[:, Hp:2 * Hp], gh[:, 2 * Hp:]
            r = jax.nn.sigmoid(gi_r + gh_r)
            z = jax.nn.sigmoid(gi_z + gh_z)
            n = jnp.tanh(gi_n + r * gh_n)       # PyTorch: n = tanh(gi_n + r*gh_n)
            h_new = n + z * (h - n)             # == (1 - z) * n + z * h
            if mask_tail:
                # Padded tail time steps leave h unchanged (exact semantics).
                h_new = jnp.where(tc_idx * Tc + t < t_valid, h_new, h)
            h_ref[...] = h_new
            return carry

        lax.fori_loop(0, Tc, step, 0, unroll=unroll)

        @pl.when(tc_idx == n_tc - 1)
        def _finalize():
            out_ref[...] = (
                jnp.dot(h_ref[...].astype(MATMUL_DTYPE), wfc_ref[...],
                        preferred_element_type=jnp.float32)
                + bfc_ref[...])

    return kernel


def flexible_gru_forward(x, params):
    """x: (B, T, D_in) float32, batch-first (PyTorch convention) -> (B, n_steps)."""
    B, T, Din = x.shape
    H = params["whh"].shape[-1]
    n_out = params["wfc"].shape[-1]

    Bp = _round_up(B, SUBLANE)
    Dp = _round_up(Din, LANE)
    Hp = _round_up(H, LANE)
    Np = _round_up(n_out, LANE)

    cap = _vmem_capacity_bytes()
    budget = int(cap * 0.6)

    Bt = _choose_batch_tile(Bp)
    Tc, n_tc = _choose_time_chunk(T, Bt, Dp, Hp, Np, budget)
    T_pad = Tc * n_tc

    def pad2(a, rows, cols):
        return jnp.pad(a, ((0, rows - a.shape[0]), (0, cols - a.shape[1])))

    # Pad each gate block to Hp columns FIRST, then concatenate, so gate g
    # occupies the lane-aligned column range [g*Hp, (g+1)*Hp).  bf16 MXU
    # operands; biases stay f32 (added after f32 accumulation).
    wih = jnp.concatenate([pad2(params["wih"][g], Dp, Hp) for g in range(3)],
                          axis=1).astype(MATMUL_DTYPE)
    whh = jnp.concatenate([pad2(params["whh"][g], Hp, Hp) for g in range(3)],
                          axis=1).astype(MATMUL_DTYPE)
    bih = jnp.concatenate([pad2(params["bih"][g], 1, Hp) for g in range(3)], axis=1)
    bhh = jnp.concatenate([pad2(params["bhh"][g], 1, Hp) for g in range(3)], axis=1)
    wfc = pad2(params["wfc"], Hp, Np).astype(MATMUL_DTYPE)
    bfc = pad2(params["bfc"], 1, Np)

    # Zero-pad batch/time/feature, cast to bf16 (halves x DMA bytes + VMEM),
    # go time-major so the kernel indexes time as the leading ref axis.
    # Zero padding is provably inert for the GRU math (padded hidden lanes
    # stay exactly 0; padded tail time steps are masked in-kernel).
    x_p = jnp.pad(x, ((0, Bp - B), (0, T_pad - T), (0, Dp - Din)))
    x_tm = jnp.transpose(x_p.astype(MATMUL_DTYPE), (1, 0, 2))   # (T_pad, Bp, Dp)
    # TODO(synk): fold this wrapper transpose into the kernel (pltpu.einshape
    # on the GI block) to remove one extra HBM pass over x for very large T*B*D.

    unroll = min(Tc, 8) if Bt <= 2 * SUBLANE else min(Tc, 2)
    kernel = _make_gru_kernel(T, T_pad > T, unroll)

    # VMEM limit sized from the actual tile arithmetic (+ margin), capped by
    # this generation's capacity so we never compile a tiling that faults.
    w_bytes = (Dp * 3 * Hp + Hp * 3 * Hp + Hp * Np) * 2
    est = (2 * w_bytes + 2 * Bt * Tc * Dp * 2 + Bt * Tc * 3 * Hp * 4
           + Bt * Hp * 4 + 2 * Bt * Np * 4 + (2 << 20))
    vmem_limit = int(min(int(cap * 0.9), max(32 << 20, int(est * 1.3))))

    grid = (Bp // Bt, n_tc)
    out_shape = jax.ShapeDtypeStruct((Bp, Np), jnp.float32)

    def call(single_buffer_weights):
        def w_spec(shape):
            # Constant-index blocks: single-buffer them to halve their VMEM.
            if single_buffer_weights:
                return pl.BlockSpec(shape, lambda b, tc: (0, 0),
                                    pipeline_mode=pl.Buffered(buffer_count=1))
            return pl.BlockSpec(shape, lambda b, tc: (0, 0))

        return pl.pallas_call(
            kernel,
            out_shape=out_shape,
            grid_spec=pltpu.PrefetchScalarGridSpec(
                num_scalar_prefetch=0,
                grid=grid,
                in_specs=[
                    pl.BlockSpec((Tc, Bt, Dp), lambda b, tc: (tc, b, 0)),  # x chunk
                    w_spec((Dp, 3 * Hp)),      # W_ih [r|z|n]
                    w_spec((Hp, 3 * Hp)),      # W_hh [r|z|n]
                    w_spec((1, 3 * Hp)),       # b_ih
                    w_spec((1, 3 * Hp)),       # b_hh
                    w_spec((Hp, Np)),          # W_fc
                    w_spec((1, Np)),           # b_fc
                ],
                out_specs=pl.BlockSpec((Bt, Np), lambda b, tc: (b, 0)),
                scratch_shapes=[
                    pltpu.VMEM((Tc, Bt, 3 * Hp), jnp.float32),   # gi chunk
                    pltpu.VMEM((Bt, Hp), jnp.float32),           # carried h
                ],
            ),
            compiler_params=pltpu.CompilerParams(
                dimension_semantics=("parallel", "arbitrary"),
                vmem_limit_bytes=vmem_limit),
        )(x_tm, wih, whh, bih, bhh, wfc, bfc)

    try:
        out_p = call(True)
    except Exception:
        # This jax/libtpu build rejects Buffered(1) on pallas_call BlockSpecs;
        # fall back to default double-buffered weights (correctness identical).
        out_p = call(False)

    return out_p[:B, :n_out]


def init_params(key, input_size, hidden_size, n_steps):
    """Deterministic init mimicking PyTorch's uniform(-1/sqrt(H), 1/sqrt(H))."""
    k = 1.0 / jnp.sqrt(hidden_size)
    keys = jax.random.split(key, 6)
    u = lambda kk, shape: jax.random.uniform(kk, shape, jnp.float32, -k, k)
    return {
        "wih": u(keys[0], (3, input_size, hidden_size)),   # gates [r, z, n]
        "whh": u(keys[1], (3, hidden_size, hidden_size)),
        "bih": u(keys[2], (3, 1, hidden_size)),
        "bhh": u(keys[3], (3, 1, hidden_size)),
        "wfc": u(keys[4], (hidden_size, n_steps)),          # pre-transposed Linear
        "bfc": u(keys[5], (1, n_steps)),
    }


def reference_forward(x, params, matmul_dtype=jnp.float32):
    """Pure-JAX reference of the same GRU + fc math.

    matmul_dtype=float32 -> exact PyTorch forward semantics.
    matmul_dtype=bfloat16 -> mirrors the kernel's bf16 MXU operands with f32
    accumulation and f32 gate math (tight correctness check).
    """
    cast = lambda a: a.astype(matmul_dtype)
    B, T, Din = x.shape
    H = params["whh"].shape[-1]
    h = jnp.zeros((B, H), jnp.float32)
    wih = [cast(params["wih"][g]) for g in range(3)]
    whh = [cast(params["whh"][g]) for g in range(3)]
    xq = cast(x)
    for t in range(T):
        x_t = xq[:, t, :]
        gi = [jnp.dot(x_t, wih[g], preferred_element_type=jnp.float32)
              + params["bih"][g] for g in range(3)]
        gh = [jnp.dot(cast(h), whh[g], preferred_element_type=jnp.float32)
              + params["bhh"][g] for g in range(3)]
        r = jax.nn.sigmoid(gi[0] + gh[0])
        z = jax.nn.sigmoid(gi[1] + gh[1])
        n = jnp.tanh(gi[2] + r * gh[2])
        h = n + z * (h - n)
    return (jnp.dot(cast(h), cast(params["wfc"]),
                    preferred_element_type=jnp.float32) + params["bfc"])


if __name__ == "__main__":
    # input_shape = (seq_len, features) => GRU input size = input_shape[1]
    B, T, Din = 2, 8, 16
    H, n_steps = 32, 10

    key = jax.random.PRNGKey(0)
    kx, kp = jax.random.split(key)
    x = jax.random.normal(kx, (B, T, Din), jnp.float32)
    params = init_params(kp, Din, H, n_steps)

    out = jax.block_until_ready(flexible_gru_forward(x, params))
    assert out.shape == (B, n_steps)

    # Tight check vs. a pure-JAX reference using the same bf16 matmul operands
    # (verifies the kernel math / padding / chunking exactly).
    ref_q = reference_forward(x, params, matmul_dtype=MATMUL_DTYPE)
    assert jnp.allclose(out, ref_q, atol=2e-3, rtol=2e-3), "mismatch vs. bf16 reference"

    # Loose check vs. full-f32 PyTorch-semantics reference (bf16 operands keep
    # f32 accumulation, so deviation is small but above 1e-4).
    ref_f32 = reference_forward(x, params, matmul_dtype=jnp.float32)
    assert jnp.allclose(out, ref_f32, atol=1e-1, rtol=1e-1), "mismatch vs. f32 reference"

    print("KERNEL_OK")
</pallas_src>

<mosaic_0001>
module attributes {stable_mosaic.version = 11 : i64} {
  func.func @kernel(%arg0: i32, %arg1: i32, %arg2: memref<8x8x128xbf16, #tpu.memory_space<vmem>>, %arg3: memref<128x384xbf16, #tpu.memory_space<vmem>>, %arg4: memref<128x384xbf16, #tpu.memory_space<vmem>>, %arg5: memref<1x384xf32, #tpu.memory_space<vmem>>, %arg6: memref<1x384xf32, #tpu.memory_space<vmem>>, %arg7: memref<128x128xbf16, #tpu.memory_space<vmem>>, %arg8: memref<1x128xf32, #tpu.memory_space<vmem>>, %arg9: memref<8x128xf32, #tpu.memory_space<vmem>>, %arg10: memref<8x8x384xf32, #tpu.memory_space<vmem>>, %arg11: memref<8x128xf32, #tpu.memory_space<vmem>>) attributes {dimension_semantics = [#tpu.dimension_semantics<parallel>, #tpu.dimension_semantics<arbitrary>], iteration_bounds = array<i64: 1, 1>, scalar_prefetch = 0 : i64, scratch_operands = 2 : i64, tpu.core_type = #tpu.core_type<tc>, window_params = [{transform_indices = @transform_0, window_bounds = array<i64: 8, 8, 128>}, {pipeline_mode = #tpu.pipeline_mode<synchronous>, transform_indices = @transform_1, window_bounds = array<i64: 128, 384>}, {pipeline_mode = #tpu.pipeline_mode<synchronous>, transform_indices = @transform_2, window_bounds = array<i64: 128, 384>}, {pipeline_mode = #tpu.pipeline_mode<synchronous>, transform_indices = @transform_3, window_bounds = array<i64: 1, 384>}, {pipeline_mode = #tpu.pipeline_mode<synchronous>, transform_indices = @transform_4, window_bounds = array<i64: 1, 384>}, {pipeline_mode = #tpu.pipeline_mode<synchronous>, transform_indices = @transform_5, window_bounds = array<i64: 128, 128>}, {pipeline_mode = #tpu.pipeline_mode<synchronous>, transform_indices = @transform_6, window_bounds = array<i64: 1, 128>}, {transform_indices = @transform_7, window_bounds = array<i64: 8, 128>}]} {
    %c0_i32 = arith.constant 0 : i32
    %0 = arith.cmpi eq, %arg1, %c0_i32 : i32
    %1 = arith.extui %0 : i1 to i32
    %c0_i32_0 = arith.constant 0 : i32
    %2 = arith.cmpi ne, %1, %c0_i32_0 : i32
    scf.if %2 {
      %cst_103 = arith.constant 0.000000e+00 : f32
      %282 = vector.broadcast %cst_103 : f32 to vector<8x128xf32>
      %c0_104 = arith.constant 0 : index
      %c0_105 = arith.constant 0 : index
      %283 = vector.load %arg11[%c0_104, %c0_105] : memref<8x128xf32, #tpu.memory_space<vmem>>, vector<8x128xf32>
      tpu.vector_store %arg11[%c0_104, %c0_105], %282 {strides = array<i32>} : memref<8x128xf32, #tpu.memory_space<vmem>>, vector<8x128xf32>,
    } else {
    }
    %c0 = arith.constant 0 : index
    %c0_1 = arith.constant 0 : index
    %c0_2 = arith.constant 0 : index
    %3 = vector.load %arg2[%c0, %c0_1, %c0_2] : memref<8x8x128xbf16, #tpu.memory_space<vmem>>, vector<8x8x128xbf16>
    %4 = vector.shape_cast %3 : vector<8x8x128xbf16> to vector<64x128xbf16>
    %c0_3 = arith.constant 0 : index
    %c0_4 = arith.constant 0 : index
    %5 = vector.load %arg3[%c0_3, %c0_4] : memref<128x384xbf16, #tpu.memory_space<vmem>>, vector<128x384xbf16>
    %cst = arith.constant dense<0.000000e+00> : vector<64x384xf32>
    %6 = tpu.matmul %4, %5, %cst {dimension_numbers = #tpu.dot_dimension_numbers<[1], [0], [0], [1], [0, 0, 1, 1], [], []>} : vector<64x128xbf16>, vector<128x384xbf16>, vector<64x384xf32> -> vector<64x384xf32>
    %c0_5 = arith.constant 0 : index
    %c0_6 = arith.constant 0 : index
    %7 = vector.load %arg5[%c0_5, %c0_6] : memref<1x384xf32, #tpu.memory_space<vmem>>, vector<1x384xf32>
    %8 = vector.broadcast %7 : vector<1x384xf32> to vector<64x384xf32>
    %9 = arith.addf %6, %8 : vector<64x384xf32>
    %10 = vector.shape_cast %9 : vector<64x384xf32> to vector<8x8x384xf32>
    %c0_7 = arith.constant 0 : index
    %c0_8 = arith.constant 0 : index
    %c0_9 = arith.constant 0 : index
    %11 = vector.load %arg10[%c0_7, %c0_8, %c0_9] : memref<8x8x384xf32, #tpu.memory_space<vmem>>, vector<8x8x384xf32>
    tpu.vector_store %arg10[%c0_7, %c0_8, %c0_9], %10 {strides = array<i32>} : memref<8x8x384xf32, #tpu.memory_space<vmem>>, vector<8x8x384xf32>,
    %c0_10 = arith.constant 0 : index
    %c0_11 = arith.constant 0 : index
    %12 = vector.load %arg6[%c0_10, %c0_11] : memref<1x384xf32, #tpu.memory_space<vmem>>, vector<1x384xf32>
    %13 = vector.shape_cast %12 : vector<1x384xf32> to vector<1x384xf32>
    %14 = vector.broadcast %13 : vector<1x384xf32> to vector<8x384xf32>
    %c0_i32_12 = arith.constant 0 : i32
    %c0_13 = arith.constant 0 : index
    %c0_14 = arith.constant 0 : index
    %15 = vector.load %arg11[%c0_13, %c0_14] : memref<8x128xf32, #tpu.memory_space<vmem>>, vector<8x128xf32>
    %16 = arith.index_cast %c0_i32_12 : i32 to index
    %c0_15 = arith.constant 0 : index
    %c0_16 = arith.constant 0 : index
    %17 = vector.load %arg10[%16, %c0_15, %c0_16] : memref<8x8x384xf32, #tpu.memory_space<vmem>>, vector<1x8x384xf32>
    %18 = vector.shape_cast %17 : vector<1x8x384xf32> to vector<8x384xf32>
    %19 = arith.truncf %15 : vector<8x128xf32> to vector<8x128xbf16>
    %c0_17 = arith.constant 0 : index
    %c0_18 = arith.constant 0 : index
    %20 = vector.load %arg4[%c0_17, %c0_18] : memref<128x384xbf16, #tpu.memory_space<vmem>>, vector<128x384xbf16>
    %cst_19 = arith.constant dense<0.000000e+00> : vector<8x384xf32>
    %21 = tpu.matmul %19, %20, %cst_19 {dimension_numbers = #tpu.dot_dimension_numbers<[1], [0], [0], [1], [0, 0, 1, 1], [], []>} : vector<8x128xbf16>, vector<128x384xbf16>, vector<8x384xf32> -> vector<8x384xf32>
    %22 = arith.addf %21, %14 : vector<8x384xf32>
    %23 = vector.extract_strided_slice %18 {offsets = [0, 0], sizes = [8, 128], strides = [1, 1]} : vector<8x384xf32> to vector<8x128xf32>
    %24 = vector.extract_strided_slice %18 {offsets = [0, 128], sizes = [8, 128], strides = [1, 1]} : vector<8x384xf32> to vector<8x128xf32>
    %25 = vector.extract_strided_slice %18 {offsets = [0, 256], sizes = [8, 128], strides = [1, 1]} : vector<8x384xf32> to vector<8x128xf32>
    %26 = vector.extract_strided_slice %22 {offsets = [0, 0], sizes = [8, 128], strides = [1, 1]} : vector<8x384xf32> to vector<8x128xf32>
    %27 = vector.extract_strided_slice %22 {offsets = [0, 128], sizes = [8, 128], strides = [1, 1]} : vector<8x384xf32> to vector<8x128xf32>
    %28 = vector.extract_strided_slice %22 {offsets = [0, 256], sizes = [8, 128], strides = [1, 1]} : vector<8x384xf32> to vector<8x128xf32>
    %29 = arith.addf %23, %26 : vector<8x128xf32>
    %30 = arith.negf %29 : vector<8x128xf32>
    %31 = math.exp %30 : vector<8x128xf32>
    %cst_20 = arith.constant 1.000000e+00 : f32
    %32 = vector.broadcast %cst_20 : f32 to vector<8x128xf32>
    %33 = arith.addf %32, %31 : vector<8x128xf32>
    %34 = arith.divf %32, %33 : vector<8x128xf32>
    %35 = arith.addf %24, %27 : vector<8x128xf32>
    %36 = arith.negf %35 : vector<8x128xf32>
    %37 = math.exp %36 : vector<8x128xf32>
    %cst_21 = arith.constant 1.000000e+00 : f32
    %38 = vector.broadcast %cst_21 : f32 to vector<8x128xf32>
    %39 = arith.addf %38, %37 : vector<8x128xf32>
    %40 = arith.divf %38, %39 : vector<8x128xf32>
    %41 = arith.mulf %34, %28 : vector<8x128xf32>
    %42 = arith.addf %25, %41 : vector<8x128xf32>
    %43 = math.tanh %42 : vector<8x128xf32>
    %44 = arith.subf %15, %43 : vector<8x128xf32>
    %45 = arith.mulf %40, %44 : vector<8x128xf32>
    %46 = arith.addf %43, %45 : vector<8x128xf32>
    %c0_22 = arith.constant 0 : index
    %c0_23 = arith.constant 0 : index
    %47 = vector.load %arg11[%c0_22, %c0_23] : memref<8x128xf32, #tpu.memory_space<vmem>>, vector<8x128xf32>
    tpu.vector_store %arg11[%c0_22, %c0_23], %46 {strides = array<i32>} : memref<8x128xf32, #tpu.memory_space<vmem>>, vector<8x128xf32>,
    %c1_i32 = arith.constant 1 : i32
    %c0_24 = arith.constant 0 : index
    %c0_25 = arith.constant 0 : index
    %48 = vector.load %arg11[%c0_24, %c0_25] : memref<8x128xf32, #tpu.memory_space<vmem>>, vector<8x128xf32>
    %49 = arith.index_cast %c1_i32 : i32 to index
    %c0_26 = arith.constant 0 : index
    %c0_27 = arith.constant 0 : index
    %50 = vector.load %arg10[%49, %c0_26, %c0_27] : memref<8x8x384xf32, #tpu.memory_space<vmem>>, vector<1x8x384xf32>
    %51 = vector.shape_cast %50 : vector<1x8x384xf32> to vector<8x384xf32>
    %52 = arith.truncf %48 : vector<8x128xf32> to vector<8x128xbf16>
    %c0_28 = arith.constant 0 : index
    %c0_29 = arith.constant 0 : index
    %53 = vector.load %arg4[%c0_28, %c0_29] : memref<128x384xbf16, #tpu.memory_space<vmem>>, vector<128x384xbf16>
    %cst_30 = arith.constant dense<0.000000e+00> : vector<8x384xf32>
    %54 = tpu.matmul %52, %53, %cst_30 {dimension_numbers = #tpu.dot_dimension_numbers<[1], [0], [0], [1], [0, 0, 1, 1], [], []>} : vector<8x128xbf16>, vector<128x384xbf16>, vector<8x384xf32> -> vector<8x384xf32>
    %55 = arith.addf %54, %14 : vector<8x384xf32>
    %56 = vector.extract_strided_slice %51 {offsets = [0, 0], sizes = [8, 128], strides = [1, 1]} : vector<8x384xf32> to vector<8x128xf32>
    %57 = vector.extract_strided_slice %51 {offsets = [0, 128], sizes = [8, 128], strides = [1, 1]} : vector<8x384xf32> to vector<8x128xf32>
    %58 = vector.extract_strided_slice %51 {offsets = [0, 256], sizes = [8, 128], strides = [1, 1]} : vector<8x384xf32> to vector<8x128xf32>
    %59 = vector.extract_strided_slice %55 {offsets = [0, 0], sizes = [8, 128], strides = [1, 1]} : vector<8x384xf32> to vector<8x128xf32>
    %60 = vector.extract_strided_slice %55 {offsets = [0, 128], sizes = [8, 128], strides = [1, 1]} : vector<8x384xf32> to vector<8x128xf32>
    %61 = vector.extract_strided_slice %55 {offsets = [0, 256], sizes = [8, 128], strides = [1, 1]} : vector<8x384xf32> to vector<8x128xf32>
    %62 = arith.addf %56, %59 : vector<8x128xf32>
    %63 = arith.negf %62 : vector<8x128xf32>
    %64 = math.exp %63 : vector<8x128xf32>
    %cst_31 = arith.constant 1.000000e+00 : f32
    %65 = vector.broadcast %cst_31 : f32 to vector<8x128xf32>
    %66 = arith.addf %65, %64 : vector<8x128xf32>
    %67 = arith.divf %65, %66 : vector<8x128xf32>
    %68 = arith.addf %57, %60 : vector<8x128xf32>
    %69 = arith.negf %68 : vector<8x128xf32>
    %70 = math.exp %69 : vector<8x128xf32>
    %cst_32 = arith.constant 1.000000e+00 : f32
    %71 = vector.broadcast %cst_32 : f32 to vector<8x128xf32>
    %72 = arith.addf %71, %70 : vector<8x128xf32>
    %73 = arith.divf %71, %72 : vector<8x128xf32>
    %74 = arith.mulf %67, %61 : vector<8x128xf32>
    %75 = arith.addf %58, %74 : vector<8x128xf32>
    %76 = math.tanh %75 : vector<8x128xf32>
    %77 = arith.subf %48, %76 : vector<8x128xf32>
    %78 = arith.mulf %73, %77 : vector<8x128xf32>
    %79 = arith.addf %76, %78 : vector<8x128xf32>
    %c0_33 = arith.constant 0 : index
    %c0_34 = arith.constant 0 : index
    %80 = vector.load %arg11[%c0_33, %c0_34] : memref<8x128xf32, #tpu.memory_space<vmem>>, vector<8x128xf32>
    tpu.vector_store %arg11[%c0_33, %c0_34], %79 {strides = array<i32>} : memref<8x128xf32, #tpu.memory_space<vmem>>, vector<8x128xf32>,
    %c2_i32 = arith.constant 2 : i32
    %c0_35 = arith.constant 0 : index
    %c0_36 = arith.constant 0 : index
    %81 = vector.load %arg11[%c0_35, %c0_36] : memref<8x128xf32, #tpu.memory_space<vmem>>, vector<8x128xf32>
    %82 = arith.index_cast %c2_i32 : i32 to index
    %c0_37 = arith.constant 0 : index
    %c0_38 = arith.constant 0 : index
    %83 = vector.load %arg10[%82, %c0_37, %c0_38] : memref<8x8x384xf32, #tpu.memory_space<vmem>>, vector<1x8x384xf32>
    %84 = vector.shape_cast %83 : vector<1x8x384xf32> to vector<8x384xf32>
    %85 = arith.truncf %81 : vector<8x128xf32> to vector<8x128xbf16>
    %c0_39 = arith.constant 0 : index
    %c0_40 = arith.constant 0 : index
    %86 = vector.load %arg4[%c0_39, %c0_40] : memref<128x384xbf16, #tpu.memory_space<vmem>>, vector<128x384xbf16>
    %cst_41 = arith.constant dense<0.000000e+00> : vector<8x384xf32>
    %87 = tpu.matmul %85, %86, %cst_41 {dimension_numbers = #tpu.dot_dimension_numbers<[1], [0], [0], [1], [0, 0, 1, 1], [], []>} : vector<8x128xbf16>, vector<128x384xbf16>, vector<8x384xf32> -> vector<8x384xf32>
    %88 = arith.addf %87, %14 : vector<8x384xf32>
    %89 = vector.extract_strided_slice %84 {offsets = [0, 0], sizes = [8, 128], strides = [1, 1]} : vector<8x384xf32> to vector<8x128xf32>
    %90 = vector.extract_strided_slice %84 {offsets = [0, 128], sizes = [8, 128], strides = [1, 1]} : vector<8x384xf32> to vector<8x128xf32>
    %91 = vector.extract_strided_slice %84 {offsets = [0, 256], sizes = [8, 128], strides = [1, 1]} : vector<8x384xf32> to vector<8x128xf32>
    %92 = vector.extract_strided_slice %88 {offsets = [0, 0], sizes = [8, 128], strides = [1, 1]} : vector<8x384xf32> to vector<8x128xf32>
    %93 = vector.extract_strided_slice %88 {offsets = [0, 128], sizes = [8, 128], strides = [1, 1]} : vector<8x384xf32> to vector<8x128xf32>
    %94 = vector.extract_strided_slice %88 {offsets = [0, 256], sizes = [8, 128], strides = [1, 1]} : vector<8x384xf32> to vector<8x128xf32>
    %95 = arith.addf %89, %92 : vector<8x128xf32>
    %96 = arith.negf %95 : vector<8x128xf32>
    %97 = math.exp %96 : vector<8x128xf32>
    %cst_42 = arith.constant 1.000000e+00 : f32
    %98 = vector.broadcast %cst_42 : f32 to vector<8x128xf32>
    %99 = arith.addf %98, %97 : vector<8x128xf32>
    %100 = arith.divf %98, %99 : vector<8x128xf32>
    %101 = arith.addf %90, %93 : vector<8x128xf32>
    %102 = arith.negf %101 : vector<8x128xf32>
    %103 = math.exp %102 : vector<8x128xf32>
    %cst_43 = arith.constant 1.000000e+00 : f32
    %104 = vector.broadcast %cst_43 : f32 to vector<8x128xf32>
    %105 = arith.addf %104, %103 : vector<8x128xf32>
    %106 = arith.divf %104, %105 : vector<8x128xf32>
    %107 = arith.mulf %100, %94 : vector<8x128xf32>
    %108 = arith.addf %91, %107 : vector<8x128xf32>
    %109 = math.tanh %108 : vector<8x128xf32>
    %110 = arith.subf %81, %109 : vector<8x128xf32>
    %111 = arith.mulf %106, %110 : vector<8x128xf32>
    %112 = arith.addf %109, %111 : vector<8x128xf32>
    %c0_44 = arith.constant 0 : index
    %c0_45 = arith.constant 0 : index
    %113 = vector.load %arg11[%c0_44, %c0_45] : memref<8x128xf32, #tpu.memory_space<vmem>>, vector<8x128xf32>
    tpu.vector_store %arg11[%c0_44, %c0_45], %112 {strides = array<i32>} : memref<8x128xf32, #tpu.memory_space<vmem>>, vector<8x128xf32>,
    %c3_i32 = arith.constant 3 : i32
    %c0_46 = arith.constant 0 : index
    %c0_47 = arith.constant 0 : index
    %114 = vector.load %arg11[%c0_46, %c0_47] : memref<8x128xf32, #tpu.memory_space<vmem>>, vector<8x128xf32>
    %115 = arith.index_cast %c3_i32 : i32 to index
    %c0_48 = arith.constant 0 : index
    %c0_49 = arith.constant 0 : index
    %116 = vector.load %arg10[%115, %c0_48, %c0_49] : memref<8x8x384xf32, #tpu.memory_space<vmem>>, vector<1x8x384xf32>
    %117 = vector.shape_cast %116 : vector<1x8x384xf32> to vector<8x384xf32>
    %118 = arith.truncf %114 : vector<8x128xf32> to vector<8x128xbf16>
    %c0_50 = arith.constant 0 : index
    %c0_51 = arith.constant 0 : index
    %119 = vector.load %arg4[%c0_50, %c0_51] : memref<128x384xbf16, #tpu.memory_space<vmem>>, vector<128x384xbf16>
    %cst_52 = arith.constant dense<0.000000e+00> : vector<8x384xf32>
    %120 = tpu.matmul %118, %119, %cst_52 {dimension_numbers = #tpu.dot_dimension_numbers<[1], [0], [0], [1], [0, 0, 1, 1], [], []>} : vector<8x128xbf16>, vector<128x384xbf16>, vector<8x384xf32> -> vector<8x384xf32>
    %121 = arith.addf %120, %14 : vector<8x384xf32>
    %122 = vector.extract_strided_slice %117 {offsets = [0, 0], sizes = [8, 128], strides = [1, 1]} : vector<8x384xf32> to vector<8x128xf32>
    %123 = vector.extract_strided_slice %117 {offsets = [0, 128], sizes = [8, 128], strides = [1, 1]} : vector<8x384xf32> to vector<8x128xf32>
    %124 = vector.extract_strided_slice %117 {offsets = [0, 256], sizes = [8, 128], strides = [1, 1]} : vector<8x384xf32> to vector<8x128xf32>
    %125 = vector.extract_strided_slice %121 {offsets = [0, 0], sizes = [8, 128], strides = [1, 1]} : vector<8x384xf32> to vector<8x128xf32>
    %126 = vector.extract_strided_slice %121 {offsets = [0, 128], sizes = [8, 128], strides = [1, 1]} : vector<8x384xf32> to vector<8x128xf32>
    %127 = vector.extract_strided_slice %121 {offsets = [0, 256], sizes = [8, 128], strides = [1, 1]} : vector<8x384xf32> to vector<8x128xf32>
    %128 = arith.addf %122, %125 : vector<8x128xf32>
    %129 = arith.negf %128 : vector<8x128xf32>
    %130 = math.exp %129 : vector<8x128xf32>
    %cst_53 = arith.constant 1.000000e+00 : f32
    %131 = vector.broadcast %cst_53 : f32 to vector<8x128xf32>
    %132 = arith.addf %131, %130 : vector<8x128xf32>
    %133 = arith.divf %131, %132 : vector<8x128xf32>
    %134 = arith.addf %123, %126 : vector<8x128xf32>
    %135 = arith.negf %134 : vector<8x128xf32>
    %136 = math.exp %135 : vector<8x128xf32>
    %cst_54 = arith.constant 1.000000e+00 : f32
    %137 = vector.broadcast %cst_54 : f32 to vector<8x128xf32>
    %138 = arith.addf %137, %136 : vector<8x128xf32>
    %139 = arith.divf %137, %138 : vector<8x128xf32>
    %140 = arith.mulf %133, %127 : vector<8x128xf32>
    %141 = arith.addf %124, %140 : vector<8x128xf32>
    %142 = math.tanh %141 : vector<8x128xf32>
    %143 = arith.subf %114, %142 : vector<8x128xf32>
    %144 = arith.mulf %139, %143 : vector<8x128xf32>
    %145 = arith.addf %142, %144 : vector<8x128xf32>
    %c0_55 = arith.constant 0 : index
    %c0_56 = arith.constant 0 : index
    %146 = vector.load %arg11[%c0_55, %c0_56] : memref<8x128xf32, #tpu.memory_space<vmem>>, vector<8x128xf32>
    tpu.vector_store %arg11[%c0_55, %c0_56], %145 {strides = array<i32>} : memref<8x128xf32, #tpu.memory_space<vmem>>, vector<8x128xf32>,
    %c4_i32 = arith.constant 4 : i32
    %c0_57 = arith.constant 0 : index
    %c0_58 = arith.constant 0 : index
    %147 = vector.load %arg11[%c0_57, %c0_58] : memref<8x128xf32, #tpu.memory_space<vmem>>, vector<8x128xf32>
    %148 = arith.index_cast %c4_i32 : i32 to index
    %c0_59 = arith.constant 0 : index
    %c0_60 = arith.constant 0 : index
    %149 = vector.load %arg10[%148, %c0_59, %c0_60] : memref<8x8x384xf32, #tpu.memory_space<vmem>>, vector<1x8x384xf32>
    %150 = vector.shape_cast %149 : vector<1x8x384xf32> to vector<8x384xf32>
    %151 = arith.truncf %147 : vector<8x128xf32> to vector<8x128xbf16>
    %c0_61 = arith.constant 0 : index
    %c0_62 = arith.constant 0 : index
    %152 = vector.load %arg4[%c0_61, %c0_62] : memref<128x384xbf16, #tpu.memory_space<vmem>>, vector<128x384xbf16>
    %cst_63 = arith.constant dense<0.000000e+00> : vector<8x384xf32>
    %153 = tpu.matmul %151, %152, %cst_63 {dimension_numbers = #tpu.dot_dimension_numbers<[1], [0], [0], [1], [0, 0, 1, 1], [], []>} : vector<8x128xbf16>, vector<128x384xbf16>, vector<8x384xf32> -> vector<8x384xf32>
    %154 = arith.addf %153, %14 : vector<8x384xf32>
    %155 = vector.extract_strided_slice %150 {offsets = [0, 0], sizes = [8, 128], strides = [1, 1]} : vector<8x384xf32> to vector<8x128xf32>
    %156 = vector.extract_strided_slice %150 {offsets = [0, 128], sizes = [8, 128], strides = [1, 1]} : vector<8x384xf32> to vector<8x128xf32>
    %157 = vector.extract_strided_slice %150 {offsets = [0, 256], sizes = [8, 128], strides = [1, 1]} : vector<8x384xf32> to vector<8x128xf32>
    %158 = vector.extract_strided_slice %154 {offsets = [0, 0], sizes = [8, 128], strides = [1, 1]} : vector<8x384xf32> to vector<8x128xf32>
    %159 = vector.extract_strided_slice %154 {offsets = [0, 128], sizes = [8, 128], strides = [1, 1]} : vector<8x384xf32> to vector<8x128xf32>
    %160 = vector.extract_strided_slice %154 {offsets = [0, 256], sizes = [8, 128], strides = [1, 1]} : vector<8x384xf32> to vector<8x128xf32>
    %161 = arith.addf %155, %158 : vector<8x128xf32>
    %162 = arith.negf %161 : vector<8x128xf32>
    %163 = math.exp %162 : vector<8x128xf32>
    %cst_64 = arith.constant 1.000000e+00 : f32
    %164 = vector.broadcast %cst_64 : f32 to vector<8x128xf32>
    %165 = arith.addf %164, %163 : vector<8x128xf32>
    %166 = arith.divf %164, %165 : vector<8x128xf32>
    %167 = arith.addf %156, %159 : vector<8x128xf32>
    %168 = arith.negf %167 : vector<8x128xf32>
    %169 = math.exp %168 : vector<8x128xf32>
    %cst_65 = arith.constant 1.000000e+00 : f32
    %170 = vector.broadcast %cst_65 : f32 to vector<8x128xf32>
    %171 = arith.addf %170, %169 : vector<8x128xf32>
    %172 = arith.divf %170, %171 : vector<8x128xf32>
    %173 = arith.mulf %166, %160 : vector<8x128xf32>
    %174 = arith.addf %157, %173 : vector<8x128xf32>
    %175 = math.tanh %174 : vector<8x128xf32>
    %176 = arith.subf %147, %175 : vector<8x128xf32>
    %177 = arith.mulf %172, %176 : vector<8x128xf32>
    %178 = arith.addf %175, %177 : vector<8x128xf32>
    %c0_66 = arith.constant 0 : index
    %c0_67 = arith.constant 0 : index
    %179 = vector.load %arg11[%c0_66, %c0_67] : memref<8x128xf32, #tpu.memory_space<vmem>>, vector<8x128xf32>
    tpu.vector_store %arg11[%c0_66, %c0_67], %178 {strides = array<i32>} : memref<8x128xf32, #tpu.memory_space<vmem>>, vector<8x128xf32>,
    %c5_i32 = arith.constant 5 : i32
    %c0_68 = arith.constant 0 : index
    %c0_69 = arith.constant 0 : index
    %180 = vector.load %arg11[%c0_68, %c0_69] : memref<8x128xf32, #tpu.memory_space<vmem>>, vector<8x128xf32>
    %181 = arith.index_cast %c5_i32 : i32 to index
    %c0_70 = arith.constant 0 : index
    %c0_71 = arith.constant 0 : index
    %182 = vector.load %arg10[%181, %c0_70, %c0_71] : memref<8x8x384xf32, #tpu.memory_space<vmem>>, vector<1x8x384xf32>
    %183 = vector.shape_cast %182 : vector<1x8x384xf32> to vector<8x384xf32>
    %184 = arith.truncf %180 : vector<8x128xf32> to vector<8x128xbf16>
    %c0_72 = arith.constant 0 : index
    %c0_73 = arith.constant 0 : index
    %185 = vector.load %arg4[%c0_72, %c0_73] : memref<128x384xbf16, #tpu.memory_space<vmem>>, vector<128x384xbf16>
    %cst_74 = arith.constant dense<0.000000e+00> : vector<8x384xf32>
    %186 = tpu.matmul %184, %185, %cst_74 {dimension_numbers = #tpu.dot_dimension_numbers<[1], [0], [0], [1], [0, 0, 1, 1], [], []>} : vector<8x128xbf16>, vector<128x384xbf16>, vector<8x384xf32> -> vector<8x384xf32>
    %187 = arith.addf %186, %14 : vector<8x384xf32>
    %188 = vector.extract_strided_slice %183 {offsets = [0, 0], sizes = [8, 128], strides = [1, 1]} : vector<8x384xf32> to vector<8x128xf32>
    %189 = vector.extract_strided_slice %183 {offsets = [0, 128], sizes = [8, 128], strides = [1, 1]} : vector<8x384xf32> to vector<8x128xf32>
    %190 = vector.extract_strided_slice %183 {offsets = [0, 256], sizes = [8, 128], strides = [1, 1]} : vector<8x384xf32> to vector<8x128xf32>
    %191 = vector.extract_strided_slice %187 {offsets = [0, 0], sizes = [8, 128], strides = [1, 1]} : vector<8x384xf32> to vector<8x128xf32>
    %192 = vector.extract_strided_slice %187 {offsets = [0, 128], sizes = [8, 128], strides = [1, 1]} : vector<8x384xf32> to vector<8x128xf32>
    %193 = vector.extract_strided_slice %187 {offsets = [0, 256], sizes = [8, 128], strides = [1, 1]} : vector<8x384xf32> to vector<8x128xf32>
    %194 = arith.addf %188, %191 : vector<8x128xf32>
    %195 = arith.negf %194 : vector<8x128xf32>
    %196 = math.exp %195 : vector<8x128xf32>
    %cst_75 = arith.constant 1.000000e+00 : f32
    %197 = vector.broadcast %cst_75 : f32 to vector<8x128xf32>
    %198 = arith.addf %197, %196 : vector<8x128xf32>
    %199 = arith.divf %197, %198 : vector<8x128xf32>
    %200 = arith.addf %189, %192 : vector<8x128xf32>
    %201 = arith.negf %200 : vector<8x128xf32>
    %202 = math.exp %201 : vector<8x128xf32>
    %cst_76 = arith.constant 1.000000e+00 : f32
    %203 = vector.broadcast %cst_76 : f32 to vector<8x128xf32>
    %204 = arith.addf %203, %202 : vector<8x128xf32>
    %205 = arith.divf %203, %204 : vector<8x128xf32>
    %206 = arith.mulf %199, %193 : vector<8x128xf32>
    %207 = arith.addf %190, %206 : vector<8x128xf32>
    %208 = math.tanh %207 : vector<8x128xf32>
    %209 = arith.subf %180, %208 : vector<8x128xf32>
    %210 = arith.mulf %205, %209 : vector<8x128xf32>
    %211 = arith.addf %208, %210 : vector<8x128xf32>
    %c0_77 = arith.constant 0 : index
    %c0_78 = arith.constant 0 : index
    %212 = vector.load %arg11[%c0_77, %c0_78] : memref<8x128xf32, #tpu.memory_space<vmem>>, vector<8x128xf32>
    tpu.vector_store %arg11[%c0_77, %c0_78], %211 {strides = array<i32>} : memref<8x128xf32, #tpu.memory_space<vmem>>, vector<8x128xf32>,
    %c6_i32 = arith.constant 6 : i32
    %c0_79 = arith.constant 0 : index
    %c0_80 = arith.constant 0 : index
    %213 = vector.load %arg11[%c0_79, %c0_80] : memref<8x128xf32, #tpu.memory_space<vmem>>, vector<8x128xf32>
    %214 = arith.index_cast %c6_i32 : i32 to index
    %c0_81 = arith.constant 0 : index
    %c0_82 = arith.constant 0 : index
    %215 = vector.load %arg10[%214, %c0_81, %c0_82] : memref<8x8x384xf32, #tpu.memory_space<vmem>>, vector<1x8x384xf32>
    %216 = vector.shape_cast %215 : vector<1x8x384xf32> to vector<8x384xf32>
    %217 = arith.truncf %213 : vector<8x128xf32> to vector<8x128xbf16>
    %c0_83 = arith.constant 0 : index
    %c0_84 = arith.constant 0 : index
    %218 = vector.load %arg4[%c0_83, %c0_84] : memref<128x384xbf16, #tpu.memory_space<vmem>>, vector<128x384xbf16>
    %cst_85 = arith.constant dense<0.000000e+00> : vector<8x384xf32>
    %219 = tpu.matmul %217, %218, %cst_85 {dimension_numbers = #tpu.dot_dimension_numbers<[1], [0], [0], [1], [0, 0, 1, 1], [], []>} : vector<8x128xbf16>, vector<128x384xbf16>, vector<8x384xf32> -> vector<8x384xf32>
    %220 = arith.addf %219, %14 : vector<8x384xf32>
    %221 = vector.extract_strided_slice %216 {offsets = [0, 0], sizes = [8, 128], strides = [1, 1]} : vector<8x384xf32> to vector<8x128xf32>
    %222 = vector.extract_strided_slice %216 {offsets = [0, 128], sizes = [8, 128], strides = [1, 1]} : vector<8x384xf32> to vector<8x128xf32>
    %223 = vector.extract_strided_slice %216 {offsets = [0, 256], sizes = [8, 128], strides = [1, 1]} : vector<8x384xf32> to vector<8x128xf32>
    %224 = vector.extract_strided_slice %220 {offsets = [0, 0], sizes = [8, 128], strides = [1, 1]} : vector<8x384xf32> to vector<8x128xf32>
    %225 = vector.extract_strided_slice %220 {offsets = [0, 128], sizes = [8, 128], strides = [1, 1]} : vector<8x384xf32> to vector<8x128xf32>
    %226 = vector.extract_strided_slice %220 {offsets = [0, 256], sizes = [8, 128], strides = [1, 1]} : vector<8x384xf32> to vector<8x128xf32>
    %227 = arith.addf %221, %224 : vector<8x128xf32>
    %228 = arith.negf %227 : vector<8x128xf32>
    %229 = math.exp %228 : vector<8x128xf32>
    %cst_86 = arith.constant 1.000000e+00 : f32
    %230 = vector.broadcast %cst_86 : f32 to vector<8x128xf32>
    %231 = arith.addf %230, %229 : vector<8x128xf32>
    %232 = arith.divf %230, %231 : vector<8x128xf32>
    %233 = arith.addf %222, %225 : vector<8x128xf32>
    %234 = arith.negf %233 : vector<8x128xf32>
    %235 = math.exp %234 : vector<8x128xf32>
    %cst_87 = arith.constant 1.000000e+00 : f32
    %236 = vector.broadcast %cst_87 : f32 to vector<8x128xf32>
    %237 = arith.addf %236, %235 : vector<8x128xf32>
    %238 = arith.divf %236, %237 : vector<8x128xf32>
    %239 = arith.mulf %232, %226 : vector<8x128xf32>
    %240 = arith.addf %223, %239 : vector<8x128xf32>
    %241 = math.tanh %240 : vector<8x128xf32>
    %242 = arith.subf %213, %241 : vector<8x128xf32>
    %243 = arith.mulf %238, %242 : vector<8x128xf32>
    %244 = arith.addf %241, %243 : vector<8x128xf32>
    %c0_88 = arith.constant 0 : index
    %c0_89 = arith.constant 0 : index
    %245 = vector.load %arg11[%c0_88, %c0_89] : memref<8x128xf32, #tpu.memory_space<vmem>>, vector<8x128xf32>
    tpu.vector_store %arg11[%c0_88, %c0_89], %244 {strides = array<i32>} : memref<8x128xf32, #tpu.memory_space<vmem>>, vector<8x128xf32>,
    %c7_i32 = arith.constant 7 : i32
    %c0_90 = arith.constant 0 : index
    %c0_91 = arith.constant 0 : index
    %246 = vector.load %arg11[%c0_90, %c0_91] : memref<8x128xf32, #tpu.memory_space<vmem>>, vector<8x128xf32>
    %247 = arith.index_cast %c7_i32 : i32 to index
    %c0_92 = arith.constant 0 : index
    %c0_93 = arith.constant 0 : index
    %248 = vector.load %arg10[%247, %c0_92, %c0_93] : memref<8x8x384xf32, #tpu.memory_space<vmem>>, vector<1x8x384xf32>
    %249 = vector.shape_cast %248 : vector<1x8x384xf32> to vector<8x384xf32>
    %250 = arith.truncf %246 : vector<8x128xf32> to vector<8x128xbf16>
    %c0_94 = arith.constant 0 : index
    %c0_95 = arith.constant 0 : index
    %251 = vector.load %arg4[%c0_94, %c0_95] : memref<128x384xbf16, #tpu.memory_space<vmem>>, vector<128x384xbf16>
    %cst_96 = arith.constant dense<0.000000e+00> : vector<8x384xf32>
    %252 = tpu.matmul %250, %251, %cst_96 {dimension_numbers = #tpu.dot_dimension_numbers<[1], [0], [0], [1], [0, 0, 1, 1], [], []>} : vector<8x128xbf16>, vector<128x384xbf16>, vector<8x384xf32> -> vector<8x384xf32>
    %253 = arith.addf %252, %14 : vector<8x384xf32>
    %254 = vector.extract_strided_slice %249 {offsets = [0, 0], sizes = [8, 128], strides = [1, 1]} : vector<8x384xf32> to vector<8x128xf32>
    %255 = vector.extract_strided_slice %249 {offsets = [0, 128], sizes = [8, 128], strides = [1, 1]} : vector<8x384xf32> to vector<8x128xf32>
    %256 = vector.extract_strided_slice %249 {offsets = [0, 256], sizes = [8, 128], strides = [1, 1]} : vector<8x384xf32> to vector<8x128xf32>
    %257 = vector.extract_strided_slice %253 {offsets = [0, 0], sizes = [8, 128], strides = [1, 1]} : vector<8x384xf32> to vector<8x128xf32>
    %258 = vector.extract_strided_slice %253 {offsets = [0, 128], sizes = [8, 128], strides = [1, 1]} : vector<8x384xf32> to vector<8x128xf32>
    %259 = vector.extract_strided_slice %253 {offsets = [0, 256], sizes = [8, 128], strides = [1, 1]} : vector<8x384xf32> to vector<8x128xf32>
    %260 = arith.addf %254, %257 : vector<8x128xf32>
    %261 = arith.negf %260 : vector<8x128xf32>
    %262 = math.exp %261 : vector<8x128xf32>
    %cst_97 = arith.constant 1.000000e+00 : f32
    %263 = vector.broadcast %cst_97 : f32 to vector<8x128xf32>
    %264 = arith.addf %263, %262 : vector<8x128xf32>
    %265 = arith.divf %263, %264 : vector<8x128xf32>
    %266 = arith.addf %255, %258 : vector<8x128xf32>
    %267 = arith.negf %266 : vector<8x128xf32>
    %268 = math.exp %267 : vector<8x128xf32>
    %cst_98 = arith.constant 1.000000e+00 : f32
    %269 = vector.broadcast %cst_98 : f32 to vector<8x128xf32>
    %270 = arith.addf %269, %268 : vector<8x128xf32>
    %271 = arith.divf %269, %270 : vector<8x128xf32>
    %272 = arith.mulf %265, %259 : vector<8x128xf32>
    %273 = arith.addf %256, %272 : vector<8x128xf32>
    %274 = math.tanh %273 : vector<8x128xf32>
    %275 = arith.subf %246, %274 : vector<8x128xf32>
    %276 = arith.mulf %271, %275 : vector<8x128xf32>
    %277 = arith.addf %274, %276 : vector<8x128xf32>
    %c0_99 = arith.constant 0 : index
    %c0_100 = arith.constant 0 : index
    %278 = vector.load %arg11[%c0_99, %c0_100] : memref<8x128xf32, #tpu.memory_space<vmem>>, vector<8x128xf32>
    tpu.vector_store %arg11[%c0_99, %c0_100], %277 {strides = array<i32>} : memref<8x128xf32, #tpu.memory_space<vmem>>, vector<8x128xf32>,
    %c8_i32 = arith.constant 8 : i32
    %c0_i32_101 = arith.constant 0 : i32
    %279 = arith.cmpi eq, %arg1, %c0_i32_101 : i32
    %280 = arith.extui %279 : i1 to i32
    %c0_i32_102 = arith.constant 0 : i32
    %281 = arith.cmpi ne, %280, %c0_i32_102 : i32
    scf.if %281 {
      %c0_103 = arith.constant 0 : index
      %c0_104 = arith.constant 0 : index
      %282 = vector.load %arg11[%c0_103, %c0_104] : memref<8x128xf32, #tpu.memory_space<vmem>>, vector<8x128xf32>
      %283 = arith.truncf %282 : vector<8x128xf32> to vector<8x128xbf16>
      %c0_105 = arith.constant 0 : index
      %c0_106 = arith.constant 0 : index
      %284 = vector.load %arg7[%c0_105, %c0_106] : memref<128x128xbf16, #tpu.memory_space<vmem>>, vector<128x128xbf16>
      %cst_107 = arith.constant dense<0.000000e+00> : vector<8x128xf32>
      %285 = tpu.matmul %283, %284, %cst_107 {dimension_numbers = #tpu.dot_dimension_numbers<[1], [0], [0], [1], [0, 0, 1, 1], [], []>} : vector<8x128xbf16>, vector<128x128xbf16>, vector<8x128xf32> -> vector<8x128xf32>
      %c0_108 = arith.constant 0 : index
      %c0_109 = arith.constant 0 : index
      %286 = vector.load %arg8[%c0_108, %c0_109] : memref<1x128xf32, #tpu.memory_space<vmem>>, vector<1x128xf32>
      %287 = vector.broadcast %286 : vector<1x128xf32> to vector<8x128xf32>
      %288 = arith.addf %285, %287 : vector<8x128xf32>
      %c0_110 = arith.constant 0 : index
      %c0_111 = arith.constant 0 : index
      %289 = vector.load %arg9[%c0_110, %c0_111] : memref<8x128xf32, #tpu.memory_space<vmem>>, vector<8x128xf32>
      tpu.vector_store %arg9[%c0_110, %c0_111], %288 {strides = array<i32>} : memref<8x128xf32, #tpu.memory_space<vmem>>, vector<8x128xf32>,
    } else {
    }
    return
  }
  func.func @transform_0(%arg0: i32, %arg1: i32) -> (i32, i32, i32) {
    %c0_i32 = arith.constant 0 : i32
    %c0_i32_0 = arith.constant 0 : i32
    return %arg1, %arg0, %c0_i32 : i32, i32, i32
  }
  func.func @transform_1(%arg0: i32, %arg1: i32) -> (i32, i32) {
    %c0_i32 = arith.constant 0 : i32
    %c0_i32_0 = arith.constant 0 : i32
    %c0_i32_1 = arith.constant 0 : i32
    return %c0_i32, %c0_i32_0 : i32, i32
  }
  func.func @transform_2(%arg0: i32, %arg1: i32) -> (i32, i32) {
    %c0_i32 = arith.constant 0 : i32
    %c0_i32_0 = arith.constant 0 : i32
    %c0_i32_1 = arith.constant 0 : i32
    return %c0_i32, %c0_i32_0 : i32, i32
  }
  func.func @transform_3(%arg0: i32, %arg1: i32) -> (i32, i32) {
    %c0_i32 = arith.constant 0 : i32
    %c0_i32_0 = arith.constant 0 : i32
    %c0_i32_1 = arith.constant 0 : i32
    return %c0_i32, %c0_i32_0 : i32, i32
  }
  func.func @transform_4(%arg0: i32, %arg1: i32) -> (i32, i32) {
    %c0_i32 = arith.constant 0 : i32
    %c0_i32_0 = arith.constant 0 : i32
    %c0_i32_1 = arith.constant 0 : i32
    return %c0_i32, %c0_i32_0 : i32, i32
  }
  func.func @transform_5(%arg0: i32, %arg1: i32) -> (i32, i32) {
    %c0_i32 = arith.constant 0 : i32
    %c0_i32_0 = arith.constant 0 : i32
    %c0_i32_1 = arith.constant 0 : i32
    return %c0_i32, %c0_i32_0 : i32, i32
  }
  func.func @transform_6(%arg0: i32, %arg1: i32) -> (i32, i32) {
    %c0_i32 = arith.constant 0 : i32
    %c0_i32_0 = arith.constant 0 : i32
    %c0_i32_1 = arith.constant 0 : i32
    return %c0_i32, %c0_i32_0 : i32, i32
  }
  func.func @transform_7(%arg0: i32, %arg1: i32) -> (i32, i32) {
    %c0_i32 = arith.constant 0 : i32
    %c0_i32_0 = arith.constant 0 : i32
    return %arg0, %c0_i32 : i32, i32
  }
}

module attributes {stable_mosaic.version = 11 : i64} {
  func.func @kernel(%arg0: i32, %arg1: i32, %arg2: memref<8x8x128xbf16, #tpu.memory_space<vmem>>, %arg3: memref<128x384xbf16, #tpu.memory_space<vmem>>, %arg4: memref<128x384xbf16, #tpu.memory_space<vmem>>, %arg5: memref<1x384xf32, #tpu.memory_space<vmem>>, %arg6: memref<1x384xf32, #tpu.memory_space<vmem>>, %arg7: memref<128x128xbf16, #tpu.memory_space<vmem>>, %arg8: memref<1x128xf32, #tpu.memory_space<vmem>>, %arg9: memref<8x128xf32, #tpu.memory_space<vmem>>, %arg10: memref<8x8x384xf32, #tpu.memory_space<vmem>>, %arg11: memref<8x128xf32, #tpu.memory_space<vmem>>) attributes {dimension_semantics = [#tpu.dimension_semantics<parallel>, #tpu.dimension_semantics<arbitrary>], iteration_bounds = array<i64: 1, 1>, scalar_prefetch = 0 : i64, scratch_operands = 2 : i64, tpu.core_type = #tpu.core_type<tc>, window_params = [{transform_indices = @transform_0, window_bounds = array<i64: 8, 8, 128>}, {pipeline_mode = #tpu.pipeline_mode<synchronous>, transform_indices = @transform_1, window_bounds = array<i64: 128, 384>}, {pipeline_mode = #tpu.pipeline_mode<synchronous>, transform_indices = @transform_2, window_bounds = array<i64: 128, 384>}, {pipeline_mode = #tpu.pipeline_mode<synchronous>, transform_indices = @transform_3, window_bounds = array<i64: 1, 384>}, {pipeline_mode = #tpu.pipeline_mode<synchronous>, transform_indices = @transform_4, window_bounds = array<i64: 1, 384>}, {pipeline_mode = #tpu.pipeline_mode<synchronous>, transform_indices = @transform_5, window_bounds = array<i64: 128, 128>}, {pipeline_mode = #tpu.pipeline_mode<synchronous>, transform_indices = @transform_6, window_bounds = array<i64: 1, 128>}, {transform_indices = @transform_7, window_bounds = array<i64: 8, 128>}]} {
    %c0_i32 = arith.constant 0 : i32
    %0 = arith.cmpi eq, %arg1, %c0_i32 : i32
    %1 = arith.extui %0 : i1 to i32
    %c0_i32_0 = arith.constant 0 : i32
    %2 = arith.cmpi ne, %1, %c0_i32_0 : i32
    scf.if %2 {
      %cst_103 = arith.constant 0.000000e+00 : f32
      %282 = vector.broadcast %cst_103 : f32 to vector<8x128xf32>
      %c0_104 = arith.constant 0 : index
      %c0_105 = arith.constant 0 : index
      %283 = vector.load %arg11[%c0_104, %c0_105] : memref<8x128xf32, #tpu.memory_space<vmem>>, vector<8x128xf32>
      tpu.vector_store %arg11[%c0_104, %c0_105], %282 {strides = array<i32>} : memref<8x128xf32, #tpu.memory_space<vmem>>, vector<8x128xf32>,
    } else {
    }
    %c0 = arith.constant 0 : index
    %c0_1 = arith.constant 0 : index
    %c0_2 = arith.constant 0 : index
    %3 = vector.load %arg2[%c0, %c0_1, %c0_2] : memref<8x8x128xbf16, #tpu.memory_space<vmem>>, vector<8x8x128xbf16>
    %4 = vector.shape_cast %3 : vector<8x8x128xbf16> to vector<64x128xbf16>
    %c0_3 = arith.constant 0 : index
    %c0_4 = arith.constant 0 : index
    %5 = vector.load %arg3[%c0_3, %c0_4] : memref<128x384xbf16, #tpu.memory_space<vmem>>, vector<128x384xbf16>
    %cst = arith.constant dense<0.000000e+00> : vector<64x384xf32>
    %6 = tpu.matmul %4, %5, %cst {dimension_numbers = #tpu.dot_dimension_numbers<[1], [0], [0], [1], [0, 0, 1, 1], [], []>} : vector<64x128xbf16>, vector<128x384xbf16>, vector<64x384xf32> -> vector<64x384xf32>
    %c0_5 = arith.constant 0 : index
    %c0_6 = arith.constant 0 : index
    %7 = vector.load %arg5[%c0_5, %c0_6] : memref<1x384xf32, #tpu.memory_space<vmem>>, vector<1x384xf32>
    %8 = vector.broadcast %7 : vector<1x384xf32> to vector<64x384xf32>
    %9 = arith.addf %6, %8 : vector<64x384xf32>
    %10 = vector.shape_cast %9 : vector<64x384xf32> to vector<8x8x384xf32>
    %c0_7 = arith.constant 0 : index
    %c0_8 = arith.constant 0 : index
    %c0_9 = arith.constant 0 : index
    %11 = vector.load %arg10[%c0_7, %c0_8, %c0_9] : memref<8x8x384xf32, #tpu.memory_space<vmem>>, vector<8x8x384xf32>
    tpu.vector_store %arg10[%c0_7, %c0_8, %c0_9], %10 {strides = array<i32>} : memref<8x8x384xf32, #tpu.memory_space<vmem>>, vector<8x8x384xf32>,
    %c0_10 = arith.constant 0 : index
    %c0_11 = arith.constant 0 : index
    %12 = vector.load %arg6[%c0_10, %c0_11] : memref<1x384xf32, #tpu.memory_space<vmem>>, vector<1x384xf32>
    %13 = vector.shape_cast %12 : vector<1x384xf32> to vector<1x384xf32>
    %14 = vector.broadcast %13 : vector<1x384xf32> to vector<8x384xf32>
    %c0_i32_12 = arith.constant 0 : i32
    %c0_13 = arith.constant 0 : index
    %c0_14 = arith.constant 0 : index
    %15 = vector.load %arg11[%c0_13, %c0_14] : memref<8x128xf32, #tpu.memory_space<vmem>>, vector<8x128xf32>
    %16 = arith.index_cast %c0_i32_12 : i32 to index
    %c0_15 = arith.constant 0 : index
    %c0_16 = arith.constant 0 : index
    %17 = vector.load %arg10[%16, %c0_15, %c0_16] : memref<8x8x384xf32, #tpu.memory_space<vmem>>, vector<1x8x384xf32>
    %18 = vector.shape_cast %17 : vector<1x8x384xf32> to vector<8x384xf32>
    %19 = arith.truncf %15 : vector<8x128xf32> to vector<8x128xbf16>
    %c0_17 = arith.constant 0 : index
    %c0_18 = arith.constant 0 : index
    %20 = vector.load %arg4[%c0_17, %c0_18] : memref<128x384xbf16, #tpu.memory_space<vmem>>, vector<128x384xbf16>
    %cst_19 = arith.constant dense<0.000000e+00> : vector<8x384xf32>
    %21 = tpu.matmul %19, %20, %cst_19 {dimension_numbers = #tpu.dot_dimension_numbers<[1], [0], [0], [1], [0, 0, 1, 1], [], []>} : vector<8x128xbf16>, vector<128x384xbf16>, vector<8x384xf32> -> vector<8x384xf32>
    %22 = arith.addf %21, %14 : vector<8x384xf32>
    %23 = vector.extract_strided_slice %18 {offsets = [0, 0], sizes = [8, 128], strides = [1, 1]} : vector<8x384xf32> to vector<8x128xf32>
    %24 = vector.extract_strided_slice %18 {offsets = [0, 128], sizes = [8, 128], strides = [1, 1]} : vector<8x384xf32> to vector<8x128xf32>
    %25 = vector.extract_strided_slice %18 {offsets = [0, 256], sizes = [8, 128], strides = [1, 1]} : vector<8x384xf32> to vector<8x128xf32>
    %26 = vector.extract_strided_slice %22 {offsets = [0, 0], sizes = [8, 128], strides = [1, 1]} : vector<8x384xf32> to vector<8x128xf32>
    %27 = vector.extract_strided_slice %22 {offsets = [0, 128], sizes = [8, 128], strides = [1, 1]} : vector<8x384xf32> to vector<8x128xf32>
    %28 = vector.extract_strided_slice %22 {offsets = [0, 256], sizes = [8, 128], strides = [1, 1]} : vector<8x384xf32> to vector<8x128xf32>
    %29 = arith.addf %23, %26 : vector<8x128xf32>
    %30 = arith.negf %29 : vector<8x128xf32>
    %31 = math.exp %30 : vector<8x128xf32>
    %cst_20 = arith.constant 1.000000e+00 : f32
    %32 = vector.broadcast %cst_20 : f32 to vector<8x128xf32>
    %33 = arith.addf %32, %31 : vector<8x128xf32>
    %34 = arith.divf %32, %33 : vector<8x128xf32>
    %35 = arith.addf %24, %27 : vector<8x128xf32>
    %36 = arith.negf %35 : vector<8x128xf32>
    %37 = math.exp %36 : vector<8x128xf32>
    %cst_21 = arith.constant 1.000000e+00 : f32
    %38 = vector.broadcast %cst_21 : f32 to vector<8x128xf32>
    %39 = arith.addf %38, %37 : vector<8x128xf32>
    %40 = arith.divf %38, %39 : vector<8x128xf32>
    %41 = arith.mulf %34, %28 : vector<8x128xf32>
    %42 = arith.addf %25, %41 : vector<8x128xf32>
    %43 = math.tanh %42 : vector<8x128xf32>
    %44 = arith.subf %15, %43 : vector<8x128xf32>
    %45 = arith.mulf %40, %44 : vector<8x128xf32>
    %46 = arith.addf %43, %45 : vector<8x128xf32>
    %c0_22 = arith.constant 0 : index
    %c0_23 = arith.constant 0 : index
    %47 = vector.load %arg11[%c0_22, %c0_23] : memref<8x128xf32, #tpu.memory_space<vmem>>, vector<8x128xf32>
    tpu.vector_store %arg11[%c0_22, %c0_23], %46 {strides = array<i32>} : memref<8x128xf32, #tpu.memory_space<vmem>>, vector<8x128xf32>,
    %c1_i32 = arith.constant 1 : i32
    %c0_24 = arith.constant 0 : index
    %c0_25 = arith.constant 0 : index
    %48 = vector.load %arg11[%c0_24, %c0_25] : memref<8x128xf32, #tpu.memory_space<vmem>>, vector<8x128xf32>
    %49 = arith.index_cast %c1_i32 : i32 to index
    %c0_26 = arith.constant 0 : index
    %c0_27 = arith.constant 0 : index
    %50 = vector.load %arg10[%49, %c0_26, %c0_27] : memref<8x8x384xf32, #tpu.memory_space<vmem>>, vector<1x8x384xf32>
    %51 = vector.shape_cast %50 : vector<1x8x384xf32> to vector<8x384xf32>
    %52 = arith.truncf %48 : vector<8x128xf32> to vector<8x128xbf16>
    %c0_28 = arith.constant 0 : index
    %c0_29 = arith.constant 0 : index
    %53 = vector.load %arg4[%c0_28, %c0_29] : memref<128x384xbf16, #tpu.memory_space<vmem>>, vector<128x384xbf16>
    %cst_30 = arith.constant dense<0.000000e+00> : vector<8x384xf32>
    %54 = tpu.matmul %52, %53, %cst_30 {dimension_numbers = #tpu.dot_dimension_numbers<[1], [0], [0], [1], [0, 0, 1, 1], [], []>} : vector<8x128xbf16>, vector<128x384xbf16>, vector<8x384xf32> -> vector<8x384xf32>
    %55 = arith.addf %54, %14 : vector<8x384xf32>
    %56 = vector.extract_strided_slice %51 {offsets = [0, 0], sizes = [8, 128], strides = [1, 1]} : vector<8x384xf32> to vector<8x128xf32>
    %57 = vector.extract_strided_slice %51 {offsets = [0, 128], sizes = [8, 128], strides = [1, 1]} : vector<8x384xf32> to vector<8x128xf32>
    %58 = vector.extract_strided_slice %51 {offsets = [0, 256], sizes = [8, 128], strides = [1, 1]} : vector<8x384xf32> to vector<8x128xf32>
    %59 = vector.extract_strided_slice %55 {offsets = [0, 0], sizes = [8, 128], strides = [1, 1]} : vector<8x384xf32> to vector<8x128xf32>
    %60 = vector.extract_strided_slice %55 {offsets = [0, 128], sizes = [8, 128], strides = [1, 1]} : vector<8x384xf32> to vector<8x128xf32>
    %61 = vector.extract_strided_slice %55 {offsets = [0, 256], sizes = [8, 128], strides = [1, 1]} : vector<8x384xf32> to vector<8x128xf32>
    %62 = arith.addf %56, %59 : vector<8x128xf32>
    %63 = arith.negf %62 : vector<8x128xf32>
    %64 = math.exp %63 : vector<8x128xf32>
    %cst_31 = arith.constant 1.000000e+00 : f32
    %65 = vector.broadcast %cst_31 : f32 to vector<8x128xf32>
    %66 = arith.addf %65, %64 : vector<8x128xf32>
    %67 = arith.divf %65, %66 : vector<8x128xf32>
    %68 = arith.addf %57, %60 : vector<8x128xf32>
    %69 = arith.negf %68 : vector<8x128xf32>
    %70 = math.exp %69 : vector<8x128xf32>
    %cst_32 = arith.constant 1.000000e+00 : f32
    %71 = vector.broadcast %cst_32 : f32 to vector<8x128xf32>
    %72 = arith.addf %71, %70 : vector<8x128xf32>
    %73 = arith.divf %71, %72 : vector<8x128xf32>
    %74 = arith.mulf %67, %61 : vector<8x128xf32>
    %75 = arith.addf %58, %74 : vector<8x128xf32>
    %76 = math.tanh %75 : vector<8x128xf32>
    %77 = arith.subf %48, %76 : vector<8x128xf32>
    %78 = arith.mulf %73, %77 : vector<8x128xf32>
    %79 = arith.addf %76, %78 : vector<8x128xf32>
    %c0_33 = arith.constant 0 : index
    %c0_34 = arith.constant 0 : index
    %80 = vector.load %arg11[%c0_33, %c0_34] : memref<8x128xf32, #tpu.memory_space<vmem>>, vector<8x128xf32>
    tpu.vector_store %arg11[%c0_33, %c0_34], %79 {strides = array<i32>} : memref<8x128xf32, #tpu.memory_space<vmem>>, vector<8x128xf32>,
    %c2_i32 = arith.constant 2 : i32
    %c0_35 = arith.constant 0 : index
    %c0_36 = arith.constant 0 : index
    %81 = vector.load %arg11[%c0_35, %c0_36] : memref<8x128xf32, #tpu.memory_space<vmem>>, vector<8x128xf32>
    %82 = arith.index_cast %c2_i32 : i32 to index
    %c0_37 = arith.constant 0 : index
    %c0_38 = arith.constant 0 : index
    %83 = vector.load %arg10[%82, %c0_37, %c0_38] : memref<8x8x384xf32, #tpu.memory_space<vmem>>, vector<1x8x384xf32>
    %84 = vector.shape_cast %83 : vector<1x8x384xf32> to vector<8x384xf32>
    %85 = arith.truncf %81 : vector<8x128xf32> to vector<8x128xbf16>
    %c0_39 = arith.constant 0 : index
    %c0_40 = arith.constant 0 : index
    %86 = vector.load %arg4[%c0_39, %c0_40] : memref<128x384xbf16, #tpu.memory_space<vmem>>, vector<128x384xbf16>
    %cst_41 = arith.constant dense<0.000000e+00> : vector<8x384xf32>
    %87 = tpu.matmul %85, %86, %cst_41 {dimension_numbers = #tpu.dot_dimension_numbers<[1], [0], [0], [1], [0, 0, 1, 1], [], []>} : vector<8x128xbf16>, vector<128x384xbf16>, vector<8x384xf32> -> vector<8x384xf32>
    %88 = arith.addf %87, %14 : vector<8x384xf32>
    %89 = vector.extract_strided_slice %84 {offsets = [0, 0], sizes = [8, 128], strides = [1, 1]} : vector<8x384xf32> to vector<8x128xf32>
    %90 = vector.extract_strided_slice %84 {offsets = [0, 128], sizes = [8, 128], strides = [1, 1]} : vector<8x384xf32> to vector<8x128xf32>
    %91 = vector.extract_strided_slice %84 {offsets = [0, 256], sizes = [8, 128], strides = [1, 1]} : vector<8x384xf32> to vector<8x128xf32>
    %92 = vector.extract_strided_slice %88 {offsets = [0, 0], sizes = [8, 128], strides = [1, 1]} : vector<8x384xf32> to vector<8x128xf32>
    %93 = vector.extract_strided_slice %88 {offsets = [0, 128], sizes = [8, 128], strides = [1, 1]} : vector<8x384xf32> to vector<8x128xf32>
    %94 = vector.extract_strided_slice %88 {offsets = [0, 256], sizes = [8, 128], strides = [1, 1]} : vector<8x384xf32> to vector<8x128xf32>
    %95 = arith.addf %89, %92 : vector<8x128xf32>
    %96 = arith.negf %95 : vector<8x128xf32>
    %97 = math.exp %96 : vector<8x128xf32>
    %cst_42 = arith.constant 1.000000e+00 : f32
    %98 = vector.broadcast %cst_42 : f32 to vector<8x128xf32>
    %99 = arith.addf %98, %97 : vector<8x128xf32>
    %100 = arith.divf %98, %99 : vector<8x128xf32>
    %101 = arith.addf %90, %93 : vector<8x128xf32>
    %102 = arith.negf %101 : vector<8x128xf32>
    %103 = math.exp %102 : vector<8x128xf32>
    %cst_43 = arith.constant 1.000000e+00 : f32
    %104 = vector.broadcast %cst_43 : f32 to vector<8x128xf32>
    %105 = arith.addf %104, %103 : vector<8x128xf32>
    %106 = arith.divf %104, %105 : vector<8x128xf32>
    %107 = arith.mulf %100, %94 : vector<8x128xf32>
    %108 = arith.addf %91, %107 : vector<8x128xf32>
    %109 = math.tanh %108 : vector<8x128xf32>
    %110 = arith.subf %81, %109 : vector<8x128xf32>
    %111 = arith.mulf %106, %110 : vector<8x128xf32>
    %112 = arith.addf %109, %111 : vector<8x128xf32>
    %c0_44 = arith.constant 0 : index
    %c0_45 = arith.constant 0 : index
    %113 = vector.load %arg11[%c0_44, %c0_45] : memref<8x128xf32, #tpu.memory_space<vmem>>, vector<8x128xf32>
    tpu.vector_store %arg11[%c0_44, %c0_45], %112 {strides = array<i32>} : memref<8x128xf32, #tpu.memory_space<vmem>>, vector<8x128xf32>,
    %c3_i32 = arith.constant 3 : i32
    %c0_46 = arith.constant 0 : index
    %c0_47 = arith.constant 0 : index
    %114 = vector.load %arg11[%c0_46, %c0_47] : memref<8x128xf32, #tpu.memory_space<vmem>>, vector<8x128xf32>
    %115 = arith.index_cast %c3_i32 : i32 to index
    %c0_48 = arith.constant 0 : index
    %c0_49 = arith.constant 0 : index
    %116 = vector.load %arg10[%115, %c0_48, %c0_49] : memref<8x8x384xf32, #tpu.memory_space<vmem>>, vector<1x8x384xf32>
    %117 = vector.shape_cast %116 : vector<1x8x384xf32> to vector<8x384xf32>
    %118 = arith.truncf %114 : vector<8x128xf32> to vector<8x128xbf16>
    %c0_50 = arith.constant 0 : index
    %c0_51 = arith.constant 0 : index
    %119 = vector.load %arg4[%c0_50, %c0_51] : memref<128x384xbf16, #tpu.memory_space<vmem>>, vector<128x384xbf16>
    %cst_52 = arith.constant dense<0.000000e+00> : vector<8x384xf32>
    %120 = tpu.matmul %118, %119, %cst_52 {dimension_numbers = #tpu.dot_dimension_numbers<[1], [0], [0], [1], [0, 0, 1, 1], [], []>} : vector<8x128xbf16>, vector<128x384xbf16>, vector<8x384xf32> -> vector<8x384xf32>
    %121 = arith.addf %120, %14 : vector<8x384xf32>
    %122 = vector.extract_strided_slice %117 {offsets = [0, 0], sizes = [8, 128], strides = [1, 1]} : vector<8x384xf32> to vector<8x128xf32>
    %123 = vector.extract_strided_slice %117 {offsets = [0, 128], sizes = [8, 128], strides = [1, 1]} : vector<8x384xf32> to vector<8x128xf32>
    %124 = vector.extract_strided_slice %117 {offsets = [0, 256], sizes = [8, 128], strides = [1, 1]} : vector<8x384xf32> to vector<8x128xf32>
    %125 = vector.extract_strided_slice %121 {offsets = [0, 0], sizes = [8, 128], strides = [1, 1]} : vector<8x384xf32> to vector<8x128xf32>
    %126 = vector.extract_strided_slice %121 {offsets = [0, 128], sizes = [8, 128], strides = [1, 1]} : vector<8x384xf32> to vector<8x128xf32>
    %127 = vector.extract_strided_slice %121 {offsets = [0, 256], sizes = [8, 128], strides = [1, 1]} : vector<8x384xf32> to vector<8x128xf32>
    %128 = arith.addf %122, %125 : vector<8x128xf32>
    %129 = arith.negf %128 : vector<8x128xf32>
    %130 = math.exp %129 : vector<8x128xf32>
    %cst_53 = arith.constant 1.000000e+00 : f32
    %131 = vector.broadcast %cst_53 : f32 to vector<8x128xf32>
    %132 = arith.addf %131, %130 : vector<8x128xf32>
    %133 = arith.divf %131, %132 : vector<8x128xf32>
    %134 = arith.addf %123, %126 : vector<8x128xf32>
    %135 = arith.negf %134 : vector<8x128xf32>
    %136 = math.exp %135 : vector<8x128xf32>
    %cst_54 = arith.constant 1.000000e+00 : f32
    %137 = vector.broadcast %cst_54 : f32 to vector<8x128xf32>
    %138 = arith.addf %137, %136 : vector<8x128xf32>
    %139 = arith.divf %137, %138 : vector<8x128xf32>
    %140 = arith.mulf %133, %127 : vector<8x128xf32>
    %141 = arith.addf %124, %140 : vector<8x128xf32>
    %142 = math.tanh %141 : vector<8x128xf32>
    %143 = arith.subf %114, %142 : vector<8x128xf32>
    %144 = arith.mulf %139, %143 : vector<8x128xf32>
    %145 = arith.addf %142, %144 : vector<8x128xf32>
    %c0_55 = arith.constant 0 : index
    %c0_56 = arith.constant 0 : index
    %146 = vector.load %arg11[%c0_55, %c0_56] : memref<8x128xf32, #tpu.memory_space<vmem>>, vector<8x128xf32>
    tpu.vector_store %arg11[%c0_55, %c0_56], %145 {strides = array<i32>} : memref<8x128xf32, #tpu.memory_space<vmem>>, vector<8x128xf32>,
    %c4_i32 = arith.constant 4 : i32
    %c0_57 = arith.constant 0 : index
    %c0_58 = arith.constant 0 : index
    %147 = vector.load %arg11[%c0_57, %c0_58] : memref<8x128xf32, #tpu.memory_space<vmem>>, vector<8x128xf32>
    %148 = arith.index_cast %c4_i32 : i32 to index
    %c0_59 = arith.constant 0 : index
    %c0_60 = arith.constant 0 : index
    %149 = vector.load %arg10[%148, %c0_59, %c0_60] : memref<8x8x384xf32, #tpu.memory_space<vmem>>, vector<1x8x384xf32>
    %150 = vector.shape_cast %149 : vector<1x8x384xf32> to vector<8x384xf32>
    %151 = arith.truncf %147 : vector<8x128xf32> to vector<8x128xbf16>
    %c0_61 = arith.constant 0 : index
    %c0_62 = arith.constant 0 : index
    %152 = vector.load %arg4[%c0_61, %c0_62] : memref<128x384xbf16, #tpu.memory_space<vmem>>, vector<128x384xbf16>
    %cst_63 = arith.constant dense<0.000000e+00> : vector<8x384xf32>
    %153 = tpu.matmul %151, %152, %cst_63 {dimension_numbers = #tpu.dot_dimension_numbers<[1], [0], [0], [1], [0, 0, 1, 1], [], []>} : vector<8x128xbf16>, vector<128x384xbf16>, vector<8x384xf32> -> vector<8x384xf32>
    %154 = arith.addf %153, %14 : vector<8x384xf32>
    %155 = vector.extract_strided_slice %150 {offsets = [0, 0], sizes = [8, 128], strides = [1, 1]} : vector<8x384xf32> to vector<8x128xf32>
    %156 = vector.extract_strided_slice %150 {offsets = [0, 128], sizes = [8, 128], strides = [1, 1]} : vector<8x384xf32> to vector<8x128xf32>
    %157 = vector.extract_strided_slice %150 {offsets = [0, 256], sizes = [8, 128], strides = [1, 1]} : vector<8x384xf32> to vector<8x128xf32>
    %158 = vector.extract_strided_slice %154 {offsets = [0, 0], sizes = [8, 128], strides = [1, 1]} : vector<8x384xf32> to vector<8x128xf32>
    %159 = vector.extract_strided_slice %154 {offsets = [0, 128], sizes = [8, 128], strides = [1, 1]} : vector<8x384xf32> to vector<8x128xf32>
    %160 = vector.extract_strided_slice %154 {offsets = [0, 256], sizes = [8, 128], strides = [1, 1]} : vector<8x384xf32> to vector<8x128xf32>
    %161 = arith.addf %155, %158 : vector<8x128xf32>
    %162 = arith.negf %161 : vector<8x128xf32>
    %163 = math.exp %162 : vector<8x128xf32>
    %cst_64 = arith.constant 1.000000e+00 : f32
    %164 = vector.broadcast %cst_64 : f32 to vector<8x128xf32>
    %165 = arith.addf %164, %163 : vector<8x128xf32>
    %166 = arith.divf %164, %165 : vector<8x128xf32>
    %167 = arith.addf %156, %159 : vector<8x128xf32>
    %168 = arith.negf %167 : vector<8x128xf32>
    %169 = math.exp %168 : vector<8x128xf32>
    %cst_65 = arith.constant 1.000000e+00 : f32
    %170 = vector.broadcast %cst_65 : f32 to vector<8x128xf32>
    %171 = arith.addf %170, %169 : vector<8x128xf32>
    %172 = arith.divf %170, %171 : vector<8x128xf32>
    %173 = arith.mulf %166, %160 : vector<8x128xf32>
    %174 = arith.addf %157, %173 : vector<8x128xf32>
    %175 = math.tanh %174 : vector<8x128xf32>
    %176 = arith.subf %147, %175 : vector<8x128xf32>
    %177 = arith.mulf %172, %176 : vector<8x128xf32>
    %178 = arith.addf %175, %177 : vector<8x128xf32>
    %c0_66 = arith.constant 0 : index
    %c0_67 = arith.constant 0 : index
    %179 = vector.load %arg11[%c0_66, %c0_67] : memref<8x128xf32, #tpu.memory_space<vmem>>, vector<8x128xf32>
    tpu.vector_store %arg11[%c0_66, %c0_67], %178 {strides = array<i32>} : memref<8x128xf32, #tpu.memory_space<vmem>>, vector<8x128xf32>,
    %c5_i32 = arith.constant 5 : i32
    %c0_68 = arith.constant 0 : index
    %c0_69 = arith.constant 0 : index
    %180 = vector.load %arg11[%c0_68, %c0_69] : memref<8x128xf32, #tpu.memory_space<vmem>>, vector<8x128xf32>
    %181 = arith.index_cast %c5_i32 : i32 to index
    %c0_70 = arith.constant 0 : index
    %c0_71 = arith.constant 0 : index
    %182 = vector.load %arg10[%181, %c0_70, %c0_71] : memref<8x8x384xf32, #tpu.memory_space<vmem>>, vector<1x8x384xf32>
    %183 = vector.shape_cast %182 : vector<1x8x384xf32> to vector<8x384xf32>
    %184 = arith.truncf %180 : vector<8x128xf32> to vector<8x128xbf16>
    %c0_72 = arith.constant 0 : index
    %c0_73 = arith.constant 0 : index
    %185 = vector.load %arg4[%c0_72, %c0_73] : memref<128x384xbf16, #tpu.memory_space<vmem>>, vector<128x384xbf16>
    %cst_74 = arith.constant dense<0.000000e+00> : vector<8x384xf32>
    %186 = tpu.matmul %184, %185, %cst_74 {dimension_numbers = #tpu.dot_dimension_numbers<[1], [0], [0], [1], [0, 0, 1, 1], [], []>} : vector<8x128xbf16>, vector<128x384xbf16>, vector<8x384xf32> -> vector<8x384xf32>
    %187 = arith.addf %186, %14 : vector<8x384xf32>
    %188 = vector.extract_strided_slice %183 {offsets = [0, 0], sizes = [8, 128], strides = [1, 1]} : vector<8x384xf32> to vector<8x128xf32>
    %189 = vector.extract_strided_slice %183 {offsets = [0, 128], sizes = [8, 128], strides = [1, 1]} : vector<8x384xf32> to vector<8x128xf32>
    %190 = vector.extract_strided_slice %183 {offsets = [0, 256], sizes = [8, 128], strides = [1, 1]} : vector<8x384xf32> to vector<8x128xf32>
    %191 = vector.extract_strided_slice %187 {offsets = [0, 0], sizes = [8, 128], strides = [1, 1]} : vector<8x384xf32> to vector<8x128xf32>
    %192 = vector.extract_strided_slice %187 {offsets = [0, 128], sizes = [8, 128], strides = [1, 1]} : vector<8x384xf32> to vector<8x128xf32>
    %193 = vector.extract_strided_slice %187 {offsets = [0, 256], sizes = [8, 128], strides = [1, 1]} : vector<8x384xf32> to vector<8x128xf32>
    %194 = arith.addf %188, %191 : vector<8x128xf32>
    %195 = arith.negf %194 : vector<8x128xf32>
    %196 = math.exp %195 : vector<8x128xf32>
    %cst_75 = arith.constant 1.000000e+00 : f32
    %197 = vector.broadcast %cst_75 : f32 to vector<8x128xf32>
    %198 = arith.addf %197, %196 : vector<8x128xf32>
    %199 = arith.divf %197, %198 : vector<8x128xf32>
    %200 = arith.addf %189, %192 : vector<8x128xf32>
    %201 = arith.negf %200 : vector<8x128xf32>
    %202 = math.exp %201 : vector<8x128xf32>
    %cst_76 = arith.constant 1.000000e+00 : f32
    %203 = vector.broadcast %cst_76 : f32 to vector<8x128xf32>
    %204 = arith.addf %203, %202 : vector<8x128xf32>
    %205 = arith.divf %203, %204 : vector<8x128xf32>
    %206 = arith.mulf %199, %193 : vector<8x128xf32>
    %207 = arith.addf %190, %206 : vector<8x128xf32>
    %208 = math.tanh %207 : vector<8x128xf32>
    %209 = arith.subf %180, %208 : vector<8x128xf32>
    %210 = arith.mulf %205, %209 : vector<8x128xf32>
    %211 = arith.addf %208, %210 : vector<8x128xf32>
    %c0_77 = arith.constant 0 : index
    %c0_78 = arith.constant 0 : index
    %212 = vector.load %arg11[%c0_77, %c0_78] : memref<8x128xf32, #tpu.memory_space<vmem>>, vector<8x128xf32>
    tpu.vector_store %arg11[%c0_77, %c0_78], %211 {strides = array<i32>} : memref<8x128xf32, #tpu.memory_space<vmem>>, vector<8x128xf32>,
    %c6_i32 = arith.constant 6 : i32
    %c0_79 = arith.constant 0 : index
    %c0_80 = arith.constant 0 : index
    %213 = vector.load %arg11[%c0_79, %c0_80] : memref<8x128xf32, #tpu.memory_space<vmem>>, vector<8x128xf32>
    %214 = arith.index_cast %c6_i32 : i32 to index
    %c0_81 = arith.constant 0 : index
    %c0_82 = arith.constant 0 : index
    %215 = vector.load %arg10[%214, %c0_81, %c0_82] : memref<8x8x384xf32, #tpu.memory_space<vmem>>, vector<1x8x384xf32>
    %216 = vector.shape_cast %215 : vector<1x8x384xf32> to vector<8x384xf32>
    %217 = arith.truncf %213 : vector<8x128xf32> to vector<8x128xbf16>
    %c0_83 = arith.constant 0 : index
    %c0_84 = arith.constant 0 : index
    %218 = vector.load %arg4[%c0_83, %c0_84] : memref<128x384xbf16, #tpu.memory_space<vmem>>, vector<128x384xbf16>
    %cst_85 = arith.constant dense<0.000000e+00> : vector<8x384xf32>
    %219 = tpu.matmul %217, %218, %cst_85 {dimension_numbers = #tpu.dot_dimension_numbers<[1], [0], [0], [1], [0, 0, 1, 1], [], []>} : vector<8x128xbf16>, vector<128x384xbf16>, vector<8x384xf32> -> vector<8x384xf32>
    %220 = arith.addf %219, %14 : vector<8x384xf32>
    %221 = vector.extract_strided_slice %216 {offsets = [0, 0], sizes = [8, 128], strides = [1, 1]} : vector<8x384xf32> to vector<8x128xf32>
    %222 = vector.extract_strided_slice %216 {offsets = [0, 128], sizes = [8, 128], strides = [1, 1]} : vector<8x384xf32> to vector<8x128xf32>
    %223 = vector.extract_strided_slice %216 {offsets = [0, 256], sizes = [8, 128], strides = [1, 1]} : vector<8x384xf32> to vector<8x128xf32>
    %224 = vector.extract_strided_slice %220 {offsets = [0, 0], sizes = [8, 128], strides = [1, 1]} : vector<8x384xf32> to vector<8x128xf32>
    %225 = vector.extract_strided_slice %220 {offsets = [0, 128], sizes = [8, 128], strides = [1, 1]} : vector<8x384xf32> to vector<8x128xf32>
    %226 = vector.extract_strided_slice %220 {offsets = [0, 256], sizes = [8, 128], strides = [1, 1]} : vector<8x384xf32> to vector<8x128xf32>
    %227 = arith.addf %221, %224 : vector<8x128xf32>
    %228 = arith.negf %227 : vector<8x128xf32>
    %229 = math.exp %228 : vector<8x128xf32>
    %cst_86 = arith.constant 1.000000e+00 : f32
    %230 = vector.broadcast %cst_86 : f32 to vector<8x128xf32>
    %231 = arith.addf %230, %229 : vector<8x128xf32>
    %232 = arith.divf %230, %231 : vector<8x128xf32>
    %233 = arith.addf %222, %225 : vector<8x128xf32>
    %234 = arith.negf %233 : vector<8x128xf32>
    %235 = math.exp %234 : vector<8x128xf32>
    %cst_87 = arith.constant 1.000000e+00 : f32
    %236 = vector.broadcast %cst_87 : f32 to vector<8x128xf32>
    %237 = arith.addf %236, %235 : vector<8x128xf32>
    %238 = arith.divf %236, %237 : vector<8x128xf32>
    %239 = arith.mulf %232, %226 : vector<8x128xf32>
    %240 = arith.addf %223, %239 : vector<8x128xf32>
    %241 = math.tanh %240 : vector<8x128xf32>
    %242 = arith.subf %213, %241 : vector<8x128xf32>
    %243 = arith.mulf %238, %242 : vector<8x128xf32>
    %244 = arith.addf %241, %243 : vector<8x128xf32>
    %c0_88 = arith.constant 0 : index
    %c0_89 = arith.constant 0 : index
    %245 = vector.load %arg11[%c0_88, %c0_89] : memref<8x128xf32, #tpu.memory_space<vmem>>, vector<8x128xf32>
    tpu.vector_store %arg11[%c0_88, %c0_89], %244 {strides = array<i32>} : memref<8x128xf32, #tpu.memory_space<vmem>>, vector<8x128xf32>,
    %c7_i32 = arith.constant 7 : i32
    %c0_90 = arith.constant 0 : index
    %c0_91 = arith.constant 0 : index
    %246 = vector.load %arg11[%c0_90, %c0_91] : memref<8x128xf32, #tpu.memory_space<vmem>>, vector<8x128xf32>
    %247 = arith.index_cast %c7_i32 : i32 to index
    %c0_92 = arith.constant 0 : index
    %c0_93 = arith.constant 0 : index
    %248 = vector.load %arg10[%247, %c0_92, %c0_93] : memref<8x8x384xf32, #tpu.memory_space<vmem>>, vector<1x8x384xf32>
    %249 = vector.shape_cast %248 : vector<1x8x384xf32> to vector<8x384xf32>
    %250 = arith.truncf %246 : vector<8x128xf32> to vector<8x128xbf16>
    %c0_94 = arith.constant 0 : index
    %c0_95 = arith.constant 0 : index
    %251 = vector.load %arg4[%c0_94, %c0_95] : memref<128x384xbf16, #tpu.memory_space<vmem>>, vector<128x384xbf16>
    %cst_96 = arith.constant dense<0.000000e+00> : vector<8x384xf32>
    %252 = tpu.matmul %250, %251, %cst_96 {dimension_numbers = #tpu.dot_dimension_numbers<[1], [0], [0], [1], [0, 0, 1, 1], [], []>} : vector<8x128xbf16>, vector<128x384xbf16>, vector<8x384xf32> -> vector<8x384xf32>
    %253 = arith.addf %252, %14 : vector<8x384xf32>
    %254 = vector.extract_strided_slice %249 {offsets = [0, 0], sizes = [8, 128], strides = [1, 1]} : vector<8x384xf32> to vector<8x128xf32>
    %255 = vector.extract_strided_slice %249 {offsets = [0, 128], sizes = [8, 128], strides = [1, 1]} : vector<8x384xf32> to vector<8x128xf32>
    %256 = vector.extract_strided_slice %249 {offsets = [0, 256], sizes = [8, 128], strides = [1, 1]} : vector<8x384xf32> to vector<8x128xf32>
    %257 = vector.extract_strided_slice %253 {offsets = [0, 0], sizes = [8, 128], strides = [1, 1]} : vector<8x384xf32> to vector<8x128xf32>
    %258 = vector.extract_strided_slice %253 {offsets = [0, 128], sizes = [8, 128], strides = [1, 1]} : vector<8x384xf32> to vector<8x128xf32>
    %259 = vector.extract_strided_slice %253 {offsets = [0, 256], sizes = [8, 128], strides = [1, 1]} : vector<8x384xf32> to vector<8x128xf32>
    %260 = arith.addf %254, %257 : vector<8x128xf32>
    %261 = arith.negf %260 : vector<8x128xf32>
    %262 = math.exp %261 : vector<8x128xf32>
    %cst_97 = arith.constant 1.000000e+00 : f32
    %263 = vector.broadcast %cst_97 : f32 to vector<8x128xf32>
    %264 = arith.addf %263, %262 : vector<8x128xf32>
    %265 = arith.divf %263, %264 : vector<8x128xf32>
    %266 = arith.addf %255, %258 : vector<8x128xf32>
    %267 = arith.negf %266 : vector<8x128xf32>
    %268 = math.exp %267 : vector<8x128xf32>
    %cst_98 = arith.constant 1.000000e+00 : f32
    %269 = vector.broadcast %cst_98 : f32 to vector<8x128xf32>
    %270 = arith.addf %269, %268 : vector<8x128xf32>
    %271 = arith.divf %269, %270 : vector<8x128xf32>
    %272 = arith.mulf %265, %259 : vector<8x128xf32>
    %273 = arith.addf %256, %272 : vector<8x128xf32>
    %274 = math.tanh %273 : vector<8x128xf32>
    %275 = arith.subf %246, %274 : vector<8x128xf32>
    %276 = arith.mulf %271, %275 : vector<8x128xf32>
    %277 = arith.addf %274, %276 : vector<8x128xf32>
    %c0_99 = arith.constant 0 : index
    %c0_100 = arith.constant 0 : index
    %278 = vector.load %arg11[%c0_99, %c0_100] : memref<8x128xf32, #tpu.memory_space<vmem>>, vector<8x128xf32>
    tpu.vector_store %arg11[%c0_99, %c0_100], %277 {strides = array<i32>} : memref<8x128xf32, #tpu.memory_space<vmem>>, vector<8x128xf32>,
    %c8_i32 = arith.constant 8 : i32
    %c0_i32_101 = arith.constant 0 : i32
    %279 = arith.cmpi eq, %arg1, %c0_i32_101 : i32
    %280 = arith.extui %279 : i1 to i32
    %c0_i32_102 = arith.constant 0 : i32
    %281 = arith.cmpi ne, %280, %c0_i32_102 : i32
    scf.if %281 {
      %c0_103 = arith.constant 0 : index
      %c0_104 = arith.constant 0 : index
      %282 = vector.load %arg11[%c0_103, %c0_104] : memref<8x128xf32, #tpu.memory_space<vmem>>, vector<8x128xf32>
      %283 = arith.truncf %282 : vector<8x128xf32> to vector<8x128xbf16>
      %c0_105 = arith.constant 0 : index
      %c0_106 = arith.constant 0 : index
      %284 = vector.load %arg7[%c0_105, %c0_106] : memref<128x128xbf16, #tpu.memory_space<vmem>>, vector<128x128xbf16>
      %cst_107 = arith.constant dense<0.000000e+00> : vector<8x128xf32>
      %285 = tpu.matmul %283, %284, %cst_107 {dimension_numbers = #tpu.dot_dimension_numbers<[1], [0], [0], [1], [0, 0, 1, 1], [], []>} : vector<8x128xbf16>, vector<128x128xbf16>, vector<8x128xf32> -> vector<8x128xf32>
      %c0_108 = arith.constant 0 : index
      %c0_109 = arith.constant 0 : index
      %286 = vector.load %arg8[%c0_108, %c0_109] : memref<1x128xf32, #tpu.memory_space<vmem>>, vector<1x128xf32>
      %287 = vector.broadcast %286 : vector<1x128xf32> to vector<8x128xf32>
      %288 = arith.addf %285, %287 : vector<8x128xf32>
      %c0_110 = arith.constant 0 : index
      %c0_111 = arith.constant 0 : index
      %289 = vector.load %arg9[%c0_110, %c0_111] : memref<8x128xf32, #tpu.memory_space<vmem>>, vector<8x128xf32>
      tpu.vector_store %arg9[%c0_110, %c0_111], %288 {strides = array<i32>} : memref<8x128xf32, #tpu.memory_space<vmem>>, vector<8x128xf32>,
    } else {
    }
    return
  }
  func.func @transform_0(%arg0: i32, %arg1: i32) -> (i32, i32, i32) {
    %c0_i32 = arith.constant 0 : i32
    %c0_i32_0 = arith.constant 0 : i32
    return %arg1, %arg0, %c0_i32 : i32, i32, i32
  }
  func.func @transform_1(%arg0: i32, %arg1: i32) -> (i32, i32) {
    %c0_i32 = arith.constant 0 : i32
    %c0_i32_0 = arith.constant 0 : i32
    %c0_i32_1 = arith.constant 0 : i32
    return %c0_i32, %c0_i32_0 : i32, i32
  }
  func.func @transform_2(%arg0: i32, %arg1: i32) -> (i32, i32) {
    %c0_i32 = arith.constant 0 : i32
    %c0_i32_0 = arith.constant 0 : i32
    %c0_i32_1 = arith.constant 0 : i32
    return %c0_i32, %c0_i32_0 : i32, i32
  }
  func.func @transform_3(%arg0: i32, %arg1: i32) -> (i32, i32) {
    %c0_i32 = arith.constant 0 : i32
    %c0_i32_0 = arith.constant 0 : i32
    %c0_i32_1 = arith.constant 0 : i32
    return %c0_i32, %c0_i32_0 : i32, i32
  }
  func.func @transform_4(%arg0: i32, %arg1: i32) -> (i32, i32) {
    %c0_i32 = arith.constant 0 : i32
    %c0_i32_0 = arith.constant 0 : i32
    %c0_i32_1 = arith.constant 0 : i32
    return %c0_i32, %c0_i32_0 : i32, i32
  }
  func.func @transform_5(%arg0: i32, %arg1: i32) -> (i32, i32) {
    %c0_i32 = arith.constant 0 : i32
    %c0_i32_0 = arith.constant 0 : i32
    %c0_i32_1 = arith.constant 0 : i32
    return %c0_i32, %c0_i32_0 : i32, i32
  }
  func.func @transform_6(%arg0: i32, %arg1: i32) -> (i32, i32) {
    %c0_i32 = arith.constant 0 : i32
    %c0_i32_0 = arith.constant 0 : i32
    %c0_i32_1 = arith.constant 0 : i32
    return %c0_i32, %c0_i32_0 : i32, i32
  }
  func.func @transform_7(%arg0: i32, %arg1: i32) -> (i32, i32) {
    %c0_i32 = arith.constant 0 : i32
    %c0_i32_0 = arith.constant 0 : i32
    return %arg0, %c0_i32 : i32, i32
  }
}

</mosaic_0001>

<llo_original>
// kernel: tpu_custom_call.1
$region0: #{tpu_custom_call.1}
  #allocation0 [shape = 'u32[]', space=smem, size = 0x4, offset = 0x4, fixed_abs, tag = 'smem constant byte address 0x4 - core index']
  #allocation1 [shape = 'u32[144,128]{1,0:T(1,128)}', space=vmem, size = 0x12000, scoped, tag = 'internal scratch']
  #allocation2 [shape = 'f32[8,8,384]{2,1,0:T(8,128)}', space=vmem, size = 0x18000, scoped, tag = 'scratch operand']
  #allocation3 [shape = 'f32[8,128]{1,0:T(8,128)}', space=vmem, size = 0x1000, scoped, tag = 'scratch operand']
  %s0 = inlined_call_operand.hbm [shape: bf16[8,8,128], index: 0, kind: input, shape index: {}]
  %s1 = inlined_call_operand.hbm [shape: bf16[128,384], index: 1, kind: input, shape index: {}]
  %s2 = inlined_call_operand.hbm [shape: bf16[128,384], index: 2, kind: input, shape index: {}]
  %s3 = inlined_call_operand.vmem [shape: f32[1,384], index: 3, kind: input, shape index: {}]
  %s4 = inlined_call_operand.vmem [shape: f32[1,384], index: 4, kind: input, shape index: {}]
  %s5 = inlined_call_operand.hbm [shape: bf16[128,128], index: 5, kind: input, shape index: {}]
  %s6 = inlined_call_operand.vmem [shape: f32[1,128], index: 6, kind: input, shape index: {}]
  %s7 = inlined_call_operand.hbm [shape: f32[8,128], index: 7, kind: output, shape index: {}]
  %s8 = sld [smem:[#allocation0]]
  $region62: #{tpu_custom_call.1} parent=0
    _
  %s10 = ssub.s32 1, %s8
  %s11 = scalar_select 0, %s10, %s8
  $region1: #{tpu_custom_call.1} parent=0
    #allocation4 [shape = 'u8[16384]{0}', space=vmem, size = 0x4000, scoped, tag = 'input window, operand 0, single buffered']
    #allocation5 [shape = 's32[1]{0}', space=sflag, size = 0x4, scoped, tag = 'scoped memory for tpu_custom_call.1']
    #allocation6 [shape = 's32[1]{0}', space=sflag, size = 0x4, scoped, tag = 'scoped memory for tpu_custom_call.1']
    #allocation7 [shape = 'u8[98304]{0}', space=vmem, size = 0x18000, scoped, tag = 'input window, operand 1, single buffered']
    #allocation8 [shape = 's32[1]{0}', space=sflag, size = 0x4, scoped, tag = 'scoped memory for tpu_custom_call.1']
    #allocation9 [shape = 'u8[98304]{0}', space=vmem, size = 0x18000, scoped, tag = 'input window, operand 2, single buffered']
    #allocation10 [shape = 'u8[32768]{0}', space=vmem, size = 0x8000, scoped, tag = 'input window, operand 5, single buffered']
    #allocation11 [shape = 's32[1]{0}', space=sflag, size = 0x4, scoped, tag = 'scoped memory for tpu_custom_call.1']
    #allocation12 [shape = 'u8[4096]{0}', space=vmem, size = 0x1000, scoped, tag = 'output window, operand 0, single buffered']
    %12 = vsyncpa [#allocation5], 0
    %13 = vsyncpa [#allocation8], 0
    %14 = vsyncpa [#allocation11], 0
    %15 = vsyncpa [#allocation6], 0
    // Predicated region
    $region2: #{tpu_custom_call.1} parent=1 // pred_check
      _
    $region3: #{tpu_custom_call.1} parent=1 // pred_check_branch
      %17 = sbr.rel (0) target = $region5
    $region4: #{tpu_custom_call.1} parent=1 // pred_region
      %s19 = ssub.s32 512, 512
      %20 = vsyncadd [#allocation5], %s19
      %s21 = sshll.u32 [#allocation4], 4
      %s22 = int_to_ptr.vmem [resolvable:$true] %s21
      %27 = dma.hbm_to_vmem [thread:$0]  %s0, 512, %s22, [#allocation5], 64, 64, 4
    $region5: #{tpu_custom_call.1} parent=1 // pred_fallthru
      _
    // Predicated region
    $region6: #{tpu_custom_call.1} parent=1 // pred_check
      _
    $region7: #{tpu_custom_call.1} parent=1 // pred_check_branch
      %29 = sbr.rel (0) target = $region9
    $region8: #{tpu_custom_call.1} parent=1 // pred_region
      %s31 = ssub.s32 3072, 3072
      %32 = vsyncadd [#allocation8], %s31
      %s33 = sshll.u32 [#allocation7], 4
      %s34 = int_to_ptr.vmem [resolvable:$true] %s33
      %39 = dma.hbm_to_vmem [thread:$0]  %s1, 3072, %s34, [#allocation8], 192, 192, 12
    $region9: #{tpu_custom_call.1} parent=1 // pred_fallthru
      _
    // Predicated region
    $region10: #{tpu_custom_call.1} parent=1 // pred_check
      _
    $region11: #{tpu_custom_call.1} parent=1 // pred_check_branch
      %41 = sbr.rel (0) target = $region13
    $region12: #{tpu_custom_call.1} parent=1 // pred_region
      %s43 = ssub.s32 3072, 3072
      %44 = vsyncadd [#allocation8], %s43
      %s45 = sshll.u32 [#allocation9], 4
      %s46 = int_to_ptr.vmem [resolvable:$true] %s45
      %51 = dma.hbm_to_vmem [thread:$0]  %s2, 3072, %s46, [#allocation8], 192, 192, 12
    $region13: #{tpu_custom_call.1} parent=1 // pred_fallthru
      _
    // Predicated region
    $region14: #{tpu_custom_call.1} parent=1 // pred_check
      _
    $region15: #{tpu_custom_call.1} parent=1 // pred_check_branch
      %53 = sbr.rel (0) target = $region17
    $region16: #{tpu_custom_call.1} parent=1 // pred_region
      _
    $region17: #{tpu_custom_call.1} parent=1 // pred_fallthru
      _
    // Predicated region
    $region18: #{tpu_custom_call.1} parent=1 // pred_check
      _
    $region19: #{tpu_custom_call.1} parent=1 // pred_check_branch
      %55 = sbr.rel (0) target = $region21
    $region20: #{tpu_custom_call.1} parent=1 // pred_region
      _
    $region21: #{tpu_custom_call.1} parent=1 // pred_fallthru
      _
    // Predicated region
    $region22: #{tpu_custom_call.1} parent=1 // pred_check
      _
    $region23: #{tpu_custom_call.1} parent=1 // pred_check_branch
      %57 = sbr.rel (0) target = $region25
    $region24: #{tpu_custom_call.1} parent=1 // pred_region
      %s59 = ssub.s32 1024, 1024
      %60 = vsyncadd [#allocation11], %s59
      %s61 = sshll.u32 [#allocation10], 4
      %s62 = int_to_ptr.vmem [resolvable:$true] %s61
      %67 = dma.hbm_to_vmem [thread:$0]  %s5, 1024, %s62, [#allocation11], 64, 64, 4
    $region25: #{tpu_custom_call.1} parent=1 // pred_fallthru
      _
    // Predicated region
    $region26: #{tpu_custom_call.1} parent=1 // pred_check
      _
    $region27: #{tpu_custom_call.1} parent=1 // pred_check_branch
      %69 = sbr.rel (0) target = $region29
    $region28: #{tpu_custom_call.1} parent=1 // pred_region
      _
    $region29: #{tpu_custom_call.1} parent=1 // pred_fallthru
      _
    // Predicated region
    $region30: #{tpu_custom_call.1} parent=1 // pred_check
      _
    $region31: #{tpu_custom_call.1} parent=1 // pred_check_branch
      %71 = sbr.rel (0) target = $region33
    $region32: #{tpu_custom_call.1} parent=1 // pred_region
      %72 = dma.done [#allocation5], 512
    $region33: #{tpu_custom_call.1} parent=1 // pred_fallthru
      _
    // Predicated region
    $region34: #{tpu_custom_call.1} parent=1 // pred_check
      _
    $region35: #{tpu_custom_call.1} parent=1 // pred_check_branch
      %74 = sbr.rel (0) target = $region37
    $region36: #{tpu_custom_call.1} parent=1 // pred_region
      %75 = dma.done [#allocation8], 3072
    $region37: #{tpu_custom_call.1} parent=1 // pred_fallthru
      _
    // Predicated region
    $region38: #{tpu_custom_call.1} parent=1 // pred_check
      _
    $region39: #{tpu_custom_call.1} parent=1 // pred_check_branch
      %77 = sbr.rel (0) target = $region41
    $region40: #{tpu_custom_call.1} parent=1 // pred_region
      %78 = dma.done [#allocation8], 3072
    $region41: #{tpu_custom_call.1} parent=1 // pred_fallthru
      _
    // Predicated region
    $region42: #{tpu_custom_call.1} parent=1 // pred_check
      _
    $region43: #{tpu_custom_call.1} parent=1 // pred_check_branch
      %80 = sbr.rel (0) target = $region45
    $region44: #{tpu_custom_call.1} parent=1 // pred_region
      %81 = dma.done [#allocation11], 1024
    $region45: #{tpu_custom_call.1} parent=1 // pred_fallthru
      _
    %p83 = scmp.eq.s32.totalorder 0, 0
    // Predicated region
    $region46: #{tpu_custom_call.1} parent=1 // pred_check
      %p84 = pneg %p83
    $region47: #{tpu_custom_call.1} parent=1 // pred_check_branch
      %86 = sbr.rel (%p84) target = $region49
    $region48: #{tpu_custom_call.1} parent=1 // pred_region
      %87 = vst [vmem:[#allocation3] sm:$0xff] 0.0
    $region49: #{tpu_custom_call.1} parent=1 // pred_fallthru
      _
    %v88 = vld [vmem:[#allocation4] sm:$0xf]
    %v89 = vld [vmem:[#allocation4 + $0x4] sm:$0xf]
    %v90 = vld [vmem:[#allocation4 + $0x8] sm:$0xf]
    %v91 = vld [vmem:[#allocation4 + $0xc] sm:$0xf]
    %v92 = vld [vmem:[#allocation4 + $0x10] sm:$0xf]
    %v93 = vld [vmem:[#allocation4 + $0x14] sm:$0xf]
    %v94 = vld [vmem:[#allocation4 + $0x18] sm:$0xf]
    %v95 = vld [vmem:[#allocation4 + $0x1c] sm:$0xf]
    %v96 = vld [vmem:[#allocation7] sm:$0xff]
    %v97 = vld [vmem:[#allocation7 + $0x8] sm:$0xf]
    %v98 = vld [vmem:[#allocation7 + $0xc] sm:$0xff]
    %v99 = vld [vmem:[#allocation7 + $0x14] sm:$0xf]
    %v100 = vld [vmem:[#allocation7 + $0x18] sm:$0xff]
    %v101 = vld [vmem:[#allocation7 + $0x20] sm:$0xf]
    %v102 = vld [vmem:[#allocation7 + $0x24] sm:$0xff]
    %v103 = vld [vmem:[#allocation7 + $0x2c] sm:$0xf]
    %v104 = vld [vmem:[#allocation7 + $0x30] sm:$0xff]
    %v105 = vld [vmem:[#allocation7 + $0x38] sm:$0xf]
    %v106 = vld [vmem:[#allocation7 + $0x3c] sm:$0xff]
    %v107 = vld [vmem:[#allocation7 + $0x44] sm:$0xf]
    %v108 = vld [vmem:[#allocation7 + $0x48] sm:$0xff]
    %v109 = vld [vmem:[#allocation7 + $0x50] sm:$0xf]
    %v110 = vld [vmem:[#allocation7 + $0x54] sm:$0xff]
    %v111 = vld [vmem:[#allocation7 + $0x5c] sm:$0xf]
    %v112 = vld [vmem:[#allocation7 + $0x60] sm:$0xff]
    %v113 = vld [vmem:[#allocation7 + $0x68] sm:$0xf]
    %v114 = vld [vmem:[#allocation7 + $0x6c] sm:$0xff]
    %v115 = vld [vmem:[#allocation7 + $0x74] sm:$0xf]
    %v116 = vld [vmem:[#allocation7 + $0x78] sm:$0xff]
    %v117 = vld [vmem:[#allocation7 + $0x80] sm:$0xf]
    %v118 = vld [vmem:[#allocation7 + $0x84] sm:$0xff]
    %v119 = vld [vmem:[#allocation7 + $0x8c] sm:$0xf]
    %v120 = vld [vmem:[#allocation7 + $0x90] sm:$0xff]
    %v121 = vld [vmem:[#allocation7 + $0x98] sm:$0xf]
    %v122 = vld [vmem:[#allocation7 + $0x9c] sm:$0xff]
    %v123 = vld [vmem:[#allocation7 + $0xa4] sm:$0xf]
    %v124 = vld [vmem:[#allocation7 + $0xa8] sm:$0xff]
    %v125 = vld [vmem:[#allocation7 + $0xb0] sm:$0xf]
    %v126 = vld [vmem:[#allocation7 + $0xb4] sm:$0xff]
    %v127 = vld [vmem:[#allocation7 + $0xbc] sm:$0xf]
    %v128 = vld [vmem:[%s3] sm:$0x7]
    %v130 = vlaneseq
    %v131 = vshrl.u32 %v130, 7
    %v132 = vsub.s32 0, %v131
    %v133 = vrot.slane %v128, %v132
    %v134 = vlaneseq
    %v135 = vshrl.u32 %v134, 7
    %v136 = vsub.s32 1, %v135
    %v137 = vrot.slane %v128, %v136
    %v138 = vlaneseq
    %v139 = vshrl.u32 %v138, 7
    %v140 = vsub.s32 2, %v139
    %v141 = vrot.slane %v128, %v140
    %v153 = vunpack.c.l.b16 %v88
    %v154 = vunpack.c.l.b16 %v89
    %v155 = vunpack.c.l.b16 %v90
    %v156 = vunpack.c.l.b16 %v91
    %v157 = vunpack.c.l.b16 %v92
    %v158 = vunpack.c.l.b16 %v93
    %v159 = vunpack.c.l.b16 %v94
    %v160 = vunpack.c.l.b16 %v95
    %v161 = vpack.c.b16 %v154, %v153
    %v162 = vpack.c.b16 %v156, %v155
    %v163 = vpack.c.b16 %v158, %v157
    %v164 = vpack.c.b16 %v160, %v159
    %v201 = vunpack.c.l.b16 %v96
    %v202 = vunpack.c.h.b16 %v96
    %v203 = vunpack.c.l.b16 %v97
    %v204 = vunpack.c.l.b16 %v98
    %v205 = vunpack.c.h.b16 %v98
    %v206 = vunpack.c.l.b16 %v99
    %v207 = vunpack.c.l.b16 %v100
    %v208 = vunpack.c.h.b16 %v100
    %v209 = vunpack.c.l.b16 %v101
    %v210 = vunpack.c.l.b16 %v102
    %v211 = vunpack.c.h.b16 %v102
    %v212 = vunpack.c.l.b16 %v103
    %v213 = vunpack.c.l.b16 %v104
    %v214 = vunpack.c.h.b16 %v104
    %v215 = vunpack.c.l.b16 %v105
    %v216 = vunpack.c.l.b16 %v106
    %v217 = vunpack.c.h.b16 %v106
    %v218 = vunpack.c.l.b16 %v107
    %v219 = vunpack.c.l.b16 %v108
    %v220 = vunpack.c.h.b16 %v108
    %v221 = vunpack.c.l.b16 %v109
    %v222 = vunpack.c.l.b16 %v110
    %v223 = vunpack.c.h.b16 %v110
    %v224 = vunpack.c.l.b16 %v111
    %v225 = vunpack.c.l.b16 %v112
    %v226 = vunpack.c.h.b16 %v112
    %v227 = vunpack.c.l.b16 %v113
    %v228 = vunpack.c.l.b16 %v114
    %v229 = vunpack.c.h.b16 %v114
    %v230 = vunpack.c.l.b16 %v115
    %v231 = vunpack.c.l.b16 %v116
    %v232 = vunpack.c.h.b16 %v116
    %v233 = vunpack.c.l.b16 %v117
    %v234 = vunpack.c.l.b16 %v118
    %v235 = vunpack.c.h.b16 %v118
    %v236 = vunpack.c.l.b16 %v119
    %v237 = vunpack.c.l.b16 %v120
    %v238 = vunpack.c.h.b16 %v120
    %v239 = vunpack.c.l.b16 %v121
    %v240 = vunpack.c.l.b16 %v122
    %v241 = vunpack.c.h.b16 %v122
    %v242 = vunpack.c.l.b16 %v123
    %v243 = vunpack.c.l.b16 %v124
    %v244 = vunpack.c.h.b16 %v124
    %v245 = vunpack.c.l.b16 %v125
    %v246 = vunpack.c.l.b16 %v126
    %v247 = vunpack.c.h.b16 %v126
    %v248 = vunpack.c.l.b16 %v127
    %v249 = vpack.c.b16 %v204, %v201
    %v250 = vpack.c.b16 %v205, %v202
    %v251 = vpack.c.b16 %v206, %v203
    %v252 = vpack.c.b16 %v210, %v207
    %v253 = vpack.c.b16 %v211, %v208
    %v254 = vpack.c.b16 %v212, %v209
    %v255 = vpack.c.b16 %v216, %v213
    %v256 = vpack.c.b16 %v217, %v214
    %v257 = vpack.c.b16 %v218, %v215
    %v258 = vpack.c.b16 %v222, %v219
    %v259 = vpack.c.b16 %v223, %v220
    %v260 = vpack.c.b16 %v224, %v221
    %v261 = vpack.c.b16 %v228, %v225
    %v262 = vpack.c.b16 %v229, %v226
    %v263 = vpack.c.b16 %v230, %v227
    %v264 = vpack.c.b16 %v234, %v231
    %v265 = vpack.c.b16 %v235, %v232
    %v266 = vpack.c.b16 %v236, %v233
    %v267 = vpack.c.b16 %v240, %v237
    %v268 = vpack.c.b16 %v241, %v238
    %v269 = vpack.c.b16 %v242, %v239
    %v270 = vpack.c.b16 %v246, %v243
    %v271 = vpack.c.b16 %v247, %v244
    %v272 = vpack.c.b16 %v248, %v245
    %297 = vmatprep.subr.bf16.mxu0 %v271
    %298 = vmatpush1.bf16.msra.mxu0 %v270
    %299 = vmatprep.subr.bf16.mxu0 %v268
    %300 = vmatpush1.bf16.msra.mxu0 %v267
    %301 = vmatprep.subr.bf16.mxu0 %v265
    %302 = vmatpush1.bf16.msra.mxu0 %v264
    %303 = vmatprep.subr.bf16.mxu0 %v262
    %304 = vmatpush1.bf16.msra.mxu0 %v261
    %305 = vmatprep.subr.bf16.mxu0 %v259
    %306 = vmatpush1.bf16.msra.mxu0 %v258
    %307 = vmatprep.subr.bf16.mxu0 %v256
    %308 = vmatpush1.bf16.msra.mxu0 %v255
    %309 = vmatprep.subr.bf16.mxu0 %v253
    %310 = vmatpush1.bf16.msra.mxu0 %v252
    %311 = vmatprep.subr.bf16.mxu0 %v250
    %312 = vmatpush1.bf16.msra.mxu0 %v249
    %313 = vmatprep.subr.bf16.mxu0 0
    %314 = vmatpush2.bf16.msra.mxu0 0
    %315 = vmatprep.subr.bf16.mxu0 0
    %316 = vmatpush2.bf16.msra.mxu0 0
    %317 = vmatprep.subr.bf16.mxu0 0
    %318 = vmatpush2.bf16.msra.mxu0 0
    %319 = vmatprep.subr.bf16.mxu0 0
    %320 = vmatpush2.bf16.msra.mxu0 0
    %321 = vmatprep.subr.bf16.mxu0 0
    %322 = vmatpush2.bf16.msra.mxu0 0
    %323 = vmatprep.subr.bf16.mxu0 0
    %324 = vmatpush2.bf16.msra.mxu0 0
    %325 = vmatprep.subr.bf16.mxu0 0
    %326 = vmatpush2.bf16.msra.mxu0 0
    %327 = vmatprep.subr.bf16.mxu0 0
    %328 = vmatpush2.bf16.msra.mxu0 0
    %329 = vmatprep.mubr.bf16.mxu0 0
    %330 = vmatmul.mubr.bf16.gmra.mxu0 %v161
    %v331 = vpop.f32.mrf.mxu0
    %v332 = vadd.f32 %v133, %v331
    %v333 = vpop.f32.mrf.mxu0
    %v334 = vadd.f32 %v137, %v333
    %v335 = vpop.f32.mrf.mxu0
    %v336 = vadd.f32 %v133, %v335
    %v337 = vpop.f32.mrf.mxu0
    %v338 = vadd.f32 %v137, %v337
    %339 = vmatprep.mubr.bf16.mxu0 0
    %340 = vmatmul.mubr.bf16.gmra.mxu0 %v162
    %v341 = vpop.f32.mrf.mxu0
    %v342 = vadd.f32 %v133, %v341
    %v343 = vpop.f32.mrf.mxu0
    %v344 = vadd.f32 %v137, %v343
    %v345 = vpop.f32.mrf.mxu0
    %v346 = vadd.f32 %v133, %v345
    %v347 = vpop.f32.mrf.mxu0
    %v348 = vadd.f32 %v137, %v347
    %349 = vmatprep.mubr.bf16.mxu0 0
    %350 = vmatmul.mubr.bf16.gmra.mxu0 %v163
    %v351 = vpop.f32.mrf.mxu0
    %v352 = vadd.f32 %v133, %v351
    %v353 = vpop.f32.mrf.mxu0
    %v354 = vadd.f32 %v137, %v353
    %v355 = vpop.f32.mrf.mxu0
    %v356 = vadd.f32 %v133, %v355
    %v357 = vpop.f32.mrf.mxu0
    %v358 = vadd.f32 %v137, %v357
    %359 = vmatprep.mubr.bf16.mxu0 0
    %360 = vmatmul.mubr.bf16.gmra.mxu0 %v164
    %v361 = vpop.f32.mrf.mxu0
    %v362 = vadd.f32 %v133, %v361
    %v363 = vpop.f32.mrf.mxu0
    %v364 = vadd.f32 %v137, %v363
    %v365 = vpop.f32.mrf.mxu0
    %v366 = vadd.f32 %v133, %v365
    %v367 = vpop.f32.mrf.mxu0
    %v368 = vadd.f32 %v137, %v367
    %369 = vdwg.mxu0
    %370 = vmatprep.subr.bf16.mxu0 0
    %371 = vmatpush1.bf16.msra.mxu0 %v272
    %372 = vmatprep.subr.bf16.mxu0 0
    %373 = vmatpush1.bf16.msra.mxu0 %v269
    %374 = vmatprep.subr.bf16.mxu0 0
    %375 = vmatpush1.bf16.msra.mxu0 %v266
    %376 = vmatprep.subr.bf16.mxu0 0
    %377 = vmatpush1.bf16.msra.mxu0 %v263
    %378 = vmatprep.subr.bf16.mxu0 0
    %379 = vmatpush1.bf16.msra.mxu0 %v260
    %380 = vmatprep.subr.bf16.mxu0 0
    %381 = vmatpush1.bf16.msra.mxu0 %v257
    %382 = vmatprep.subr.bf16.mxu0 0
    %383 = vmatpush1.bf16.msra.mxu0 %v254
    %384 = vmatprep.subr.bf16.mxu0 0
    %385 = vmatpush1.bf16.msra.mxu0 %v251
    %386 = vmatprep.subr.bf16.mxu0 0
    %387 = vmatpush2.bf16.msra.mxu0 0
    %388 = vmatprep.subr.bf16.mxu0 0
    %389 = vmatpush2.bf16.msra.mxu0 0
    %390 = vmatprep.subr.bf16.mxu0 0
    %391 = vmatpush2.bf16.msra.mxu0 0
    %392 = vmatprep.subr.bf16.mxu0 0
    %393 = vmatpush2.bf16.msra.mxu0 0
    %394 = vmatprep.subr.bf16.mxu0 0
    %395 = vmatpush2.bf16.msra.mxu0 0
    %396 = vmatprep.subr.bf16.mxu0 0
    %397 = vmatpush2.bf16.msra.mxu0 0
    %398 = vmatprep.subr.bf16.mxu0 0
    %399 = vmatpush2.bf16.msra.mxu0 0
    %400 = vmatprep.subr.bf16.mxu0 0
    %401 = vmatpush2.bf16.msra.mxu0 0
    %402 = vmatprep.mubr.bf16.mxu0 0
    %403 = vmatmul.mubr.bf16.gmra.mxu0 %v161
    %v404 = vpop.f32.mrf.mxu0
    %v405 = vadd.f32 %v141, %v404
    %v406 = vpop.f32.mrf.mxu0
    %v407 = vpop.f32.mrf.mxu0
    %v408 = vadd.f32 %v141, %v407
    %v409 = vpop.f32.mrf.mxu0
    %410 = vmatprep.mubr.bf16.mxu0 0
    %411 = vmatmul.mubr.bf16.gmra.mxu0 %v162
    %v412 = vpop.f32.mrf.mxu0
    %v413 = vadd.f32 %v141, %v412
    %v414 = vpop.f32.mrf.mxu0
    %v415 = vpop.f32.mrf.mxu0
    %v416 = vadd.f32 %v141, %v415
    %v417 = vpop.f32.mrf.mxu0
    %418 = vmatprep.mubr.bf16.mxu0 0
    %419 = vmatmul.mubr.bf16.gmra.mxu0 %v163
    %v420 = vpop.f32.mrf.mxu0
    %v421 = vadd.f32 %v141, %v420
    %v422 = vpop.f32.mrf.mxu0
    %v423 = vpop.f32.mrf.mxu0
    %v424 = vadd.f32 %v141, %v423
    %v425 = vpop.f32.mrf.mxu0
    %426 = vmatprep.mubr.bf16.mxu0 0
    %427 = vmatmul.mubr.bf16.gmra.mxu0 %v164
    %v428 = vpop.f32.mrf.mxu0
    %v429 = vadd.f32 %v141, %v428
    %v430 = vpop.f32.mrf.mxu0
    %v431 = vpop.f32.mrf.mxu0
    %v432 = vadd.f32 %v141, %v431
    %v433 = vpop.f32.mrf.mxu0
    %434 = vdwg.mxu0
    %435 = vst [vmem:[#allocation2] sm:$0xff] %v332
    %436 = vst [vmem:[#allocation2 + $0x8] sm:$0xff] %v334
    %437 = vst [vmem:[#allocation2 + $0x10] sm:$0xff] %v405
    %438 = vst [vmem:[#allocation2 + $0x18] sm:$0xff] %v336
    %439 = vst [vmem:[#allocation2 + $0x20] sm:$0xff] %v338
    %440 = vst [vmem:[#allocation2 + $0x28] sm:$0xff] %v408
    %441 = vst [vmem:[#allocation2 + $0x30] sm:$0xff] %v342
    %442 = vst [vmem:[#allocation2 + $0x38] sm:$0xff] %v344
    %443 = vst [vmem:[#allocation2 + $0x40] sm:$0xff] %v413
    %444 = vst [vmem:[#allocation2 + $0x48] sm:$0xff] %v346
    %445 = vst [vmem:[#allocation2 + $0x50] sm:$0xff] %v348
    %446 = vst [vmem:[#allocation2 + $0x58] sm:$0xff] %v416
    %447 = vst [vmem:[#allocation2 + $0x60] sm:$0xff] %v352
    %448 = vst [vmem:[#allocation2 + $0x68] sm:$0xff] %v354
    %449 = vst [vmem:[#allocation2 + $0x70] sm:$0xff] %v421
    %450 = vst [vmem:[#allocation2 + $0x78] sm:$0xff] %v356
    %451 = vst [vmem:[#allocation2 + $0x80] sm:$0xff] %v358
    %452 = vst [vmem:[#allocation2 + $0x88] sm:$0xff] %v424
    %453 = vst [vmem:[#allocation2 + $0x90] sm:$0xff] %v362
    %454 = vst [vmem:[#allocation2 + $0x98] sm:$0xff] %v364
    %455 = vst [vmem:[#allocation2 + $0xa0] sm:$0xff] %v429
    %456 = vst [vmem:[#allocation2 + $0xa8] sm:$0xff] %v366
    %457 = vst [vmem:[#allocation2 + $0xb0] sm:$0xff] %v368
    %458 = vst [vmem:[#allocation2 + $0xb8] sm:$0xff] %v432
    %v459 = vld [vmem:[%s4] sm:$0x7]
    %v461 = vlaneseq
    %v462 = vshrl.u32 %v461, 7
    %v463 = vsub.s32 0, %v462
    %v464 = vrot.slane %v459, %v463
    %v465 = vlaneseq
    %v466 = vshrl.u32 %v465, 7
    %v467 = vsub.s32 1, %v466
    %v468 = vrot.slane %v459, %v467
    %v469 = vlaneseq
    %v470 = vshrl.u32 %v469, 7
    %v471 = vsub.s32 2, %v470
    %v472 = vrot.slane %v459, %v471
    %v476 = vld [vmem:[#allocation3] sm:$0xff]
    %v477 = vld [vmem:[#allocation2] sm:$0xff]
    %v478 = vld [vmem:[#allocation2 + $0x8] sm:$0xff]
    %v479 = vld [vmem:[#allocation2 + $0x10] sm:$0xff]
    %v480 = vpack.c.bf16 %v476, %v476
    %v481 = vld [vmem:[#allocation9] sm:$0xff]
    %v482 = vld [vmem:[#allocation9 + $0x8] sm:$0xf]
    %v483 = vld [vmem:[#allocation9 + $0xc] sm:$0xff]
    %v484 = vld [vmem:[#allocation9 + $0x14] sm:$0xf]
    %v485 = vld [vmem:[#allocation9 + $0x18] sm:$0xff]
    %v486 = vld [vmem:[#allocation9 + $0x20] sm:$0xf]
    %v487 = vld [vmem:[#allocation9 + $0x24] sm:$0xff]
    %v488 = vld [vmem:[#allocation9 + $0x2c] sm:$0xf]
    %v489 = vld [vmem:[#allocation9 + $0x30] sm:$0xff]
    %v490 = vld [vmem:[#allocation9 + $0x38] sm:$0xf]
    %v491 = vld [vmem:[#allocation9 + $0x3c] sm:$0xff]
    %v492 = vld [vmem:[#allocation9 + $0x44] sm:$0xf]
    %v493 = vld [vmem:[#allocation9 + $0x48] sm:$0xff]
    %v494 = vld [vmem:[#allocation9 + $0x50] sm:$0xf]
    %v495 = vld [vmem:[#allocation9 + $0x54] sm:$0xff]
    %v496 = vld [vmem:[#allocation9 + $0x5c] sm:$0xf]
    %v497 = vld [vmem:[#allocation9 + $0x60] sm:$0xff]
    %v498 = vld [vmem:[#allocation9 + $0x68] sm:$0xf]
    %v499 = vld [vmem:[#allocation9 + $0x6c] sm:$0xff]
    %v500 = vld [vmem:[#allocation9 + $0x74] sm:$0xf]
    %v501 = vld [vmem:[#allocation9 + $0x78] sm:$0xff]
    %v502 = vld [vmem:[#allocation9 + $0x80] sm:$0xf]
    %v503 = vld [vmem:[#allocation9 + $0x84] sm:$0xff]
    %v504 = vld [vmem:[#allocation9 + $0x8c] sm:$0xf]
    %v505 = vld [vmem:[#allocation9 + $0x90] sm:$0xff]
    %v506 = vld [vmem:[#allocation9 + $0x98] sm:$0xf]
    %v507 = vld [vmem:[#allocation9 + $0x9c] sm:$0xff]
    %v508 = vld [vmem:[#allocation9 + $0xa4] sm:$0xf]
    %v509 = vld [vmem:[#allocation9 + $0xa8] sm:$0xff]
    %v510 = vld [vmem:[#allocation9 + $0xb0] sm:$0xf]
    %v511 = vld [vmem:[#allocation9 + $0xb4] sm:$0xff]
    %v512 = vld [vmem:[#allocation9 + $0xbc] sm:$0xf]
    %v545 = vunpack.c.l.b16 %v481
    %v546 = vunpack.c.h.b16 %v481
    %v547 = vunpack.c.l.b16 %v482
    %v548 = vunpack.c.l.b16 %v483
    %v549 = vunpack.c.h.b16 %v483
    %v550 = vunpack.c.l.b16 %v484
    %v551 = vunpack.c.l.b16 %v485
    %v552 = vunpack.c.h.b16 %v485
    %v553 = vunpack.c.l.b16 %v486
    %v554 = vunpack.c.l.b16 %v487
    %v555 = vunpack.c.h.b16 %v487
    %v556 = vunpack.c.l.b16 %v488
    %v557 = vunpack.c.l.b16 %v489
    %v558 = vunpack.c.h.b16 %v489
    %v559 = vunpack.c.l.b16 %v490
    %v560 = vunpack.c.l.b16 %v491
    %v561 = vunpack.c.h.b16 %v491
    %v562 = vunpack.c.l.b16 %v492
    %v563 = vunpack.c.l.b16 %v493
    %v564 = vunpack.c.h.b16 %v493
    %v565 = vunpack.c.l.b16 %v494
    %v566 = vunpack.c.l.b16 %v495
    %v567 = vunpack.c.h.b16 %v495
    %v568 = vunpack.c.l.b16 %v496
    %v569 = vunpack.c.l.b16 %v497
    %v570 = vunpack.c.h.b16 %v497
    %v571 = vunpack.c.l.b16 %v498
    %v572 = vunpack.c.l.b16 %v499
    %v573 = vunpack.c.h.b16 %v499
    %v574 = vunpack.c.l.b16 %v500
    %v575 = vunpack.c.l.b16 %v501
    %v576 = vunpack.c.h.b16 %v501
    %v577 = vunpack.c.l.b16 %v502
    %v578 = vunpack.c.l.b16 %v503
    %v579 = vunpack.c.h.b16 %v503
    %v580 = vunpack.c.l.b16 %v504
    %v581 = vunpack.c.l.b16 %v505
    %v582 = vunpack.c.h.b16 %v505
    %v583 = vunpack.c.l.b16 %v506
    %v584 = vunpack.c.l.b16 %v507
    %v585 = vunpack.c.h.b16 %v507
    %v586 = vunpack.c.l.b16 %v508
    %v587 = vunpack.c.l.b16 %v509
    %v588 = vunpack.c.h.b16 %v509
    %v589 = vunpack.c.l.b16 %v510
    %v590 = vunpack.c.l.b16 %v511
    %v591 = vunpack.c.h.b16 %v511
    %v592 = vunpack.c.l.b16 %v512
    %v593 = vpack.c.b16 %v548, %v545
    %v594 = vpack.c.b16 %v549, %v546
    %v595 = vpack.c.b16 %v550, %v547
    %v596 = vpack.c.b16 %v554, %v551
    %v597 = vpack.c.b16 %v555, %v552
    %v598 = vpack.c.b16 %v556, %v553
    %v599 = vpack.c.b16 %v560, %v557
    %v600 = vpack.c.b16 %v561, %v558
    %v601 = vpack.c.b16 %v562, %v559
    %v602 = vpack.c.b16 %v566, %v563
    %v603 = vpack.c.b16 %v567, %v564
    %v604 = vpack.c.b16 %v568, %v565
    %v605 = vpack.c.b16 %v572, %v569
    %v606 = vpack.c.b16 %v573, %v570
    %v607 = vpack.c.b16 %v574, %v571
    %v608 = vpack.c.b16 %v578, %v575
    %v609 = vpack.c.b16 %v579, %v576
    %v610 = vpack.c.b16 %v580, %v577
    %v611 = vpack.c.b16 %v584, %v581
    %v612 = vpack.c.b16 %v585, %v582
    %v613 = vpack.c.b16 %v586, %v583
    %v614 = vpack.c.b16 %v590, %v587
    %v615 = vpack.c.b16 %v591, %v588
    %v616 = vpack.c.b16 %v592, %v589
    %641 = vmatprep.subr.bf16.mxu0 %v615
    %642 = vmatpush1.bf16.msra.mxu0 %v614
    %643 = vmatprep.subr.bf16.mxu0 %v612
    %644 = vmatpush1.bf16.msra.mxu0 %v611
    %645 = vmatprep.subr.bf16.mxu0 %v609
    %646 = vmatpush1.bf16.msra.mxu0 %v608
    %647 = vmatprep.subr.bf16.mxu0 %v606
    %648 = vmatpush1.bf16.msra.mxu0 %v605
    %649 = vmatprep.subr.bf16.mxu0 %v603
    %650 = vmatpush1.bf16.msra.mxu0 %v602
    %651 = vmatprep.subr.bf16.mxu0 %v600
    %652 = vmatpush1.bf16.msra.mxu0 %v599
    %653 = vmatprep.subr.bf16.mxu0 %v597
    %654 = vmatpush1.bf16.msra.mxu0 %v596
    %655 = vmatprep.subr.bf16.mxu0 %v594
    %656 = vmatpush1.bf16.msra.mxu0 %v593
    %657 = vmatprep.subr.bf16.mxu0 0
    %658 = vmatpush2.bf16.msra.mxu0 0
    %659 = vmatprep.subr.bf16.mxu0 0
    %660 = vmatpush2.bf16.msra.mxu0 0
    %661 = vmatprep.subr.bf16.mxu0 0
    %662 = vmatpush2.bf16.msra.mxu0 0
    %663 = vmatprep.subr.bf16.mxu0 0
    %664 = vmatpush2.bf16.msra.mxu0 0
    %665 = vmatprep.subr.bf16.mxu0 0
    %666 = vmatpush2.bf16.msra.mxu0 0
    %667 = vmatprep.subr.bf16.mxu0 0
    %668 = vmatpush2.bf16.msra.mxu0 0
    %669 = vmatprep.subr.bf16.mxu0 0
    %670 = vmatpush2.bf16.msra.mxu0 0
    %671 = vmatprep.subr.bf16.mxu0 0
    %672 = vmatpush2.bf16.msra.mxu0 0
    %673 = vmatprep.mubr.bf16.mxu0 0
    %674 = vmatmul.mubr.bf16.gmra.mxu0 %v480
    %v675 = vpop.f32.mrf.mxu0
    %v676 = vadd.f32 %v464, %v675
    %v677 = vpop.f32.mrf.mxu0
    %v678 = vadd.f32 %v468, %v677
    %v679 = vpop.f32.mrf.mxu0
    %v680 = vpop.f32.mrf.mxu0
    %681 = vdwg.mxu0
    %682 = vmatprep.subr.bf16.mxu0 0
    %683 = vmatpush1.bf16.msra.mxu0 %v616
    %684 = vmatprep.subr.bf16.mxu0 0
    %685 = vmatpush1.bf16.msra.mxu0 %v613
    %686 = vmatprep.subr.bf16.mxu0 0
    %687 = vmatpush1.bf16.msra.mxu0 %v610
    %688 = vmatprep.subr.bf16.mxu0 0
    %689 = vmatpush1.bf16.msra.mxu0 %v607
    %690 = vmatprep.subr.bf16.mxu0 0
    %691 = vmatpush1.bf16.msra.mxu0 %v604
    %692 = vmatprep.subr.bf16.mxu0 0
    %693 = vmatpush1.bf16.msra.mxu0 %v601
    %694 = vmatprep.subr.bf16.mxu0 0
    %695 = vmatpush1.bf16.msra.mxu0 %v598
    %696 = vmatprep.subr.bf16.mxu0 0
    %697 = vmatpush1.bf16.msra.mxu0 %v595
    %698 = vmatprep.subr.bf16.mxu0 0
    %699 = vmatpush2.bf16.msra.mxu0 0
    %700 = vmatprep.subr.bf16.mxu0 0
    %701 = vmatpush2.bf16.msra.mxu0 0
    %702 = vmatprep.subr.bf16.mxu0 0
    %703 = vmatpush2.bf16.msra.mxu0 0
    %704 = vmatprep.subr.bf16.mxu0 0
    %705 = vmatpush2.bf16.msra.mxu0 0
    %706 = vmatprep.subr.bf16.mxu0 0
    %707 = vmatpush2.bf16.msra.mxu0 0
    %708 = vmatprep.subr.bf16.mxu0 0
    %709 = vmatpush2.bf16.msra.mxu0 0
    %710 = vmatprep.subr.bf16.mxu0 0
    %711 = vmatpush2.bf16.msra.mxu0 0
    %712 = vmatprep.subr.bf16.mxu0 0
    %713 = vmatpush2.bf16.msra.mxu0 0
    %714 = vmatprep.mubr.bf16.mxu0 0
    %715 = vmatmul.mubr.bf16.gmra.mxu0 %v480
    %v716 = vpop.f32.mrf.mxu0
    %v717 = vadd.f32 %v472, %v716
    %v718 = vpop.f32.mrf.mxu0
    %v719 = vpop.f32.mrf.mxu0
    %v720 = vpop.f32.mrf.mxu0
    %721 = vdwg.mxu0
    %v722 = vadd.f32 %v477, %v676
    %v723 = vxor.u32 %v722, 2147483648
    %v724 = vmul.f32 %v723, 1.442695
    %v725 = vpow.pop %v724
    %v726 = vadd.f32 %v725, 1.0
    %v727 = vrcp.pop %v726
    %v728 = vmul.f32 1.0, %v727
    %v729 = vadd.f32 %v478, %v678
    %v730 = vxor.u32 %v729, 2147483648
    %v731 = vmul.f32 %v730, 1.442695
    %v732 = vpow.pop %v731
    %v733 = vadd.f32 %v732, 1.0
    %v734 = vrcp.pop %v733
    %v735 = vmul.f32 1.0, %v734
    %v736 = vmul.f32 %v728, %v717
    %v737 = vadd.f32 %v479, %v736
    %v738 = vtanh.pop %v737
    %v739 = vsub.f32 %v476, %v738
    %v740 = vmul.f32 %v735, %v739
    %v741 = vadd.f32 %v738, %v740
    %742 = vst [vmem:[#allocation3] sm:$0xff] %v741
    %v743 = vld [vmem:[#allocation3] sm:$0xff]
    %s744 = scalar_lea.vmem [#allocation2], 24
    %v745 = vld [vmem:[%s744] sm:$0xff]
    %v746 = vld [vmem:[%s744 + $0x8] sm:$0xff]
    %v747 = vld [vmem:[%s744 + $0x10] sm:$0xff]
    %v748 = vpack.c.bf16 %v743, %v743
    %v749 = vld [vmem:[#allocation9] sm:$0xff]
    %v750 = vld [vmem:[#allocation9 + $0x8] sm:$0xf]
    %v751 = vld [vmem:[#allocation9 + $0xc] sm:$0xff]
    %v752 = vld [vmem:[#allocation9 + $0x14] sm:$0xf]
    %v753 = vld [vmem:[#allocation9 + $0x18] sm:$0xff]
    %v754 = vld [vmem:[#allocation9 + $0x20] sm:$0xf]
    %v755 = vld [vmem:[#allocation9 + $0x24] sm:$0xff]
    %v756 = vld [vmem:[#allocation9 + $0x2c] sm:$0xf]
    %v757 = vld [vmem:[#allocation9 + $0x30] sm:$0xff]
    %v758 = vld [vmem:[#allocation9 + $0x38] sm:$0xf]
    %v759 = vld [vmem:[#allocation9 + $0x3c] sm:$0xff]
    %v760 = vld [vmem:[#allocation9 + $0x44] sm:$0xf]
    %v761 = vld [vmem:[#allocation9 + $0x48] sm:$0xff]
    %v762 = vld [vmem:[#allocation9 + $0x50] sm:$0xf]
    %v763 = vld [vmem:[#allocation9 + $0x54] sm:$0xff]
    %v764 = vld [vmem:[#allocation9 + $0x5c] sm:$0xf]
    %v765 = vld [vmem:[#allocation9 + $0x60] sm:$0xff]
    %v766 = vld [vmem:[#allocation9 + $0x68] sm:$0xf]
    %v767 = vld [vmem:[#allocation9 + $0x6c] sm:$0xff]
    %v768 = vld [vmem:[#allocation9 + $0x74] sm:$0xf]
    %v769 = vld [vmem:[#allocation9 + $0x78] sm:$0xff]
    %v770 = vld [vmem:[#allocation9 + $0x80] sm:$0xf]
    %v771 = vld [vmem:[#allocation9 + $0x84] sm:$0xff]
    %v772 = vld [vmem:[#allocation9 + $0x8c] sm:$0xf]
    %v773 = vld [vmem:[#allocation9 + $0x90] sm:$0xff]
    %v774 = vld [vmem:[#allocation9 + $0x98] sm:$0xf]
    %v775 = vld [vmem:[#allocation9 + $0x9c] sm:$0xff]
    %v776 = vld [vmem:[#allocation9 + $0xa4] sm:$0xf]
    %v777 = vld [vmem:[#allocation9 + $0xa8] sm:$0xff]
    %v778 = vld [vmem:[#allocation9 + $0xb0] sm:$0xf]
    %v779 = vld [vmem:[#allocation9 + $0xb4] sm:$0xff]
    %v780 = vld [vmem:[#allocation9 + $0xbc] sm:$0xf]
    %v813 = vunpack.c.l.b16 %v749
    %v814 = vunpack.c.h.b16 %v749
    %v815 = vunpack.c.l.b16 %v750
    %v816 = vunpack.c.l.b16 %v751
    %v817 = vunpack.c.h.b16 %v751
    %v818 = vunpack.c.l.b16 %v752
    %v819 = vunpack.c.l.b16 %v753
    %v820 = vunpack.c.h.b16 %v753
    %v821 = vunpack.c.l.b16 %v754
    %v822 = vunpack.c.l.b16 %v755
    %v823 = vunpack.c.h.b16 %v755
    %v824 = vunpack.c.l.b16 %v756
    %v825 = vunpack.c.l.b16 %v757
    %v826 = vunpack.c.h.b16 %v757
    %v827 = vunpack.c.l.b16 %v758
    %v828 = vunpack.c.l.b16 %v759
    %v829 = vunpack.c.h.b16 %v759
    %v830 = vunpack.c.l.b16 %v760
    %v831 = vunpack.c.l.b16 %v761
    %v832 = vunpack.c.h.b16 %v761
    %v833 = vunpack.c.l.b16 %v762
    %v834 = vunpack.c.l.b16 %v763
    %v835 = vunpack.c.h.b16 %v763
    %v836 = vunpack.c.l.b16 %v764
    %v837 = vunpack.c.l.b16 %v765
    %v838 = vunpack.c.h.b16 %v765
    %v839 = vunpack.c.l.b16 %v766
    %v840 = vunpack.c.l.b16 %v767
    %v841 = vunpack.c.h.b16 %v767
    %v842 = vunpack.c.l.b16 %v768
    %v843 = vunpack.c.l.b16 %v769
    %v844 = vunpack.c.h.b16 %v769
    %v845 = vunpack.c.l.b16 %v770
    %v846 = vunpack.c.l.b16 %v771
    %v847 = vunpack.c.h.b16 %v771
    %v848 = vunpack.c.l.b16 %v772
    %v849 = vunpack.c.l.b16 %v773
    %v850 = vunpack.c.h.b16 %v773
    %v851 = vunpack.c.l.b16 %v774
    %v852 = vunpack.c.l.b16 %v775
    %v853 = vunpack.c.h.b16 %v775
    %v854 = vunpack.c.l.b16 %v776
    %v855 = vunpack.c.l.b16 %v777
    %v856 = vunpack.c.h.b16 %v777
    %v857 = vunpack.c.l.b16 %v778
    %v858 = vunpack.c.l.b16 %v779
    %v859 = vunpack.c.h.b16 %v779
    %v860 = vunpack.c.l.b16 %v780
    %v861 = vpack.c.b16 %v816, %v813
    %v862 = vpack.c.b16 %v817, %v814
    %v863 = vpack.c.b16 %v818, %v815
    %v864 = vpack.c.b16 %v822, %v819
    %v865 = vpack.c.b16 %v823, %v820
    %v866 = vpack.c.b16 %v824, %v821
    %v867 = vpack.c.b16 %v828, %v825
    %v868 = vpack.c.b16 %v829, %v826
    %v869 = vpack.c.b16 %v830, %v827
    %v870 = vpack.c.b16 %v834, %v831
    %v871 = vpack.c.b16 %v835, %v832
    %v872 = vpack.c.b16 %v836, %v833
    %v873 = vpack.c.b16 %v840, %v837
    %v874 = vpack.c.b16 %v841, %v838
    %v875 = vpack.c.b16 %v842, %v839
    %v876 = vpack.c.b16 %v846, %v843
    %v877 = vpack.c.b16 %v847, %v844
    %v878 = vpack.c.b16 %v848, %v845
    %v879 = vpack.c.b16 %v852, %v849
    %v880 = vpack.c.b16 %v853, %v850
    %v881 = vpack.c.b16 %v854, %v851
    %v882 = vpack.c.b16 %v858, %v855
    %v883 = vpack.c.b16 %v859, %v856
    %v884 = vpack.c.b16 %v860, %v857
    %909 = vmatprep.subr.bf16.mxu0 %v883
    %910 = vmatpush1.bf16.msra.mxu0 %v882
    %911 = vmatprep.subr.bf16.mxu0 %v880
    %912 = vmatpush1.bf16.msra.mxu0 %v879
    %913 = vmatprep.subr.bf16.mxu0 %v877
    %914 = vmatpush1.bf16.msra.mxu0 %v876
    %915 = vmatprep.subr.bf16.mxu0 %v874
    %916 = vmatpush1.bf16.msra.mxu0 %v873
    %917 = vmatprep.subr.bf16.mxu0 %v871
    %918 = vmatpush1.bf16.msra.mxu0 %v870
    %919 = vmatprep.subr.bf16.mxu0 %v868
    %920 = vmatpush1.bf16.msra.mxu0 %v867
    %921 = vmatprep.subr.bf16.mxu0 %v865
    %922 = vmatpush1.bf16.msra.mxu0 %v864
    %923 = vmatprep.subr.bf16.mxu0 %v862
    %924 = vmatpush1.bf16.msra.mxu0 %v861
    %925 = vmatprep.subr.bf16.mxu0 0
    %926 = vmatpush2.bf16.msra.mxu0 0
    %927 = vmatprep.subr.bf16.mxu0 0
    %928 = vmatpush2.bf16.msra.mxu0 0
    %929 = vmatprep.subr.bf16.mxu0 0
    %930 = vmatpush2.bf16.msra.mxu0 0
    %931 = vmatprep.subr.bf16.mxu0 0
    %932 = vmatpush2.bf16.msra.mxu0 0
    %933 = vmatprep.subr.bf16.mxu0 0
    %934 = vmatpush2.bf16.msra.mxu0 0
    %935 = vmatprep.subr.bf16.mxu0 0
    %936 = vmatpush2.bf16.msra.mxu0 0
    %937 = vmatprep.subr.bf16.mxu0 0
    %938 = vmatpush2.bf16.msra.mxu0 0
    %939 = vmatprep.subr.bf16.mxu0 0
    %940 = vmatpush2.bf16.msra.mxu0 0
    %941 = vmatprep.mubr.bf16.mxu0 0
    %942 = vmatmul.mubr.bf16.gmra.mxu0 %v748
    %v943 = vpop.f32.mrf.mxu0
    %v944 = vadd.f32 %v464, %v943
    %v945 = vpop.f32.mrf.mxu0
    %v946 = vadd.f32 %v468, %v945
    %v947 = vpop.f32.mrf.mxu0
    %v948 = vpop.f32.mrf.mxu0
    %949 = vdwg.mxu0
    %950 = vmatprep.subr.bf16.mxu0 0
    %951 = vmatpush1.bf16.msra.mxu0 %v884
    %952 = vmatprep.subr.bf16.mxu0 0
    %953 = vmatpush1.bf16.msra.mxu0 %v881
    %954 = vmatprep.subr.bf16.mxu0 0
    %955 = vmatpush1.bf16.msra.mxu0 %v878
    %956 = vmatprep.subr.bf16.mxu0 0
    %957 = vmatpush1.bf16.msra.mxu0 %v875
    %958 = vmatprep.subr.bf16.mxu0 0
    %959 = vmatpush1.bf16.msra.mxu0 %v872
    %960 = vmatprep.subr.bf16.mxu0 0
    %961 = vmatpush1.bf16.msra.mxu0 %v869
    %962 = vmatprep.subr.bf16.mxu0 0
    %963 = vmatpush1.bf16.msra.mxu0 %v866
    %964 = vmatprep.subr.bf16.mxu0 0
    %965 = vmatpush1.bf16.msra.mxu0 %v863
    %966 = vmatprep.subr.bf16.mxu0 0
    %967 = vmatpush2.bf16.msra.mxu0 0
    %968 = vmatprep.subr.bf16.mxu0 0
    %969 = vmatpush2.bf16.msra.mxu0 0
    %970 = vmatprep.subr.bf16.mxu0 0
    %971 = vmatpush2.bf16.msra.mxu0 0
    %972 = vmatprep.subr.bf16.mxu0 0
    %973 = vmatpush2.bf16.msra.mxu0 0
    %974 = vmatprep.subr.bf16.mxu0 0
    %975 = vmatpush2.bf16.msra.mxu0 0
    %976 = vmatprep.subr.bf16.mxu0 0
    %977 = vmatpush2.bf16.msra.mxu0 0
    %978 = vmatprep.subr.bf16.mxu0 0
    %979 = vmatpush2.bf16.msra.mxu0 0
    %980 = vmatprep.subr.bf16.mxu0 0
    %981 = vmatpush2.bf16.msra.mxu0 0
    %982 = vmatprep.mubr.bf16.mxu0 0
    %983 = vmatmul.mubr.bf16.gmra.mxu0 %v748
    %v984 = vpop.f32.mrf.mxu0
    %v985 = vadd.f32 %v472, %v984
    %v986 = vpop.f32.mrf.mxu0
    %v987 = vpop.f32.mrf.mxu0
    %v988 = vpop.f32.mrf.mxu0
    %989 = vdwg.mxu0
    %v990 = vadd.f32 %v745, %v944
    %v991 = vxor.u32 %v990, 2147483648
    %v992 = vmul.f32 %v991, 1.442695
    %v993 = vpow.pop %v992
    %v994 = vadd.f32 %v993, 1.0
    %v995 = vrcp.pop %v994
    %v996 = vmul.f32 1.0, %v995
    %v997 = vadd.f32 %v746, %v946
    %v998 = vxor.u32 %v997, 2147483648
    %v999 = vmul.f32 %v998, 1.442695
    %v1000 = vpow.pop %v999
    %v1001 = vadd.f32 %v1000, 1.0
    %v1002 = vrcp.pop %v1001
    %v1003 = vmul.f32 1.0, %v1002
    %v1004 = vmul.f32 %v996, %v985
    %v1005 = vadd.f32 %v747, %v1004
    %v1006 = vtanh.pop %v1005
    %v1007 = vsub.f32 %v743, %v1006
    %v1008 = vmul.f32 %v1003, %v1007
    %v1009 = vadd.f32 %v1006, %v1008
    %1010 = vst [vmem:[#allocation3] sm:$0xff] %v1009
    %v1011 = vld [vmem:[#allocation3] sm:$0xff]
    %s1012 = scalar_lea.vmem [#allocation2], 48
    %v1013 = vld [vmem:[%s1012] sm:$0xff]
    %v1014 = vld [vmem:[%s1012 + $0x8] sm:$0xff]
    %v1015 = vld [vmem:[%s1012 + $0x10] sm:$0xff]
    %v1016 = vpack.c.bf16 %v1011, %v1011
    %v1017 = vld [vmem:[#allocation9] sm:$0xff]
    %v1018 = vld [vmem:[#allocation9 + $0x8] sm:$0xf]
    %v1019 = vld [vmem:[#allocation9 + $0xc] sm:$0xff]
    %v1020 = vld [vmem:[#allocation9 + $0x14] sm:$0xf]
    %v1021 = vld [vmem:[#allocation9 + $0x18] sm:$0xff]
    %v1022 = vld [vmem:[#allocation9 + $0x20] sm:$0xf]
    %v1023 = vld [vmem:[#allocation9 + $0x24] sm:$0xff]
    %v1024 = vld [vmem:[#allocation9 + $0x2c] sm:$0xf]
    %v1025 = vld [vmem:[#allocation9 + $0x30] sm:$0xff]
    %v1026 = vld [vmem:[#allocation9 + $0x38] sm:$0xf]
    %v1027 = vld [vmem:[#allocation9 + $0x3c] sm:$0xff]
    %v1028 = vld [vmem:[#allocation9 + $0x44] sm:$0xf]
    %v1029 = vld [vmem:[#allocation9 + $0x48] sm:$0xff]
    %v1030 = vld [vmem:[#allocation9 + $0x50] sm:$0xf]
    %v1031 = vld [vmem:[#allocation9 + $0x54] sm:$0xff]
    %v1032 = vld [vmem:[#allocation9 + $0x5c] sm:$0xf]
    %v1033 = vld [vmem:[#allocation9 + $0x60] sm:$0xff]
    %v1034 = vld [vmem:[#allocation9 + $0x68] sm:$0xf]
    %v1035 = vld [vmem:[#allocation9 + $0x6c] sm:$0xff]
    %v1036 = vld [vmem:[#allocation9 + $0x74] sm:$0xf]
    %v1037 = vld [vmem:[#allocation9 + $0x78] sm:$0xff]
    %v1038 = vld [vmem:[#allocation9 + $0x80] sm:$0xf]
    %v1039 = vld [vmem:[#allocation9 + $0x84] sm:$0xff]
    %v1040 = vld [vmem:[#allocation9 + $0x8c] sm:$0xf]
    %v1041 = vld [vmem:[#allocation9 + $0x90] sm:$0xff]
    %v1042 = vld [vmem:[#allocation9 + $0x98] sm:$0xf]
    %v1043 = vld [vmem:[#allocation9 + $0x9c] sm:$0xff]
    %v1044 = vld [vmem:[#allocation9 + $0xa4] sm:$0xf]
    %v1045 = vld [vmem:[#allocation9 + $0xa8] sm:$0xff]
    %v1046 = vld [vmem:[#allocation9 + $0xb0] sm:$0xf]
    %v1047 = vld [vmem:[#allocation9 + $0xb4] sm:$0xff]
    %v1048 = vld [vmem:[#allocation9 + $0xbc] sm:$0xf]
    %v1081 = vunpack.c.l.b16 %v1017
    %v1082 = vunpack.c.h.b16 %v1017
    %v1083 = vunpack.c.l.b16 %v1018
    %v1084 = vunpack.c.l.b16 %v1019
    %v1085 = vunpack.c.h.b16 %v1019
    %v1086 = vunpack.c.l.b16 %v1020
    %v1087 = vunpack.c.l.b16 %v1021
    %v1088 = vunpack.c.h.b16 %v1021
    %v1089 = vunpack.c.l.b16 %v1022
    %v1090 = vunpack.c.l.b16 %v1023
    %v1091 = vunpack.c.h.b16 %v1023
    %v1092 = vunpack.c.l.b16 %v1024
    %v1093 = vunpack.c.l.b16 %v1025
    %v1094 = vunpack.c.h.b16 %v1025
    %v1095 = vunpack.c.l.b16 %v1026
    %v1096 = vunpack.c.l.b16 %v1027
    %v1097 = vunpack.c.h.b16 %v1027
    %v1098 = vunpack.c.l.b16 %v1028
    %v1099 = vunpack.c.l.b16 %v1029
    %v1100 = vunpack.c.h.b16 %v1029
    %v1101 = vunpack.c.l.b16 %v1030
    %v1102 = vunpack.c.l.b16 %v1031
    %v1103 = vunpack.c.h.b16 %v1031
    %v1104 = vunpack.c.l.b16 %v1032
    %v1105 = vunpack.c.l.b16 %v1033
    %v1106 = vunpack.c.h.b16 %v1033
    %v1107 = vunpack.c.l.b16 %v1034
    %v1108 = vunpack.c.l.b16 %v1035
    %v1109 = vunpack.c.h.b16 %v1035
    %v1110 = vunpack.c.l.b16 %v1036
    %v1111 = vunpack.c.l.b16 %v1037
    %v1112 = vunpack.c.h.b16 %v1037
    %v1113 = vunpack.c.l.b16 %v1038
    %v1114 = vunpack.c.l.b16 %v1039
    %v1115 = vunpack.c.h.b16 %v1039
    %v1116 = vunpack.c.l.b16 %v1040
    %v1117 = vunpack.c.l.b16 %v1041
    %v1118 = vunpack.c.h.b16 %v1041
    %v1119 = vunpack.c.l.b16 %v1042
    %v1120 = vunpack.c.l.b16 %v1043
    %v1121 = vunpack.c.h.b16 %v1043
    %v1122 = vunpack.c.l.b16 %v1044
    %v1123 = vunpack.c.l.b16 %v1045
    %v1124 = vunpack.c.h.b16 %v1045
    %v1125 = vunpack.c.l.b16 %v1046
    %v1126 = vunpack.c.l.b16 %v1047
    %v1127 = vunpack.c.h.b16 %v1047
    %v1128 = vunpack.c.l.b16 %v1048
    %v1129 = vpack.c.b16 %v1084, %v1081
    %v1130 = vpack.c.b16 %v1085, %v1082
    %v1131 = vpack.c.b16 %v1086, %v1083
    %v1132 = vpack.c.b16 %v1090, %v1087
    %v1133 = vpack.c.b16 %v1091, %v1088
    %v1134 = vpack.c.b16 %v1092, %v1089
    %v1135 = vpack.c.b16 %v1096, %v1093
    %v1136 = vpack.c.b16 %v1097, %v1094
    %v1137 = vpack.c.b16 %v1098, %v1095
    %v1138 = vpack.c.b16 %v1102, %v1099
    %v1139 = vpack.c.b16 %v1103, %v1100
    %v1140 = vpack.c.b16 %v1104, %v1101
    %v1141 = vpack.c.b16 %v1108, %v1105
    %v1142 = vpack.c.b16 %v1109, %v1106
    %v1143 = vpack.c.b16 %v1110, %v1107
    %v1144 = vpack.c.b16 %v1114, %v1111
    %v1145 = vpack.c.b16 %v1115, %v1112
    %v1146 = vpack.c.b16 %v1116, %v1113
    %v1147 = vpack.c.b16 %v1120, %v1117
    %v1148 = vpack.c.b16 %v1121, %v1118
    %v1149 = vpack.c.b16 %v1122, %v1119
    %v1150 = vpack.c.b16 %v1126, %v1123
    %v1151 = vpack.c.b16 %v1127, %v1124
    %v1152 = vpack.c.b16 %v1128, %v1125
    %1177 = vmatprep.subr.bf16.mxu0 %v1151
    %1178 = vmatpush1.bf16.msra.mxu0 %v1150
    %1179 = vmatprep.subr.bf16.mxu0 %v1148
    %1180 = vmatpush1.bf16.msra.mxu0 %v1147
    %1181 = vmatprep.subr.bf16.mxu0 %v1145
    %1182 = vmatpush1.bf16.msra.mxu0 %v1144
    %1183 = vmatprep.subr.bf16.mxu0 %v1142
    %1184 = vmatpush1.bf16.msra.mxu0 %v1141
    %1185 = vmatprep.subr.bf16.mxu0 %v1139
    %1186 = vmatpush1.bf16.msra.mxu0 %v1138
    %1187 = vmatprep.subr.bf16.mxu0 %v1136
    %1188 = vmatpush1.bf16.msra.mxu0 %v1135
    %1189 = vmatprep.subr.bf16.mxu0 %v1133
    %1190 = vmatpush1.bf16.msra.mxu0 %v1132
    %1191 = vmatprep.subr.bf16.mxu0 %v1130
    %1192 = vmatpush1.bf16.msra.mxu0 %v1129
    %1193 = vmatprep.subr.bf16.mxu0 0
    %1194 = vmatpush2.bf16.msra.mxu0 0
    %1195 = vmatprep.subr.bf16.mxu0 0
    %1196 = vmatpush2.bf16.msra.mxu0 0
    %1197 = vmatprep.subr.bf16.mxu0 0
    %1198 = vmatpush2.bf16.msra.mxu0 0
    %1199 = vmatprep.subr.bf16.mxu0 0
    %1200 = vmatpush2.bf16.msra.mxu0 0
    %1201 = vmatprep.subr.bf16.mxu0 0
    %1202 = vmatpush2.bf16.msra.mxu0 0
    %1203 = vmatprep.subr.bf16.mxu0 0
    %1204 = vmatpush2.bf16.msra.mxu0 0
    %1205 = vmatprep.subr.bf16.mxu0 0
    %1206 = vmatpush2.bf16.msra.mxu0 0
    %1207 = vmatprep.subr.bf16.mxu0 0
    %1208 = vmatpush2.bf16.msra.mxu0 0
    %1209 = vmatprep.mubr.bf16.mxu0 0
    %1210 = vmatmul.mubr.bf16.gmra.mxu0 %v1016
    %v1211 = vpop.f32.mrf.mxu0
    %v1212 = vadd.f32 %v464, %v1211
    %v1213 = vpop.f32.mrf.mxu0
    %v1214 = vadd.f32 %v468, %v1213
    %v1215 = vpop.f32.mrf.mxu0
    %v1216 = vpop.f32.mrf.mxu0
    %1217 = vdwg.mxu0
    %1218 = vmatprep.subr.bf16.mxu0 0
    %1219 = vmatpush1.bf16.msra.mxu0 %v1152
    %1220 = vmatprep.subr.bf16.mxu0 0
    %1221 = vmatpush1.bf16.msra.mxu0 %v1149
    %1222 = vmatprep.subr.bf16.mxu0 0
    %1223 = vmatpush1.bf16.msra.mxu0 %v1146
    %1224 = vmatprep.subr.bf16.mxu0 0
    %1225 = vmatpush1.bf16.msra.mxu0 %v1143
    %1226 = vmatprep.subr.bf16.mxu0 0
    %1227 = vmatpush1.bf16.msra.mxu0 %v1140
    %1228 = vmatprep.subr.bf16.mxu0 0
    %1229 = vmatpush1.bf16.msra.mxu0 %v1137
    %1230 = vmatprep.subr.bf16.mxu0 0
    %1231 = vmatpush1.bf16.msra.mxu0 %v1134
    %1232 = vmatprep.subr.bf16.mxu0 0
    %1233 = vmatpush1.bf16.msra.mxu0 %v1131
    %1234 = vmatprep.subr.bf16.mxu0 0
    %1235 = vmatpush2.bf16.msra.mxu0 0
    %1236 = vmatprep.subr.bf16.mxu0 0
    %1237 = vmatpush2.bf16.msra.mxu0 0
    %1238 = vmatprep.subr.bf16.mxu0 0
    %1239 = vmatpush2.bf16.msra.mxu0 0
    %1240 = vmatprep.subr.bf16.mxu0 0
    %1241 = vmatpush2.bf16.msra.mxu0 0
    %1242 = vmatprep.subr.bf16.mxu0 0
    %1243 = vmatpush2.bf16.msra.mxu0 0
    %1244 = vmatprep.subr.bf16.mxu0 0
    %1245 = vmatpush2.bf16.msra.mxu0 0
    %1246 = vmatprep.subr.bf16.mxu0 0
    %1247 = vmatpush2.bf16.msra.mxu0 0
    %1248 = vmatprep.subr.bf16.mxu0 0
    %1249 = vmatpush2.bf16.msra.mxu0 0
    %1250 = vmatprep.mubr.bf16.mxu0 0
    %1251 = vmatmul.mubr.bf16.gmra.mxu0 %v1016
    %v1252 = vpop.f32.mrf.mxu0
    %v1253 = vadd.f32 %v472, %v1252
    %v1254 = vpop.f32.mrf.mxu0
    %v1255 = vpop.f32.mrf.mxu0
    %v1256 = vpop.f32.mrf.mxu0
    %1257 = vdwg.mxu0
    %v1258 = vadd.f32 %v1013, %v1212
    %v1259 = vxor.u32 %v1258, 2147483648
    %v1260 = vmul.f32 %v1259, 1.442695
    %v1261 = vpow.pop %v1260
    %v1262 = vadd.f32 %v1261, 1.0
    %v1263 = vrcp.pop %v1262
    %v1264 = vmul.f32 1.0, %v1263
    %v1265 = vadd.f32 %v1014, %v1214
    %v1266 = vxor.u32 %v1265, 2147483648
    %v1267 = vmul.f32 %v1266, 1.442695
    %v1268 = vpow.pop %v1267
    %v1269 = vadd.f32 %v1268, 1.0
    %v1270 = vrcp.pop %v1269
    %v1271 = vmul.f32 1.0, %v1270
    %v1272 = vmul.f32 %v1264, %v1253
    %v1273 = vadd.f32 %v1015, %v1272
    %v1274 = vtanh.pop %v1273
    %v1275 = vsub.f32 %v1011, %v1274
    %v1276 = vmul.f32 %v1271, %v1275
    %v1277 = vadd.f32 %v1274, %v1276
    %1278 = vst [vmem:[#allocation3] sm:$0xff] %v1277
    %v1279 = vld [vmem:[#allocation3] sm:$0xff]
    %s1280 = scalar_lea.vmem [#allocation2], 72
    %v1281 = vld [vmem:[%s1280] sm:$0xff]
    %v1282 = vld [vmem:[%s1280 + $0x8] sm:$0xff]
    %v1283 = vld [vmem:[%s1280 + $0x10] sm:$0xff]
    %v1284 = vpack.c.bf16 %v1279, %v1279
    %v1285 = vld [vmem:[#allocation9] sm:$0xff]
    %v1286 = vld [vmem:[#allocation9 + $0x8] sm:$0xf]
    %v1287 = vld [vmem:[#allocation9 + $0xc] sm:$0xff]
    %v1288 = vld [vmem:[#allocation9 + $0x14] sm:$0xf]
    %v1289 = vld [vmem:[#allocation9 + $0x18] sm:$0xff]
    %v1290 = vld [vmem:[#allocation9 + $0x20] sm:$0xf]
    %v1291 = vld [vmem:[#allocation9 + $0x24] sm:$0xff]
    %v1292 = vld [vmem:[#allocation9 + $0x2c] sm:$0xf]
    %v1293 = vld [vmem:[#allocation9 + $0x30] sm:$0xff]
    %v1294 = vld [vmem:[#allocation9 + $0x38] sm:$0xf]
    %v1295 = vld [vmem:[#allocation9 + $0x3c] sm:$0xff]
    %v1296 = vld [vmem:[#allocation9 + $0x44] sm:$0xf]
    %v1297 = vld [vmem:[#allocation9 + $0x48] sm:$0xff]
    %v1298 = vld [vmem:[#allocation9 + $0x50] sm:$0xf]
    %v1299 = vld [vmem:[#allocation9 + $0x54] sm:$0xff]
    %v1300 = vld [vmem:[#allocation9 + $0x5c] sm:$0xf]
    %v1301 = vld [vmem:[#allocation9 + $0x60] sm:$0xff]
    %v1302 = vld [vmem:[#allocation9 + $0x68] sm:$0xf]
    %v1303 = vld [vmem:[#allocation9 + $0x6c] sm:$0xff]
    %v1304 = vld [vmem:[#allocation9 + $0x74] sm:$0xf]
    %v1305 = vld [vmem:[#allocation9 + $0x78] sm:$0xff]
    %v1306 = vld [vmem:[#allocation9 + $0x80] sm:$0xf]
    %v1307 = vld [vmem:[#allocation9 + $0x84] sm:$0xff]
    %v1308 = vld [vmem:[#allocation9 + $0x8c] sm:$0xf]
    %v1309 = vld [vmem:[#allocation9 + $0x90] sm:$0xff]
    %v1310 = vld [vmem:[#allocation9 + $0x98] sm:$0xf]
    %v1311 = vld [vmem:[#allocation9 + $0x9c] sm:$0xff]
    %v1312 = vld [vmem:[#allocation9 + $0xa4] sm:$0xf]
    %v1313 = vld [vmem:[#allocation9 + $0xa8] sm:$0xff]
    %v1314 = vld [vmem:[#allocation9 + $0xb0] sm:$0xf]
    %v1315 = vld [vmem:[#allocation9 + $0xb4] sm:$0xff]
    %v1316 = vld [vmem:[#allocation9 + $0xbc] sm:$0xf]
    %v1349 = vunpack.c.l.b16 %v1285
    %v1350 = vunpack.c.h.b16 %v1285
    %v1351 = vunpack.c.l.b16 %v1286
    %v1352 = vunpack.c.l.b16 %v1287
    %v1353 = vunpack.c.h.b16 %v1287
    %v1354 = vunpack.c.l.b16 %v1288
    %v1355 = vunpack.c.l.b16 %v1289
    %v1356 = vunpack.c.h.b16 %v1289
    %v1357 = vunpack.c.l.b16 %v1290
    %v1358 = vunpack.c.l.b16 %v1291
    %v1359 = vunpack.c.h.b16 %v1291
    %v1360 = vunpack.c.l.b16 %v1292
    %v1361 = vunpack.c.l.b16 %v1293
    %v1362 = vunpack.c.h.b16 %v1293
    %v1363 = vunpack.c.l.b16 %v1294
    %v1364 = vunpack.c.l.b16 %v1295
    %v1365 = vunpack.c.h.b16 %v1295
    %v1366 = vunpack.c.l.b16 %v1296
    %v1367 = vunpack.c.l.b16 %v1297
    %v1368 = vunpack.c.h.b16 %v1297
    %v1369 = vunpack.c.l.b16 %v1298
    %v1370 = vunpack.c.l.b16 %v1299
    %v1371 = vunpack.c.h.b16 %v1299
    %v1372 = vunpack.c.l.b16 %v1300
    %v1373 = vunpack.c.l.b16 %v1301
    %v1374 = vunpack.c.h.b16 %v1301
    %v1375 = vunpack.c.l.b16 %v1302
    %v1376 = vunpack.c.l.b16 %v1303
    %v1377 = vunpack.c.h.b16 %v1303
    %v1378 = vunpack.c.l.b16 %v1304
    %v1379 = vunpack.c.l.b16 %v1305
    %v1380 = vunpack.c.h.b16 %v1305
    %v1381 = vunpack.c.l.b16 %v1306
    %v1382 = vunpack.c.l.b16 %v1307
    %v1383 = vunpack.c.h.b16 %v1307
    %v1384 = vunpack.c.l.b16 %v1308
    %v1385 = vunpack.c.l.b16 %v1309
    %v1386 = vunpack.c.h.b16 %v1309
    %v1387 = vunpack.c.l.b16 %v1310
    %v1388 = vunpack.c.l.b16 %v1311
    %v1389 = vunpack.c.h.b16 %v1311
    %v1390 = vunpack.c.l.b16 %v1312
    %v1391 = vunpack.c.l.b16 %v1313
    %v1392 = vunpack.c.h.b16 %v1313
    %v1393 = vunpack.c.l.b16 %v1314
    %v1394 = vunpack.c.l.b16 %v1315
    %v1395 = vunpack.c.h.b16 %v1315
    %v1396 = vunpack.c.l.b16 %v1316
    %v1397 = vpack.c.b16 %v1352, %v1349
    %v1398 = vpack.c.b16 %v1353, %v1350
    %v1399 = vpack.c.b16 %v1354, %v1351
    %v1400 = vpack.c.b16 %v1358, %v1355
    %v1401 = vpack.c.b16 %v1359, %v1356
    %v1402 = vpack.c.b16 %v1360, %v1357
    %v1403 = vpack.c.b16 %v1364, %v1361
    %v1404 = vpack.c.b16 %v1365, %v1362
    %v1405 = vpack.c.b16 %v1366, %v1363
    %v1406 = vpack.c.b16 %v1370, %v1367
    %v1407 = vpack.c.b16 %v1371, %v1368
    %v1408 = vpack.c.b16 %v1372, %v1369
    %v1409 = vpack.c.b16 %v1376, %v1373
    %v1410 = vpack.c.b16 %v1377, %v1374
    %v1411 = vpack.c.b16 %v1378, %v1375
    %v1412 = vpack.c.b16 %v1382, %v1379
    %v1413 = vpack.c.b16 %v1383, %v1380
    %v1414 = vpack.c.b16 %v1384, %v1381
    %v1415 = vpack.c.b16 %v1388, %v1385
    %v1416 = vpack.c.b16 %v1389, %v1386
    %v1417 = vpack.c.b16 %v1390, %v1387
    %v1418 = vpack.c.b16 %v1394, %v1391
    %v1419 = vpack.c.b16 %v1395, %v1392
    %v1420 = vpack.c.b16 %v1396, %v1393
    %1445 = vmatprep.subr.bf16.mxu0 %v1419
    %1446 = vmatpush1.bf16.msra.mxu0 %v1418
    %1447 = vmatprep.subr.bf16.mxu0 %v1416
    %1448 = vmatpush1.bf16.msra.mxu0 %v1415
    %1449 = vmatprep.subr.bf16.mxu0 %v1413
    %1450 = vmatpush1.bf16.msra.mxu0 %v1412
    %1451 = vmatprep.subr.bf16.mxu0 %v1410
    %1452 = vmatpush1.bf16.msra.mxu0 %v1409
    %1453 = vmatprep.subr.bf16.mxu0 %v1407
    %1454 = vmatpush1.bf16.msra.mxu0 %v1406
    %1455 = vmatprep.subr.bf16.mxu0 %v1404
    %1456 = vmatpush1.bf16.msra.mxu0 %v1403
    %1457 = vmatprep.subr.bf16.mxu0 %v1401
    %1458 = vmatpush1.bf16.msra.mxu0 %v1400
    %1459 = vmatprep.subr.bf16.mxu0 %v1398
    %1460 = vmatpush1.bf16.msra.mxu0 %v1397
    %1461 = vmatprep.subr.bf16.mxu0 0
    %1462 = vmatpush2.bf16.msra.mxu0 0
    %1463 = vmatprep.subr.bf16.mxu0 0
    %1464 = vmatpush2.bf16.msra.mxu0 0
    %1465 = vmatprep.subr.bf16.mxu0 0
    %1466 = vmatpush2.bf16.msra.mxu0 0
    %1467 = vmatprep.subr.bf16.mxu0 0
    %1468 = vmatpush2.bf16.msra.mxu0 0
    %1469 = vmatprep.subr.bf16.mxu0 0
    %1470 = vmatpush2.bf16.msra.mxu0 0
    %1471 = vmatprep.subr.bf16.mxu0 0
    %1472 = vmatpush2.bf16.msra.mxu0 0
    %1473 = vmatprep.subr.bf16.mxu0 0
    %1474 = vmatpush2.bf16.msra.mxu0 0
    %1475 = vmatprep.subr.bf16.mxu0 0
    %1476 = vmatpush2.bf16.msra.mxu0 0
    %1477 = vmatprep.mubr.bf16.mxu0 0
    %1478 = vmatmul.mubr.bf16.gmra.mxu0 %v1284
    %v1479 = vpop.f32.mrf.mxu0
    %v1480 = vadd.f32 %v464, %v1479
    %v1481 = vpop.f32.mrf.mxu0
    %v1482 = vadd.f32 %v468, %v1481
    %v1483 = vpop.f32.mrf.mxu0
    %v1484 = vpop.f32.mrf.mxu0
    %1485 = vdwg.mxu0
    %1486 = vmatprep.subr.bf16.mxu0 0
    %1487 = vmatpush1.bf16.msra.mxu0 %v1420
    %1488 = vmatprep.subr.bf16.mxu0 0
    %1489 = vmatpush1.bf16.msra.mxu0 %v1417
    %1490 = vmatprep.subr.bf16.mxu0 0
    %1491 = vmatpush1.bf16.msra.mxu0 %v1414
    %1492 = vmatprep.subr.bf16.mxu0 0
    %1493 = vmatpush1.bf16.msra.mxu0 %v1411
    %1494 = vmatprep.subr.bf16.mxu0 0
    %1495 = vmatpush1.bf16.msra.mxu0 %v1408
    %1496 = vmatprep.subr.bf16.mxu0 0
    %1497 = vmatpush1.bf16.msra.mxu0 %v1405
    %1498 = vmatprep.subr.bf16.mxu0 0
    %1499 = vmatpush1.bf16.msra.mxu0 %v1402
    %1500 = vmatprep.subr.bf16.mxu0 0
    %1501 = vmatpush1.bf16.msra.mxu0 %v1399
    %1502 = vmatprep.subr.bf16.mxu0 0
    %1503 = vmatpush2.bf16.msra.mxu0 0
    %1504 = vmatprep.subr.bf16.mxu0 0
    %1505 = vmatpush2.bf16.msra.mxu0 0
    %1506 = vmatprep.subr.bf16.mxu0 0
    %1507 = vmatpush2.bf16.msra.mxu0 0
    %1508 = vmatprep.subr.bf16.mxu0 0
    %1509 = vmatpush2.bf16.msra.mxu0 0
    %1510 = vmatprep.subr.bf16.mxu0 0
    %1511 = vmatpush2.bf16.msra.mxu0 0
    %1512 = vmatprep.subr.bf16.mxu0 0
    %1513 = vmatpush2.bf16.msra.mxu0 0
    %1514 = vmatprep.subr.bf16.mxu0 0
    %1515 = vmatpush2.bf16.msra.mxu0 0
    %1516 = vmatprep.subr.bf16.mxu0 0
    %1517 = vmatpush2.bf16.msra.mxu0 0
    %1518 = vmatprep.mubr.bf16.mxu0 0
    %1519 = vmatmul.mubr.bf16.gmra.mxu0 %v1284
    %v1520 = vpop.f32.mrf.mxu0
    %v1521 = vadd.f32 %v472, %v1520
    %v1522 = vpop.f32.mrf.mxu0
    %v1523 = vpop.f32.mrf.mxu0
    %v1524 = vpop.f32.mrf.mxu0
    %1525 = vdwg.mxu0
    %v1526 = vadd.f32 %v1281, %v1480
    %v1527 = vxor.u32 %v1526, 2147483648
    %v1528 = vmul.f32 %v1527, 1.442695
    %v1529 = vpow.pop %v1528
    %v1530 = vadd.f32 %v1529, 1.0
    %v1531 = vrcp.pop %v1530
    %v1532 = vmul.f32 1.0, %v1531
    %v1533 = vadd.f32 %v1282, %v1482
    %v1534 = vxor.u32 %v1533, 2147483648
    %v1535 = vmul.f32 %v1534, 1.442695
    %v1536 = vpow.pop %v1535
    %v1537 = vadd.f32 %v1536, 1.0
    %v1538 = vrcp.pop %v1537
    %v1539 = vmul.f32 1.0, %v1538
    %v1540 = vmul.f32 %v1532, %v1521
    %v1541 = vadd.f32 %v1283, %v1540
    %v1542 = vtanh.pop %v1541
    %v1543 = vsub.f32 %v1279, %v1542
    %v1544 = vmul.f32 %v1539, %v1543
    %v1545 = vadd.f32 %v1542, %v1544
    %1546 = vst [vmem:[#allocation3] sm:$0xff] %v1545
    %v1547 = vld [vmem:[#allocation3] sm:$0xff]
    %s1548 = scalar_lea.vmem [#allocation2], 96
    %v1549 = vld [vmem:[%s1548] sm:$0xff]
    %v1550 = vld [vmem:[%s1548 + $0x8] sm:$0xff]
    %v1551 = vld [vmem:[%s1548 + $0x10] sm:$0xff]
    %v1552 = vpack.c.bf16 %v1547, %v1547
    %v1553 = vld [vmem:[#allocation9] sm:$0xff]
    %v1554 = vld [vmem:[#allocation9 + $0x8] sm:$0xf]
    %v1555 = vld [vmem:[#allocation9 + $0xc] sm:$0xff]
    %v1556 = vld [vmem:[#allocation9 + $0x14] sm:$0xf]
    %v1557 = vld [vmem:[#allocation9 + $0x18] sm:$0xff]
    %v1558 = vld [vmem:[#allocation9 + $0x20] sm:$0xf]
    %v1559 = vld [vmem:[#allocation9 + $0x24] sm:$0xff]
    %v1560 = vld [vmem:[#allocation9 + $0x2c] sm:$0xf]
    %v1561 = vld [vmem:[#allocation9 + $0x30] sm:$0xff]
    %v1562 = vld [vmem:[#allocation9 + $0x38] sm:$0xf]
    %v1563 = vld [vmem:[#allocation9 + $0x3c] sm:$0xff]
    %v1564 = vld [vmem:[#allocation9 + $0x44] sm:$0xf]
    %v1565 = vld [vmem:[#allocation9 + $0x48] sm:$0xff]
    %v1566 = vld [vmem:[#allocation9 + $0x50] sm:$0xf]
    %v1567 = vld [vmem:[#allocation9 + $0x54] sm:$0xff]
    %v1568 = vld [vmem:[#allocation9 + $0x5c] sm:$0xf]
    %v1569 = vld [vmem:[#allocation9 + $0x60] sm:$0xff]
    %v1570 = vld [vmem:[#allocation9 + $0x68] sm:$0xf]
    %v1571 = vld [vmem:[#allocation9 + $0x6c] sm:$0xff]
    %v1572 = vld [vmem:[#allocation9 + $0x74] sm:$0xf]
    %v1573 = vld [vmem:[#allocation9 + $0x78] sm:$0xff]
    %v1574 = vld [vmem:[#allocation9 + $0x80] sm:$0xf]
    %v1575 = vld [vmem:[#allocation9 + $0x84] sm:$0xff]
    %v1576 = vld [vmem:[#allocation9 + $0x8c] sm:$0xf]
    %v1577 = vld [vmem:[#allocation9 + $0x90] sm:$0xff]
    %v1578 = vld [vmem:[#allocation9 + $0x98] sm:$0xf]
    %v1579 = vld [vmem:[#allocation9 + $0x9c] sm:$0xff]
    %v1580 = vld [vmem:[#allocation9 + $0xa4] sm:$0xf]
    %v1581 = vld [vmem:[#allocation9 + $0xa8] sm:$0xff]
    %v1582 = vld [vmem:[#allocation9 + $0xb0] sm:$0xf]
    %v1583 = vld [vmem:[#allocation9 + $0xb4] sm:$0xff]
    %v1584 = vld [vmem:[#allocation9 + $0xbc] sm:$0xf]
    %v1617 = vunpack.c.l.b16 %v1553
    %v1618 = vunpack.c.h.b16 %v1553
    %v1619 = vunpack.c.l.b16 %v1554
    %v1620 = vunpack.c.l.b16 %v1555
    %v1621 = vunpack.c.h.b16 %v1555
    %v1622 = vunpack.c.l.b16 %v1556
    %v1623 = vunpack.c.l.b16 %v1557
    %v1624 = vunpack.c.h.b16 %v1557
    %v1625 = vunpack.c.l.b16 %v1558
    %v1626 = vunpack.c.l.b16 %v1559
    %v1627 = vunpack.c.h.b16 %v1559
    %v1628 = vunpack.c.l.b16 %v1560
    %v1629 = vunpack.c.l.b16 %v1561
    %v1630 = vunpack.c.h.b16 %v1561
    %v1631 = vunpack.c.l.b16 %v1562
    %v1632 = vunpack.c.l.b16 %v1563
    %v1633 = vunpack.c.h.b16 %v1563
    %v1634 = vunpack.c.l.b16 %v1564
    %v1635 = vunpack.c.l.b16 %v1565
    %v1636 = vunpack.c.h.b16 %v1565
    %v1637 = vunpack.c.l.b16 %v1566
    %v1638 = vunpack.c.l.b16 %v1567
    %v1639 = vunpack.c.h.b16 %v1567
    %v1640 = vunpack.c.l.b16 %v1568
    %v1641 = vunpack.c.l.b16 %v1569
    %v1642 = vunpack.c.h.b16 %v1569
    %v1643 = vunpack.c.l.b16 %v1570
    %v1644 = vunpack.c.l.b16 %v1571
    %v1645 = vunpack.c.h.b16 %v1571
    %v1646 = vunpack.c.l.b16 %v1572
    %v1647 = vunpack.c.l.b16 %v1573
    %v1648 = vunpack.c.h.b16 %v1573
    %v1649 = vunpack.c.l.b16 %v1574
    %v1650 = vunpack.c.l.b16 %v1575
    %v1651 = vunpack.c.h.b16 %v1575
    %v1652 = vunpack.c.l.b16 %v1576
    %v1653 = vunpack.c.l.b16 %v1577
    %v1654 = vunpack.c.h.b16 %v1577
    %v1655 = vunpack.c.l.b16 %v1578
    %v1656 = vunpack.c.l.b16 %v1579
    %v1657 = vunpack.c.h.b16 %v1579
    %v1658 = vunpack.c.l.b16 %v1580
    %v1659 = vunpack.c.l.b16 %v1581
    %v1660 = vunpack.c.h.b16 %v1581
    %v1661 = vunpack.c.l.b16 %v1582
    %v1662 = vunpack.c.l.b16 %v1583
    %v1663 = vunpack.c.h.b16 %v1583
    %v1664 = vunpack.c.l.b16 %v1584
    %v1665 = vpack.c.b16 %v1620, %v1617
    %v1666 = vpack.c.b16 %v1621, %v1618
    %v1667 = vpack.c.b16 %v1622, %v1619
    %v1668 = vpack.c.b16 %v1626, %v1623
    %v1669 = vpack.c.b16 %v1627, %v1624
    %v1670 = vpack.c.b16 %v1628, %v1625
    %v1671 = vpack.c.b16 %v1632, %v1629
    %v1672 = vpack.c.b16 %v1633, %v1630
    %v1673 = vpack.c.b16 %v1634, %v1631
    %v1674 = vpack.c.b16 %v1638, %v1635
    %v1675 = vpack.c.b16 %v1639, %v1636
    %v1676 = vpack.c.b16 %v1640, %v1637
    %v1677 = vpack.c.b16 %v1644, %v1641
    %v1678 = vpack.c.b16 %v1645, %v1642
    %v1679 = vpack.c.b16 %v1646, %v1643
    %v1680 = vpack.c.b16 %v1650, %v1647
    %v1681 = vpack.c.b16 %v1651, %v1648
    %v1682 = vpack.c.b16 %v1652, %v1649
    %v1683 = vpack.c.b16 %v1656, %v1653
    %v1684 = vpack.c.b16 %v1657, %v1654
    %v1685 = vpack.c.b16 %v1658, %v1655
    %v1686 = vpack.c.b16 %v1662, %v1659
    %v1687 = vpack.c.b16 %v1663, %v1660
    %v1688 = vpack.c.b16 %v1664, %v1661
    %1713 = vmatprep.subr.bf16.mxu0 %v1687
    %1714 = vmatpush1.bf16.msra.mxu0 %v1686
    %1715 = vmatprep.subr.bf16.mxu0 %v1684
    %1716 = vmatpush1.bf16.msra.mxu0 %v1683
    %1717 = vmatprep.subr.bf16.mxu0 %v1681
    %1718 = vmatpush1.bf16.msra.mxu0 %v1680
    %1719 = vmatprep.subr.bf16.mxu0 %v1678
    %1720 = vmatpush1.bf16.msra.mxu0 %v1677
    %1721 = vmatprep.subr.bf16.mxu0 %v1675
    %1722 = vmatpush1.bf16.msra.mxu0 %v1674
    %1723 = vmatprep.subr.bf16.mxu0 %v1672
    %1724 = vmatpush1.bf16.msra.mxu0 %v1671
    %1725 = vmatprep.subr.bf16.mxu0 %v1669
    %1726 = vmatpush1.bf16.msra.mxu0 %v1668
    %1727 = vmatprep.subr.bf16.mxu0 %v1666
    %1728 = vmatpush1.bf16.msra.mxu0 %v1665
    %1729 = vmatprep.subr.bf16.mxu0 0
    %1730 = vmatpush2.bf16.msra.mxu0 0
    %1731 = vmatprep.subr.bf16.mxu0 0
    %1732 = vmatpush2.bf16.msra.mxu0 0
    %1733 = vmatprep.subr.bf16.mxu0 0
    %1734 = vmatpush2.bf16.msra.mxu0 0
    %1735 = vmatprep.subr.bf16.mxu0 0
    %1736 = vmatpush2.bf16.msra.mxu0 0
    %1737 = vmatprep.subr.bf16.mxu0 0
    %1738 = vmatpush2.bf16.msra.mxu0 0
    %1739 = vmatprep.subr.bf16.mxu0 0
    %1740 = vmatpush2.bf16.msra.mxu0 0
    %1741 = vmatprep.subr.bf16.mxu0 0
    %1742 = vmatpush2.bf16.msra.mxu0 0
    %1743 = vmatprep.subr.bf16.mxu0 0
    %1744 = vmatpush2.bf16.msra.mxu0 0
    %1745 = vmatprep.mubr.bf16.mxu0 0
    %1746 = vmatmul.mubr.bf16.gmra.mxu0 %v1552
    %v1747 = vpop.f32.mrf.mxu0
    %v1748 = vadd.f32 %v464, %v1747
    %v1749 = vpop.f32.mrf.mxu0
    %v1750 = vadd.f32 %v468, %v1749
    %v1751 = vpop.f32.mrf.mxu0
    %v1752 = vpop.f32.mrf.mxu0
    %1753 = vdwg.mxu0
    %1754 = vmatprep.subr.bf16.mxu0 0
    %1755 = vmatpush1.bf16.msra.mxu0 %v1688
    %1756 = vmatprep.subr.bf16.mxu0 0
    %1757 = vmatpush1.bf16.msra.mxu0 %v1685
    %1758 = vmatprep.subr.bf16.mxu0 0
    %1759 = vmatpush1.bf16.msra.mxu0 %v1682
    %1760 = vmatprep.subr.bf16.mxu0 0
    %1761 = vmatpush1.bf16.msra.mxu0 %v1679
    %1762 = vmatprep.subr.bf16.mxu0 0
    %1763 = vmatpush1.bf16.msra.mxu0 %v1676
    %1764 = vmatprep.subr.bf16.mxu0 0
    %1765 = vmatpush1.bf16.msra.mxu0 %v1673
    %1766 = vmatprep.subr.bf16.mxu0 0
    %1767 = vmatpush1.bf16.msra.mxu0 %v1670
    %1768 = vmatprep.subr.bf16.mxu0 0
    %1769 = vmatpush1.bf16.msra.mxu0 %v1667
    %1770 = vmatprep.subr.bf16.mxu0 0
    %1771 = vmatpush2.bf16.msra.mxu0 0
    %1772 = vmatprep.subr.bf16.mxu0 0
    %1773 = vmatpush2.bf16.msra.mxu0 0
    %1774 = vmatprep.subr.bf16.mxu0 0
    %1775 = vmatpush2.bf16.msra.mxu0 0
    %1776 = vmatprep.subr.bf16.mxu0 0
    %1777 = vmatpush2.bf16.msra.mxu0 0
    %1778 = vmatprep.subr.bf16.mxu0 0
    %1779 = vmatpush2.bf16.msra.mxu0 0
    %1780 = vmatprep.subr.bf16.mxu0 0
    %1781 = vmatpush2.bf16.msra.mxu0 0
    %1782 = vmatprep.subr.bf16.mxu0 0
    %1783 = vmatpush2.bf16.msra.mxu0 0
    %1784 = vmatprep.subr.bf16.mxu0 0
    %1785 = vmatpush2.bf16.msra.mxu0 0
    %1786 = vmatprep.mubr.bf16.mxu0 0
    %1787 = vmatmul.mubr.bf16.gmra.mxu0 %v1552
    %v1788 = vpop.f32.mrf.mxu0
    %v1789 = vadd.f32 %v472, %v1788
    %v1790 = vpop.f32.mrf.mxu0
    %v1791 = vpop.f32.mrf.mxu0
    %v1792 = vpop.f32.mrf.mxu0
    %1793 = vdwg.mxu0
    %v1794 = vadd.f32 %v1549, %v1748
    %v1795 = vxor.u32 %v1794, 2147483648
    %v1796 = vmul.f32 %v1795, 1.442695
    %v1797 = vpow.pop %v1796
    %v1798 = vadd.f32 %v1797, 1.0
    %v1799 = vrcp.pop %v1798
    %v1800 = vmul.f32 1.0, %v1799
    %v1801 = vadd.f32 %v1550, %v1750
    %v1802 = vxor.u32 %v1801, 2147483648
    %v1803 = vmul.f32 %v1802, 1.442695
    %v1804 = vpow.pop %v1803
    %v1805 = vadd.f32 %v1804, 1.0
    %v1806 = vrcp.pop %v1805
    %v1807 = vmul.f32 1.0, %v1806
    %v1808 = vmul.f32 %v1800, %v1789
    %v1809 = vadd.f32 %v1551, %v1808
    %v1810 = vtanh.pop %v1809
    %v1811 = vsub.f32 %v1547, %v1810
    %v1812 = vmul.f32 %v1807, %v1811
    %v1813 = vadd.f32 %v1810, %v1812
    %1814 = vst [vmem:[#allocation3] sm:$0xff] %v1813
    %v1815 = vld [vmem:[#allocation3] sm:$0xff]
    %s1816 = scalar_lea.vmem [#allocation2], 120
    %v1817 = vld [vmem:[%s1816] sm:$0xff]
    %v1818 = vld [vmem:[%s1816 + $0x8] sm:$0xff]
    %v1819 = vld [vmem:[%s1816 + $0x10] sm:$0xff]
    %v1820 = vpack.c.bf16 %v1815, %v1815
    %v1821 = vld [vmem:[#allocation9] sm:$0xff]
    %v1822 = vld [vmem:[#allocation9 + $0x8] sm:$0xf]
    %v1823 = vld [vmem:[#allocation9 + $0xc] sm:$0xff]
    %v1824 = vld [vmem:[#allocation9 + $0x14] sm:$0xf]
    %v1825 = vld [vmem:[#allocation9 + $0x18] sm:$0xff]
    %v1826 = vld [vmem:[#allocation9 + $0x20] sm:$0xf]
    %v1827 = vld [vmem:[#allocation9 + $0x24] sm:$0xff]
    %v1828 = vld [vmem:[#allocation9 + $0x2c] sm:$0xf]
    %v1829 = vld [vmem:[#allocation9 + $0x30] sm:$0xff]
    %v1830 = vld [vmem:[#allocation9 + $0x38] sm:$0xf]
    %v1831 = vld [vmem:[#allocation9 + $0x3c] sm:$0xff]
    %v1832 = vld [vmem:[#allocation9 + $0x44] sm:$0xf]
    %v1833 = vld [vmem:[#allocation9 + $0x48] sm:$0xff]
    %v1834 = vld [vmem:[#allocation9 + $0x50] sm:$0xf]
    %v1835 = vld [vmem:[#allocation9 + $0x54] sm:$0xff]
    %v1836 = vld [vmem:[#allocation9 + $0x5c] sm:$0xf]
    %v1837 = vld [vmem:[#allocation9 + $0x60] sm:$0xff]
    %v1838 = vld [vmem:[#allocation9 + $0x68] sm:$0xf]
    %v1839 = vld [vmem:[#allocation9 + $0x6c] sm:$0xff]
    %v1840 = vld [vmem:[#allocation9 + $0x74] sm:$0xf]
    %v1841 = vld [vmem:[#allocation9 + $0x78] sm:$0xff]
    %v1842 = vld [vmem:[#allocation9 + $0x80] sm:$0xf]
    %v1843 = vld [vmem:[#allocation9 + $0x84] sm:$0xff]
    %v1844 = vld [vmem:[#allocation9 + $0x8c] sm:$0xf]
    %v1845 = vld [vmem:[#allocation9 + $0x90] sm:$0xff]
    %v1846 = vld [vmem:[#allocation9 + $0x98] sm:$0xf]
    %v1847 = vld [vmem:[#allocation9 + $0x9c] sm:$0xff]
    %v1848 = vld [vmem:[#allocation9 + $0xa4] sm:$0xf]
    %v1849 = vld [vmem:[#allocation9 + $0xa8] sm:$0xff]
    %v1850 = vld [vmem:[#allocation9 + $0xb0] sm:$0xf]
    %v1851 = vld [vmem:[#allocation9 + $0xb4] sm:$0xff]
    %v1852 = vld [vmem:[#allocation9 + $0xbc] sm:$0xf]
    %v1885 = vunpack.c.l.b16 %v1821
    %v1886 = vunpack.c.h.b16 %v1821
    %v1887 = vunpack.c.l.b16 %v1822
    %v1888 = vunpack.c.l.b16 %v1823
    %v1889 = vunpack.c.h.b16 %v1823
    %v1890 = vunpack.c.l.b16 %v1824
    %v1891 = vunpack.c.l.b16 %v1825
    %v1892 = vunpack.c.h.b16 %v1825
    %v1893 = vunpack.c.l.b16 %v1826
    %v1894 = vunpack.c.l.b16 %v1827
    %v1895 = vunpack.c.h.b16 %v1827
    %v1896 = vunpack.c.l.b16 %v1828
    %v1897 = vunpack.c.l.b16 %v1829
    %v1898 = vunpack.c.h.b16 %v1829
    %v1899 = vunpack.c.l.b16 %v1830
    %v1900 = vunpack.c.l.b16 %v1831
    %v1901 = vunpack.c.h.b16 %v1831
    %v1902 = vunpack.c.l.b16 %v1832
    %v1903 = vunpack.c.l.b16 %v1833
    %v1904 = vunpack.c.h.b16 %v1833
    %v1905 = vunpack.c.l.b16 %v1834
    %v1906 = vunpack.c.l.b16 %v1835
    %v1907 = vunpack.c.h.b16 %v1835
    %v1908 = vunpack.c.l.b16 %v1836
    %v1909 = vunpack.c.l.b16 %v1837
    %v1910 = vunpack.c.h.b16 %v1837
    %v1911 = vunpack.c.l.b16 %v1838
    %v1912 = vunpack.c.l.b16 %v1839
    %v1913 = vunpack.c.h.b16 %v1839
    %v1914 = vunpack.c.l.b16 %v1840
    %v1915 = vunpack.c.l.b16 %v1841
    %v1916 = vunpack.c.h.b16 %v1841
    %v1917 = vunpack.c.l.b16 %v1842
    %v1918 = vunpack.c.l.b16 %v1843
    %v1919 = vunpack.c.h.b16 %v1843
    %v1920 = vunpack.c.l.b16 %v1844
    %v1921 = vunpack.c.l.b16 %v1845
    %v1922 = vunpack.c.h.b16 %v1845
    %v1923 = vunpack.c.l.b16 %v1846
    %v1924 = vunpack.c.l.b16 %v1847
    %v1925 = vunpack.c.h.b16 %v1847
    %v1926 = vunpack.c.l.b16 %v1848
    %v1927 = vunpack.c.l.b16 %v1849
    %v1928 = vunpack.c.h.b16 %v1849
    %v1929 = vunpack.c.l.b16 %v1850
    %v1930 = vunpack.c.l.b16 %v1851
    %v1931 = vunpack.c.h.b16 %v1851
    %v1932 = vunpack.c.l.b16 %v1852
    %v1933 = vpack.c.b16 %v1888, %v1885
    %v1934 = vpack.c.b16 %v1889, %v1886
    %v1935 = vpack.c.b16 %v1890, %v1887
    %v1936 = vpack.c.b16 %v1894, %v1891
    %v1937 = vpack.c.b16 %v1895, %v1892
    %v1938 = vpack.c.b16 %v1896, %v1893
    %v1939 = vpack.c.b16 %v1900, %v1897
    %v1940 = vpack.c.b16 %v1901, %v1898
    %v1941 = vpack.c.b16 %v1902, %v1899
    %v1942 = vpack.c.b16 %v1906, %v1903
    %v1943 = vpack.c.b16 %v1907, %v1904
    %v1944 = vpack.c.b16 %v1908, %v1905
    %v1945 = vpack.c.b16 %v1912, %v1909
    %v1946 = vpack.c.b16 %v1913, %v1910
    %v1947 = vpack.c.b16 %v1914, %v1911
    %v1948 = vpack.c.b16 %v1918, %v1915
    %v1949 = vpack.c.b16 %v1919, %v1916
    %v1950 = vpack.c.b16 %v1920, %v1917
    %v1951 = vpack.c.b16 %v1924, %v1921
    %v1952 = vpack.c.b16 %v1925, %v1922
    %v1953 = vpack.c.b16 %v1926, %v1923
    %v1954 = vpack.c.b16 %v1930, %v1927
    %v1955 = vpack.c.b16 %v1931, %v1928
    %v1956 = vpack.c.b16 %v1932, %v1929
    %1981 = vmatprep.subr.bf16.mxu0 %v1955
    %1982 = vmatpush1.bf16.msra.mxu0 %v1954
    %1983 = vmatprep.subr.bf16.mxu0 %v1952
    %1984 = vmatpush1.bf16.msra.mxu0 %v1951
    %1985 = vmatprep.subr.bf16.mxu0 %v1949
    %1986 = vmatpush1.bf16.msra.mxu0 %v1948
    %1987 = vmatprep.subr.bf16.mxu0 %v1946
    %1988 = vmatpush1.bf16.msra.mxu0 %v1945
    %1989 = vmatprep.subr.bf16.mxu0 %v1943
    %1990 = vmatpush1.bf16.msra.mxu0 %v1942
    %1991 = vmatprep.subr.bf16.mxu0 %v1940
    %1992 = vmatpush1.bf16.msra.mxu0 %v1939
    %1993 = vmatprep.subr.bf16.mxu0 %v1937
    %1994 = vmatpush1.bf16.msra.mxu0 %v1936
    %1995 = vmatprep.subr.bf16.mxu0 %v1934
    %1996 = vmatpush1.bf16.msra.mxu0 %v1933
    %1997 = vmatprep.subr.bf16.mxu0 0
    %1998 = vmatpush2.bf16.msra.mxu0 0
    %1999 = vmatprep.subr.bf16.mxu0 0
    %2000 = vmatpush2.bf16.msra.mxu0 0
    %2001 = vmatprep.subr.bf16.mxu0 0
    %2002 = vmatpush2.bf16.msra.mxu0 0
    %2003 = vmatprep.subr.bf16.mxu0 0
    %2004 = vmatpush2.bf16.msra.mxu0 0
    %2005 = vmatprep.subr.bf16.mxu0 0
    %2006 = vmatpush2.bf16.msra.mxu0 0
    %2007 = vmatprep.subr.bf16.mxu0 0
    %2008 = vmatpush2.bf16.msra.mxu0 0
    %2009 = vmatprep.subr.bf16.mxu0 0
    %2010 = vmatpush2.bf16.msra.mxu0 0
    %2011 = vmatprep.subr.bf16.mxu0 0
    %2012 = vmatpush2.bf16.msra.mxu0 0
    %2013 = vmatprep.mubr.bf16.mxu0 0
    %2014 = vmatmul.mubr.bf16.gmra.mxu0 %v1820
    %v2015 = vpop.f32.mrf.mxu0
    %v2016 = vadd.f32 %v464, %v2015
    %v2017 = vpop.f32.mrf.mxu0
    %v2018 = vadd.f32 %v468, %v2017
    %v2019 = vpop.f32.mrf.mxu0
    %v2020 = vpop.f32.mrf.mxu0
    %2021 = vdwg.mxu0
    %2022 = vmatprep.subr.bf16.mxu0 0
    %2023 = vmatpush1.bf16.msra.mxu0 %v1956
    %2024 = vmatprep.subr.bf16.mxu0 0
    %2025 = vmatpush1.bf16.msra.mxu0 %v1953
    %2026 = vmatprep.subr.bf16.mxu0 0
    %2027 = vmatpush1.bf16.msra.mxu0 %v1950
    %2028 = vmatprep.subr.bf16.mxu0 0
    %2029 = vmatpush1.bf16.msra.mxu0 %v1947
    %2030 = vmatprep.subr.bf16.mxu0 0
    %2031 = vmatpush1.bf16.msra.mxu0 %v1944
    %2032 = vmatprep.subr.bf16.mxu0 0
    %2033 = vmatpush1.bf16.msra.mxu0 %v1941
    %2034 = vmatprep.subr.bf16.mxu0 0
    %2035 = vmatpush1.bf16.msra.mxu0 %v1938
    %2036 = vmatprep.subr.bf16.mxu0 0
    %2037 = vmatpush1.bf16.msra.mxu0 %v1935
    %2038 = vmatprep.subr.bf16.mxu0 0
    %2039 = vmatpush2.bf16.msra.mxu0 0
    %2040 = vmatprep.subr.bf16.mxu0 0
    %2041 = vmatpush2.bf16.msra.mxu0 0
    %2042 = vmatprep.subr.bf16.mxu0 0
    %2043 = vmatpush2.bf16.msra.mxu0 0
    %2044 = vmatprep.subr.bf16.mxu0 0
    %2045 = vmatpush2.bf16.msra.mxu0 0
    %2046 = vmatprep.subr.bf16.mxu0 0
    %2047 = vmatpush2.bf16.msra.mxu0 0
    %2048 = vmatprep.subr.bf16.mxu0 0
    %2049 = vmatpush2.bf16.msra.mxu0 0
    %2050 = vmatprep.subr.bf16.mxu0 0
    %2051 = vmatpush2.bf16.msra.mxu0 0
    %2052 = vmatprep.subr.bf16.mxu0 0
    %2053 = vmatpush2.bf16.msra.mxu0 0
    %2054 = vmatprep.mubr.bf16.mxu0 0
    %2055 = vmatmul.mubr.bf16.gmra.mxu0 %v1820
    %v2056 = vpop.f32.mrf.mxu0
    %v2057 = vadd.f32 %v472, %v2056
    %v2058 = vpop.f32.mrf.mxu0
    %v2059 = vpop.f32.mrf.mxu0
    %v2060 = vpop.f32.mrf.mxu0
    %2061 = vdwg.mxu0
    %v2062 = vadd.f32 %v1817, %v2016
    %v2063 = vxor.u32 %v2062, 2147483648
    %v2064 = vmul.f32 %v2063, 1.442695
    %v2065 = vpow.pop %v2064
    %v2066 = vadd.f32 %v2065, 1.0
    %v2067 = vrcp.pop %v2066
    %v2068 = vmul.f32 1.0, %v2067
    %v2069 = vadd.f32 %v1818, %v2018
    %v2070 = vxor.u32 %v2069, 2147483648
    %v2071 = vmul.f32 %v2070, 1.442695
    %v2072 = vpow.pop %v2071
    %v2073 = vadd.f32 %v2072, 1.0
    %v2074 = vrcp.pop %v2073
    %v2075 = vmul.f32 1.0, %v2074
    %v2076 = vmul.f32 %v2068, %v2057
    %v2077 = vadd.f32 %v1819, %v2076
    %v2078 = vtanh.pop %v2077
    %v2079 = vsub.f32 %v1815, %v2078
    %v2080 = vmul.f32 %v2075, %v2079
    %v2081 = vadd.f32 %v2078, %v2080
    %2082 = vst [vmem:[#allocation3] sm:$0xff] %v2081
    %v2083 = vld [vmem:[#allocation3] sm:$0xff]
    %s2084 = scalar_lea.vmem [#allocation2], 144
    %v2085 = vld [vmem:[%s2084] sm:$0xff]
    %v2086 = vld [vmem:[%s2084 + $0x8] sm:$0xff]
    %v2087 = vld [vmem:[%s2084 + $0x10] sm:$0xff]
    %v2088 = vpack.c.bf16 %v2083, %v2083
    %v2089 = vld [vmem:[#allocation9] sm:$0xff]
    %v2090 = vld [vmem:[#allocation9 + $0x8] sm:$0xf]
    %v2091 = vld [vmem:[#allocation9 + $0xc] sm:$0xff]
    %v2092 = vld [vmem:[#allocation9 + $0x14] sm:$0xf]
    %v2093 = vld [vmem:[#allocation9 + $0x18] sm:$0xff]
    %v2094 = vld [vmem:[#allocation9 + $0x20] sm:$0xf]
    %v2095 = vld [vmem:[#allocation9 + $0x24] sm:$0xff]
    %v2096 = vld [vmem:[#allocation9 + $0x2c] sm:$0xf]
    %v2097 = vld [vmem:[#allocation9 + $0x30] sm:$0xff]
    %v2098 = vld [vmem:[#allocation9 + $0x38] sm:$0xf]
    %v2099 = vld [vmem:[#allocation9 + $0x3c] sm:$0xff]
    %v2100 = vld [vmem:[#allocation9 + $0x44] sm:$0xf]
    %v2101 = vld [vmem:[#allocation9 + $0x48] sm:$0xff]
    %v2102 = vld [vmem:[#allocation9 + $0x50] sm:$0xf]
    %v2103 = vld [vmem:[#allocation9 + $0x54] sm:$0xff]
    %v2104 = vld [vmem:[#allocation9 + $0x5c] sm:$0xf]
    %v2105 = vld [vmem:[#allocation9 + $0x60] sm:$0xff]
    %v2106 = vld [vmem:[#allocation9 + $0x68] sm:$0xf]
    %v2107 = vld [vmem:[#allocation9 + $0x6c] sm:$0xff]
    %v2108 = vld [vmem:[#allocation9 + $0x74] sm:$0xf]
    %v2109 = vld [vmem:[#allocation9 + $0x78] sm:$0xff]
    %v2110 = vld [vmem:[#allocation9 + $0x80] sm:$0xf]
    %v2111 = vld [vmem:[#allocation9 + $0x84] sm:$0xff]
    %v2112 = vld [vmem:[#allocation9 + $0x8c] sm:$0xf]
    %v2113 = vld [vmem:[#allocation9 + $0x90] sm:$0xff]
    %v2114 = vld [vmem:[#allocation9 + $0x98] sm:$0xf]
    %v2115 = vld [vmem:[#allocation9 + $0x9c] sm:$0xff]
    %v2116 = vld [vmem:[#allocation9 + $0xa4] sm:$0xf]
    %v2117 = vld [vmem:[#allocation9 + $0xa8] sm:$0xff]
    %v2118 = vld [vmem:[#allocation9 + $0xb0] sm:$0xf]
    %v2119 = vld [vmem:[#allocation9 + $0xb4] sm:$0xff]
    %v2120 = vld [vmem:[#allocation9 + $0xbc] sm:$0xf]
    %v2153 = vunpack.c.l.b16 %v2089
    %v2154 = vunpack.c.h.b16 %v2089
    %v2155 = vunpack.c.l.b16 %v2090
    %v2156 = vunpack.c.l.b16 %v2091
    %v2157 = vunpack.c.h.b16 %v2091
    %v2158 = vunpack.c.l.b16 %v2092
    %v2159 = vunpack.c.l.b16 %v2093
    %v2160 = vunpack.c.h.b16 %v2093
    %v2161 = vunpack.c.l.b16 %v2094
    %v2162 = vunpack.c.l.b16 %v2095
    %v2163 = vunpack.c.h.b16 %v2095
    %v2164 = vunpack.c.l.b16 %v2096
    %v2165 = vunpack.c.l.b16 %v2097
    %v2166 = vunpack.c.h.b16 %v2097
    %v2167 = vunpack.c.l.b16 %v2098
    %v2168 = vunpack.c.l.b16 %v2099
    %v2169 = vunpack.c.h.b16 %v2099
    %v2170 = vunpack.c.l.b16 %v2100
    %v2171 = vunpack.c.l.b16 %v2101
    %v2172 = vunpack.c.h.b16 %v2101
    %v2173 = vunpack.c.l.b16 %v2102
    %v2174 = vunpack.c.l.b16 %v2103
    %v2175 = vunpack.c.h.b16 %v2103
    %v2176 = vunpack.c.l.b16 %v2104
    %v2177 = vunpack.c.l.b16 %v2105
    %v2178 = vunpack.c.h.b16 %v2105
    %v2179 = vunpack.c.l.b16 %v2106
    %v2180 = vunpack.c.l.b16 %v2107
    %v2181 = vunpack.c.h.b16 %v2107
    %v2182 = vunpack.c.l.b16 %v2108
    %v2183 = vunpack.c.l.b16 %v2109
    %v2184 = vunpack.c.h.b16 %v2109
    %v2185 = vunpack.c.l.b16 %v2110
    %v2186 = vunpack.c.l.b16 %v2111
    %v2187 = vunpack.c.h.b16 %v2111
    %v2188 = vunpack.c.l.b16 %v2112
    %v2189 = vunpack.c.l.b16 %v2113
    %v2190 = vunpack.c.h.b16 %v2113
    %v2191 = vunpack.c.l.b16 %v2114
    %v2192 = vunpack.c.l.b16 %v2115
    %v2193 = vunpack.c.h.b16 %v2115
    %v2194 = vunpack.c.l.b16 %v2116
    %v2195 = vunpack.c.l.b16 %v2117
    %v2196 = vunpack.c.h.b16 %v2117
    %v2197 = vunpack.c.l.b16 %v2118
    %v2198 = vunpack.c.l.b16 %v2119
    %v2199 = vunpack.c.h.b16 %v2119
    %v2200 = vunpack.c.l.b16 %v2120
    %v2201 = vpack.c.b16 %v2156, %v2153
    %v2202 = vpack.c.b16 %v2157, %v2154
    %v2203 = vpack.c.b16 %v2158, %v2155
    %v2204 = vpack.c.b16 %v2162, %v2159
    %v2205 = vpack.c.b16 %v2163, %v2160
    %v2206 = vpack.c.b16 %v2164, %v2161
    %v2207 = vpack.c.b16 %v2168, %v2165
    %v2208 = vpack.c.b16 %v2169, %v2166
    %v2209 = vpack.c.b16 %v2170, %v2167
    %v2210 = vpack.c.b16 %v2174, %v2171
    %v2211 = vpack.c.b16 %v2175, %v2172
    %v2212 = vpack.c.b16 %v2176, %v2173
    %v2213 = vpack.c.b16 %v2180, %v2177
    %v2214 = vpack.c.b16 %v2181, %v2178
    %v2215 = vpack.c.b16 %v2182, %v2179
    %v2216 = vpack.c.b16 %v2186, %v2183
    %v2217 = vpack.c.b16 %v2187, %v2184
    %v2218 = vpack.c.b16 %v2188, %v2185
    %v2219 = vpack.c.b16 %v2192, %v2189
    %v2220 = vpack.c.b16 %v2193, %v2190
    %v2221 = vpack.c.b16 %v2194, %v2191
    %v2222 = vpack.c.b16 %v2198, %v2195
    %v2223 = vpack.c.b16 %v2199, %v2196
    %v2224 = vpack.c.b16 %v2200, %v2197
    %2249 = vmatprep.subr.bf16.mxu0 %v2223
    %2250 = vmatpush1.bf16.msra.mxu0 %v2222
    %2251 = vmatprep.subr.bf16.mxu0 %v2220
    %2252 = vmatpush1.bf16.msra.mxu0 %v2219
    %2253 = vmatprep.subr.bf16.mxu0 %v2217
    %2254 = vmatpush1.bf16.msra.mxu0 %v2216
    %2255 = vmatprep.subr.bf16.mxu0 %v2214
    %2256 = vmatpush1.bf16.msra.mxu0 %v2213
    %2257 = vmatprep.subr.bf16.mxu0 %v2211
    %2258 = vmatpush1.bf16.msra.mxu0 %v2210
    %2259 = vmatprep.subr.bf16.mxu0 %v2208
    %2260 = vmatpush1.bf16.msra.mxu0 %v2207
    %2261 = vmatprep.subr.bf16.mxu0 %v2205
    %2262 = vmatpush1.bf16.msra.mxu0 %v2204
    %2263 = vmatprep.subr.bf16.mxu0 %v2202
    %2264 = vmatpush1.bf16.msra.mxu0 %v2201
    %2265 = vmatprep.subr.bf16.mxu0 0
    %2266 = vmatpush2.bf16.msra.mxu0 0
    %2267 = vmatprep.subr.bf16.mxu0 0
    %2268 = vmatpush2.bf16.msra.mxu0 0
    %2269 = vmatprep.subr.bf16.mxu0 0
    %2270 = vmatpush2.bf16.msra.mxu0 0
    %2271 = vmatprep.subr.bf16.mxu0 0
    %2272 = vmatpush2.bf16.msra.mxu0 0
    %2273 = vmatprep.subr.bf16.mxu0 0
    %2274 = vmatpush2.bf16.msra.mxu0 0
    %2275 = vmatprep.subr.bf16.mxu0 0
    %2276 = vmatpush2.bf16.msra.mxu0 0
    %2277 = vmatprep.subr.bf16.mxu0 0
    %2278 = vmatpush2.bf16.msra.mxu0 0
    %2279 = vmatprep.subr.bf16.mxu0 0
    %2280 = vmatpush2.bf16.msra.mxu0 0
    %2281 = vmatprep.mubr.bf16.mxu0 0
    %2282 = vmatmul.mubr.bf16.gmra.mxu0 %v2088
    %v2283 = vpop.f32.mrf.mxu0
    %v2284 = vadd.f32 %v464, %v2283
    %v2285 = vpop.f32.mrf.mxu0
    %v2286 = vadd.f32 %v468, %v2285
    %v2287 = vpop.f32.mrf.mxu0
    %v2288 = vpop.f32.mrf.mxu0
    %2289 = vdwg.mxu0
    %2290 = vmatprep.subr.bf16.mxu0 0
    %2291 = vmatpush1.bf16.msra.mxu0 %v2224
    %2292 = vmatprep.subr.bf16.mxu0 0
    %2293 = vmatpush1.bf16.msra.mxu0 %v2221
    %2294 = vmatprep.subr.bf16.mxu0 0
    %2295 = vmatpush1.bf16.msra.mxu0 %v2218
    %2296 = vmatprep.subr.bf16.mxu0 0
    %2297 = vmatpush1.bf16.msra.mxu0 %v2215
    %2298 = vmatprep.subr.bf16.mxu0 0
    %2299 = vmatpush1.bf16.msra.mxu0 %v2212
    %2300 = vmatprep.subr.bf16.mxu0 0
    %2301 = vmatpush1.bf16.msra.mxu0 %v2209
    %2302 = vmatprep.subr.bf16.mxu0 0
    %2303 = vmatpush1.bf16.msra.mxu0 %v2206
    %2304 = vmatprep.subr.bf16.mxu0 0
    %2305 = vmatpush1.bf16.msra.mxu0 %v2203
    %2306 = vmatprep.subr.bf16.mxu0 0
    %2307 = vmatpush2.bf16.msra.mxu0 0
    %2308 = vmatprep.subr.bf16.mxu0 0
    %2309 = vmatpush2.bf16.msra.mxu0 0
    %2310 = vmatprep.subr.bf16.mxu0 0
    %2311 = vmatpush2.bf16.msra.mxu0 0
    %2312 = vmatprep.subr.bf16.mxu0 0
    %2313 = vmatpush2.bf16.msra.mxu0 0
    %2314 = vmatprep.subr.bf16.mxu0 0
    %2315 = vmatpush2.bf16.msra.mxu0 0
    %2316 = vmatprep.subr.bf16.mxu0 0
    %2317 = vmatpush2.bf16.msra.mxu0 0
    %2318 = vmatprep.subr.bf16.mxu0 0
    %2319 = vmatpush2.bf16.msra.mxu0 0
    %2320 = vmatprep.subr.bf16.mxu0 0
    %2321 = vmatpush2.bf16.msra.mxu0 0
    %2322 = vmatprep.mubr.bf16.mxu0 0
    %2323 = vmatmul.mubr.bf16.gmra.mxu0 %v2088
    %v2324 = vpop.f32.mrf.mxu0
    %v2325 = vadd.f32 %v472, %v2324
    %v2326 = vpop.f32.mrf.mxu0
    %v2327 = vpop.f32.mrf.mxu0
    %v2328 = vpop.f32.mrf.mxu0
    %2329 = vdwg.mxu0
    %v2330 = vadd.f32 %v2085, %v2284
    %v2331 = vxor.u32 %v2330, 2147483648
    %v2332 = vmul.f32 %v2331, 1.442695
    %v2333 = vpow.pop %v2332
    %v2334 = vadd.f32 %v2333, 1.0
    %v2335 = vrcp.pop %v2334
    %v2336 = vmul.f32 1.0, %v2335
    %v2337 = vadd.f32 %v2086, %v2286
    %v2338 = vxor.u32 %v2337, 2147483648
    %v2339 = vmul.f32 %v2338, 1.442695
    %v2340 = vpow.pop %v2339
    %v2341 = vadd.f32 %v2340, 1.0
    %v2342 = vrcp.pop %v2341
    %v2343 = vmul.f32 1.0, %v2342
    %v2344 = vmul.f32 %v2336, %v2325
    %v2345 = vadd.f32 %v2087, %v2344
    %v2346 = vtanh.pop %v2345
    %v2347 = vsub.f32 %v2083, %v2346
    %v2348 = vmul.f32 %v2343, %v2347
    %v2349 = vadd.f32 %v2346, %v2348
    %2350 = vst [vmem:[#allocation3] sm:$0xff] %v2349
    %v2351 = vld [vmem:[#allocation3] sm:$0xff]
    %s2352 = scalar_lea.vmem [#allocation2], 168
    %v2353 = vld [vmem:[%s2352] sm:$0xff]
    %v2354 = vld [vmem:[%s2352 + $0x8] sm:$0xff]
    %v2355 = vld [vmem:[%s2352 + $0x10] sm:$0xff]
    %v2356 = vpack.c.bf16 %v2351, %v2351
    %v2357 = vld [vmem:[#allocation9] sm:$0xff]
    %v2358 = vld [vmem:[#allocation9 + $0x8] sm:$0xf]
    %v2359 = vld [vmem:[#allocation9 + $0xc] sm:$0xff]
    %v2360 = vld [vmem:[#allocation9 + $0x14] sm:$0xf]
    %v2361 = vld [vmem:[#allocation9 + $0x18] sm:$0xff]
    %v2362 = vld [vmem:[#allocation9 + $0x20] sm:$0xf]
    %v2363 = vld [vmem:[#allocation9 + $0x24] sm:$0xff]
    %v2364 = vld [vmem:[#allocation9 + $0x2c] sm:$0xf]
    %v2365 = vld [vmem:[#allocation9 + $0x30] sm:$0xff]
    %v2366 = vld [vmem:[#allocation9 + $0x38] sm:$0xf]
    %v2367 = vld [vmem:[#allocation9 + $0x3c] sm:$0xff]
    %v2368 = vld [vmem:[#allocation9 + $0x44] sm:$0xf]
    %v2369 = vld [vmem:[#allocation9 + $0x48] sm:$0xff]
    %v2370 = vld [vmem:[#allocation9 + $0x50] sm:$0xf]
    %v2371 = vld [vmem:[#allocation9 + $0x54] sm:$0xff]
    %v2372 = vld [vmem:[#allocation9 + $0x5c] sm:$0xf]
    %v2373 = vld [vmem:[#allocation9 + $0x60] sm:$0xff]
    %v2374 = vld [vmem:[#allocation9 + $0x68] sm:$0xf]
    %v2375 = vld [vmem:[#allocation9 + $0x6c] sm:$0xff]
    %v2376 = vld [vmem:[#allocation9 + $0x74] sm:$0xf]
    %v2377 = vld [vmem:[#allocation9 + $0x78] sm:$0xff]
    %v2378 = vld [vmem:[#allocation9 + $0x80] sm:$0xf]
    %v2379 = vld [vmem:[#allocation9 + $0x84] sm:$0xff]
    %v2380 = vld [vmem:[#allocation9 + $0x8c] sm:$0xf]
    %v2381 = vld [vmem:[#allocation9 + $0x90] sm:$0xff]
    %v2382 = vld [vmem:[#allocation9 + $0x98] sm:$0xf]
    %v2383 = vld [vmem:[#allocation9 + $0x9c] sm:$0xff]
    %v2384 = vld [vmem:[#allocation9 + $0xa4] sm:$0xf]
    %v2385 = vld [vmem:[#allocation9 + $0xa8] sm:$0xff]
    %v2386 = vld [vmem:[#allocation9 + $0xb0] sm:$0xf]
    %v2387 = vld [vmem:[#allocation9 + $0xb4] sm:$0xff]
    %v2388 = vld [vmem:[#allocation9 + $0xbc] sm:$0xf]
    %v2421 = vunpack.c.l.b16 %v2357
    %v2422 = vunpack.c.h.b16 %v2357
    %v2423 = vunpack.c.l.b16 %v2358
    %v2424 = vunpack.c.l.b16 %v2359
    %v2425 = vunpack.c.h.b16 %v2359
    %v2426 = vunpack.c.l.b16 %v2360
    %v2427 = vunpack.c.l.b16 %v2361
    %v2428 = vunpack.c.h.b16 %v2361
    %v2429 = vunpack.c.l.b16 %v2362
    %v2430 = vunpack.c.l.b16 %v2363
    %v2431 = vunpack.c.h.b16 %v2363
    %v2432 = vunpack.c.l.b16 %v2364
    %v2433 = vunpack.c.l.b16 %v2365
    %v2434 = vunpack.c.h.b16 %v2365
    %v2435 = vunpack.c.l.b16 %v2366
    %v2436 = vunpack.c.l.b16 %v2367
    %v2437 = vunpack.c.h.b16 %v2367
    %v2438 = vunpack.c.l.b16 %v2368
    %v2439 = vunpack.c.l.b16 %v2369
    %v2440 = vunpack.c.h.b16 %v2369
    %v2441 = vunpack.c.l.b16 %v2370
    %v2442 = vunpack.c.l.b16 %v2371
    %v2443 = vunpack.c.h.b16 %v2371
    %v2444 = vunpack.c.l.b16 %v2372
    %v2445 = vunpack.c.l.b16 %v2373
    %v2446 = vunpack.c.h.b16 %v2373
    %v2447 = vunpack.c.l.b16 %v2374
    %v2448 = vunpack.c.l.b16 %v2375
    %v2449 = vunpack.c.h.b16 %v2375
    %v2450 = vunpack.c.l.b16 %v2376
    %v2451 = vunpack.c.l.b16 %v2377
    %v2452 = vunpack.c.h.b16 %v2377
    %v2453 = vunpack.c.l.b16 %v2378
    %v2454 = vunpack.c.l.b16 %v2379
    %v2455 = vunpack.c.h.b16 %v2379
    %v2456 = vunpack.c.l.b16 %v2380
    %v2457 = vunpack.c.l.b16 %v2381
    %v2458 = vunpack.c.h.b16 %v2381
    %v2459 = vunpack.c.l.b16 %v2382
    %v2460 = vunpack.c.l.b16 %v2383
    %v2461 = vunpack.c.h.b16 %v2383
    %v2462 = vunpack.c.l.b16 %v2384
    %v2463 = vunpack.c.l.b16 %v2385
    %v2464 = vunpack.c.h.b16 %v2385
    %v2465 = vunpack.c.l.b16 %v2386
    %v2466 = vunpack.c.l.b16 %v2387
    %v2467 = vunpack.c.h.b16 %v2387
    %v2468 = vunpack.c.l.b16 %v2388
    %v2469 = vpack.c.b16 %v2424, %v2421
    %v2470 = vpack.c.b16 %v2425, %v2422
    %v2471 = vpack.c.b16 %v2426, %v2423
    %v2472 = vpack.c.b16 %v2430, %v2427
    %v2473 = vpack.c.b16 %v2431, %v2428
    %v2474 = vpack.c.b16 %v2432, %v2429
    %v2475 = vpack.c.b16 %v2436, %v2433
    %v2476 = vpack.c.b16 %v2437, %v2434
    %v2477 = vpack.c.b16 %v2438, %v2435
    %v2478 = vpack.c.b16 %v2442, %v2439
    %v2479 = vpack.c.b16 %v2443, %v2440
    %v2480 = vpack.c.b16 %v2444, %v2441
    %v2481 = vpack.c.b16 %v2448, %v2445
    %v2482 = vpack.c.b16 %v2449, %v2446
    %v2483 = vpack.c.b16 %v2450, %v2447
    %v2484 = vpack.c.b16 %v2454, %v2451
    %v2485 = vpack.c.b16 %v2455, %v2452
    %v2486 = vpack.c.b16 %v2456, %v2453
    %v2487 = vpack.c.b16 %v2460, %v2457
    %v2488 = vpack.c.b16 %v2461, %v2458
    %v2489 = vpack.c.b16 %v2462, %v2459
    %v2490 = vpack.c.b16 %v2466, %v2463
    %v2491 = vpack.c.b16 %v2467, %v2464
    %v2492 = vpack.c.b16 %v2468, %v2465
    %2517 = vmatprep.subr.bf16.mxu0 %v2491
    %2518 = vmatpush1.bf16.msra.mxu0 %v2490
    %2519 = vmatprep.subr.bf16.mxu0 %v2488
    %2520 = vmatpush1.bf16.msra.mxu0 %v2487
    %2521 = vmatprep.subr.bf16.mxu0 %v2485
    %2522 = vmatpush1.bf16.msra.mxu0 %v2484
    %2523 = vmatprep.subr.bf16.mxu0 %v2482
    %2524 = vmatpush1.bf16.msra.mxu0 %v2481
    %2525 = vmatprep.subr.bf16.mxu0 %v2479
    %2526 = vmatpush1.bf16.msra.mxu0 %v2478
    %2527 = vmatprep.subr.bf16.mxu0 %v2476
    %2528 = vmatpush1.bf16.msra.mxu0 %v2475
    %2529 = vmatprep.subr.bf16.mxu0 %v2473
    %2530 = vmatpush1.bf16.msra.mxu0 %v2472
    %2531 = vmatprep.subr.bf16.mxu0 %v2470
    %2532 = vmatpush1.bf16.msra.mxu0 %v2469
    %2533 = vmatprep.subr.bf16.mxu0 0
    %2534 = vmatpush2.bf16.msra.mxu0 0
    %2535 = vmatprep.subr.bf16.mxu0 0
    %2536 = vmatpush2.bf16.msra.mxu0 0
    %2537 = vmatprep.subr.bf16.mxu0 0
    %2538 = vmatpush2.bf16.msra.mxu0 0
    %2539 = vmatprep.subr.bf16.mxu0 0
    %2540 = vmatpush2.bf16.msra.mxu0 0
    %2541 = vmatprep.subr.bf16.mxu0 0
    %2542 = vmatpush2.bf16.msra.mxu0 0
    %2543 = vmatprep.subr.bf16.mxu0 0
    %2544 = vmatpush2.bf16.msra.mxu0 0
    %2545 = vmatprep.subr.bf16.mxu0 0
    %2546 = vmatpush2.bf16.msra.mxu0 0
    %2547 = vmatprep.subr.bf16.mxu0 0
    %2548 = vmatpush2.bf16.msra.mxu0 0
    %2549 = vmatprep.mubr.bf16.mxu0 0
    %2550 = vmatmul.mubr.bf16.gmra.mxu0 %v2356
    %v2551 = vpop.f32.mrf.mxu0
    %v2552 = vadd.f32 %v464, %v2551
    %v2553 = vpop.f32.mrf.mxu0
    %v2554 = vadd.f32 %v468, %v2553
    %v2555 = vpop.f32.mrf.mxu0
    %v2556 = vpop.f32.mrf.mxu0
    %2557 = vdwg.mxu0
    %2558 = vmatprep.subr.bf16.mxu0 0
    %2559 = vmatpush1.bf16.msra.mxu0 %v2492
    %2560 = vmatprep.subr.bf16.mxu0 0
    %2561 = vmatpush1.bf16.msra.mxu0 %v2489
    %2562 = vmatprep.subr.bf16.mxu0 0
    %2563 = vmatpush1.bf16.msra.mxu0 %v2486
    %2564 = vmatprep.subr.bf16.mxu0 0
    %2565 = vmatpush1.bf16.msra.mxu0 %v2483
    %2566 = vmatprep.subr.bf16.mxu0 0
    %2567 = vmatpush1.bf16.msra.mxu0 %v2480
    %2568 = vmatprep.subr.bf16.mxu0 0
    %2569 = vmatpush1.bf16.msra.mxu0 %v2477
    %2570 = vmatprep.subr.bf16.mxu0 0
    %2571 = vmatpush1.bf16.msra.mxu0 %v2474
    %2572 = vmatprep.subr.bf16.mxu0 0
    %2573 = vmatpush1.bf16.msra.mxu0 %v2471
    %2574 = vmatprep.subr.bf16.mxu0 0
    %2575 = vmatpush2.bf16.msra.mxu0 0
    %2576 = vmatprep.subr.bf16.mxu0 0
    %2577 = vmatpush2.bf16.msra.mxu0 0
    %2578 = vmatprep.subr.bf16.mxu0 0
    %2579 = vmatpush2.bf16.msra.mxu0 0
    %2580 = vmatprep.subr.bf16.mxu0 0
    %2581 = vmatpush2.bf16.msra.mxu0 0
    %2582 = vmatprep.subr.bf16.mxu0 0
    %2583 = vmatpush2.bf16.msra.mxu0 0
    %2584 = vmatprep.subr.bf16.mxu0 0
    %2585 = vmatpush2.bf16.msra.mxu0 0
    %2586 = vmatprep.subr.bf16.mxu0 0
    %2587 = vmatpush2.bf16.msra.mxu0 0
    %2588 = vmatprep.subr.bf16.mxu0 0
    %2589 = vmatpush2.bf16.msra.mxu0 0
    %2590 = vmatprep.mubr.bf16.mxu0 0
    %2591 = vmatmul.mubr.bf16.gmra.mxu0 %v2356
    %v2592 = vpop.f32.mrf.mxu0
    %v2593 = vadd.f32 %v472, %v2592
    %v2594 = vpop.f32.mrf.mxu0
    %v2595 = vpop.f32.mrf.mxu0
    %v2596 = vpop.f32.mrf.mxu0
    %2597 = vdwg.mxu0
    %v2598 = vadd.f32 %v2353, %v2552
    %v2599 = vxor.u32 %v2598, 2147483648
    %v2600 = vmul.f32 %v2599, 1.442695
    %v2601 = vpow.pop %v2600
    %v2602 = vadd.f32 %v2601, 1.0
    %v2603 = vrcp.pop %v2602
    %v2604 = vmul.f32 1.0, %v2603
    %v2605 = vadd.f32 %v2354, %v2554
    %v2606 = vxor.u32 %v2605, 2147483648
    %v2607 = vmul.f32 %v2606, 1.442695
    %v2608 = vpow.pop %v2607
    %v2609 = vadd.f32 %v2608, 1.0
    %v2610 = vrcp.pop %v2609
    %v2611 = vmul.f32 1.0, %v2610
    %v2612 = vmul.f32 %v2604, %v2593
    %v2613 = vadd.f32 %v2355, %v2612
    %v2614 = vtanh.pop %v2613
    %v2615 = vsub.f32 %v2351, %v2614
    %v2616 = vmul.f32 %v2611, %v2615
    %v2617 = vadd.f32 %v2614, %v2616
    %2618 = vst [vmem:[#allocation3] sm:$0xff] %v2617
    // Predicated region
    $region50: #{tpu_custom_call.1} parent=1 // pred_check
      %p2619 = pneg %p83
    $region51: #{tpu_custom_call.1} parent=1 // pred_check_branch
      %2621 = sbr.rel (%p2619) target = $region53
    $region52: #{tpu_custom_call.1} parent=1 // pred_region
      %v2622 = vld [vmem:[#allocation3] sm:$0xff]
      %v2623 = vpack.c.bf16 %v2622, %v2622
      %v2624 = vld [vmem:[#allocation10] sm:$0xf]
      %v2625 = vld [vmem:[#allocation10 + $0x4] sm:$0xf]
      %v2626 = vld [vmem:[#allocation10 + $0x8] sm:$0xf]
      %v2627 = vld [vmem:[#allocation10 + $0xc] sm:$0xf]
      %v2628 = vld [vmem:[#allocation10 + $0x10] sm:$0xf]
      %v2629 = vld [vmem:[#allocation10 + $0x14] sm:$0xf]
      %v2630 = vld [vmem:[#allocation10 + $0x18] sm:$0xf]
      %v2631 = vld [vmem:[#allocation10 + $0x1c] sm:$0xf]
      %v2632 = vld [vmem:[#allocation10 + $0x20] sm:$0xf]
      %v2633 = vld [vmem:[#allocation10 + $0x24] sm:$0xf]
      %v2634 = vld [vmem:[#allocation10 + $0x28] sm:$0xf]
      %v2635 = vld [vmem:[#allocation10 + $0x2c] sm:$0xf]
      %v2636 = vld [vmem:[#allocation10 + $0x30] sm:$0xf]
      %v2637 = vld [vmem:[#allocation10 + $0x34] sm:$0xf]
      %v2638 = vld [vmem:[#allocation10 + $0x38] sm:$0xf]
      %v2639 = vld [vmem:[#allocation10 + $0x3c] sm:$0xf]
      %v2640 = vld [vmem:[%s6] sm:$0x1]
      %v2642 = vlaneseq
      %v2643 = vshrl.u32 %v2642, 7
      %v2644 = vsub.s32 0, %v2643
      %v2645 = vrot.slane %v2640, %v2644
      %v2663 = vunpack.c.l.b16 %v2624
      %v2664 = vunpack.c.l.b16 %v2625
      %v2665 = vunpack.c.l.b16 %v2626
      %v2666 = vunpack.c.l.b16 %v2627
      %v2667 = vunpack.c.l.b16 %v2628
      %v2668 = vunpack.c.l.b16 %v2629
      %v2669 = vunpack.c.l.b16 %v2630
      %v2670 = vunpack.c.l.b16 %v2631
      %v2671 = vunpack.c.l.b16 %v2632
      %v2672 = vunpack.c.l.b16 %v2633
      %v2673 = vunpack.c.l.b16 %v2634
      %v2674 = vunpack.c.l.b16 %v2635
      %v2675 = vunpack.c.l.b16 %v2636
      %v2676 = vunpack.c.l.b16 %v2637
      %v2677 = vunpack.c.l.b16 %v2638
      %v2678 = vunpack.c.l.b16 %v2639
      %v2679 = vpack.c.b16 %v2664, %v2663
      %v2680 = vpack.c.b16 %v2666, %v2665
      %v2681 = vpack.c.b16 %v2668, %v2667
      %v2682 = vpack.c.b16 %v2670, %v2669
      %v2683 = vpack.c.b16 %v2672, %v2671
      %v2684 = vpack.c.b16 %v2674, %v2673
      %v2685 = vpack.c.b16 %v2676, %v2675
      %v2686 = vpack.c.b16 %v2678, %v2677
      %2695 = vmatprep.subr.bf16.mxu0 0
      %2696 = vmatpush1.bf16.msra.mxu0 %v2686
      %2697 = vmatprep.subr.bf16.mxu0 0
      %2698 = vmatpush1.bf16.msra.mxu0 %v2685
      %2699 = vmatprep.subr.bf16.mxu0 0
      %2700 = vmatpush1.bf16.msra.mxu0 %v2684
      %2701 = vmatprep.subr.bf16.mxu0 0
      %2702 = vmatpush1.bf16.msra.mxu0 %v2683
      %2703 = vmatprep.subr.bf16.mxu0 0
      %2704 = vmatpush1.bf16.msra.mxu0 %v2682
      %2705 = vmatprep.subr.bf16.mxu0 0
      %2706 = vmatpush1.bf16.msra.mxu0 %v2681
      %2707 = vmatprep.subr.bf16.mxu0 0
      %2708 = vmatpush1.bf16.msra.mxu0 %v2680
      %2709 = vmatprep.subr.bf16.mxu0 0
      %2710 = vmatpush1.bf16.msra.mxu0 %v2679
      %2711 = vmatprep.subr.bf16.mxu0 0
      %2712 = vmatpush2.bf16.msra.mxu0 0
      %2713 = vmatprep.subr.bf16.mxu0 0
      %2714 = vmatpush2.bf16.msra.mxu0 0
      %2715 = vmatprep.subr.bf16.mxu0 0
      %2716 = vmatpush2.bf16.msra.mxu0 0
      %2717 = vmatprep.subr.bf16.mxu0 0
      %2718 = vmatpush2.bf16.msra.mxu0 0
      %2719 = vmatprep.subr.bf16.mxu0 0
      %2720 = vmatpush2.bf16.msra.mxu0 0
      %2721 = vmatprep.subr.bf16.mxu0 0
      %2722 = vmatpush2.bf16.msra.mxu0 0
      %2723 = vmatprep.subr.bf16.mxu0 0
      %2724 = vmatpush2.bf16.msra.mxu0 0
      %2725 = vmatprep.subr.bf16.mxu0 0
      %2726 = vmatpush2.bf16.msra.mxu0 0
      %2727 = vmatprep.mubr.bf16.mxu0 0
      %2728 = vmatmul.mubr.bf16.gmra.mxu0 %v2623
      %v2729 = vpop.f32.mrf.mxu0
      %v2730 = vadd.f32 %v2645, %v2729
      %v2731 = vpop.f32.mrf.mxu0
      %v2732 = vpop.f32.mrf.mxu0
      %v2733 = vpop.f32.mrf.mxu0
      %2734 = vdwg.mxu0
      %2735 = vst [vmem:[#allocation12] sm:$0xff] %v2730
    $region53: #{tpu_custom_call.1} parent=1 // pred_fallthru
      _
    // Predicated region
    $region54: #{tpu_custom_call.1} parent=1 // pred_check
      _
    $region55: #{tpu_custom_call.1} parent=1 // pred_check_branch
      %2737 = sbr.rel (0) target = $region57
    $region56: #{tpu_custom_call.1} parent=1 // pred_region
      %s2739 = ssub.s32 128, 128
      %2740 = vsyncadd [#allocation6], %s2739
      %s2742 = sshll.u32 [#allocation12], 4
      %s2743 = int_to_ptr.vmem [resolvable:$true] %s2742
      %2745 = dma.vmem_to_hbm [thread:$0]  %s2743, 128, %s7, [#allocation6]
    $region57: #{tpu_custom_call.1} parent=1 // pred_fallthru
      _
    // Predicated region
    $region58: #{tpu_custom_call.1} parent=1 // pred_check
      _
    $region59: #{tpu_custom_call.1} parent=1 // pred_check_branch
      %2747 = sbr.rel (0) target = $region61
    $region60: #{tpu_custom_call.1} parent=1 // pred_region
      %2748 = dma.done [#allocation6], 128
    $region61: #{tpu_custom_call.1} parent=1 // pred_fallthru
      _
    %2749 = vsyncpa [#allocation5], 1
    %2750 = vsyncpa [#allocation8], 1
    %2751 = vsyncpa [#allocation11], 1
    %2752 = vsyncpa [#allocation6], 1

// kernel: tpu_custom_call.1
$region0: #{tpu_custom_call.1}
  #allocation0 [shape = 'u32[]', space=smem, size = 0x4, offset = 0x4, fixed_abs, tag = 'smem constant byte address 0x4 - core index']
  #allocation1 [shape = 'u32[144,128]{1,0:T(1,128)}', space=vmem, size = 0x12000, scoped, tag = 'internal scratch']
  #allocation2 [shape = 'f32[8,8,384]{2,1,0:T(8,128)}', space=vmem, size = 0x18000, scoped, tag = 'scratch operand']
  #allocation3 [shape = 'f32[8,128]{1,0:T(8,128)}', space=vmem, size = 0x1000, scoped, tag = 'scratch operand']
  %s0 = inlined_call_operand.hbm [shape: bf16[8,8,128], index: 0, kind: input, shape index: {}]
  %s1 = inlined_call_operand.hbm [shape: bf16[128,384], index: 1, kind: input, shape index: {}]
  %s2 = inlined_call_operand.hbm [shape: bf16[128,384], index: 2, kind: input, shape index: {}]
  %s3 = inlined_call_operand.vmem [shape: f32[1,384], index: 3, kind: input, shape index: {}]
  %s4 = inlined_call_operand.vmem [shape: f32[1,384], index: 4, kind: input, shape index: {}]
  %s5 = inlined_call_operand.hbm [shape: bf16[128,128], index: 5, kind: input, shape index: {}]
  %s6 = inlined_call_operand.vmem [shape: f32[1,128], index: 6, kind: input, shape index: {}]
  %s7 = inlined_call_operand.hbm [shape: f32[8,128], index: 7, kind: output, shape index: {}]
  %s8 = sld [smem:[#allocation0]]
  $region62: #{tpu_custom_call.1} parent=0
    _
  %s10 = ssub.s32 1, %s8
  %s11 = scalar_select 0, %s10, %s8
  $region1: #{tpu_custom_call.1} parent=0
    #allocation4 [shape = 'u8[16384]{0}', space=vmem, size = 0x4000, scoped, tag = 'input window, operand 0, single buffered']
    #allocation5 [shape = 's32[1]{0}', space=sflag, size = 0x4, scoped, tag = 'scoped memory for tpu_custom_call.1']
    #allocation6 [shape = 's32[1]{0}', space=sflag, size = 0x4, scoped, tag = 'scoped memory for tpu_custom_call.1']
    #allocation7 [shape = 'u8[98304]{0}', space=vmem, size = 0x18000, scoped, tag = 'input window, operand 1, single buffered']
    #allocation8 [shape = 's32[1]{0}', space=sflag, size = 0x4, scoped, tag = 'scoped memory for tpu_custom_call.1']
    #allocation9 [shape = 'u8[98304]{0}', space=vmem, size = 0x18000, scoped, tag = 'input window, operand 2, single buffered']
    #allocation10 [shape = 'u8[32768]{0}', space=vmem, size = 0x8000, scoped, tag = 'input window, operand 5, single buffered']
    #allocation11 [shape = 's32[1]{0}', space=sflag, size = 0x4, scoped, tag = 'scoped memory for tpu_custom_call.1']
    #allocation12 [shape = 'u8[4096]{0}', space=vmem, size = 0x1000, scoped, tag = 'output window, operand 0, single buffered']
    %12 = vsyncpa [#allocation5], 0
    %13 = vsyncpa [#allocation8], 0
    %14 = vsyncpa [#allocation11], 0
    %15 = vsyncpa [#allocation6], 0
    // Predicated region
    $region2: #{tpu_custom_call.1} parent=1 // pred_check
      _
    $region3: #{tpu_custom_call.1} parent=1 // pred_check_branch
      %17 = sbr.rel (0) target = $region5
    $region4: #{tpu_custom_call.1} parent=1 // pred_region
      %s19 = ssub.s32 512, 512
      %20 = vsyncadd [#allocation5], %s19
      %s21 = sshll.u32 [#allocation4], 4
      %s22 = int_to_ptr.vmem [resolvable:$true] %s21
      %27 = dma.hbm_to_vmem [thread:$0]  %s0, 512, %s22, [#allocation5], 64, 64, 4
    $region5: #{tpu_custom_call.1} parent=1 // pred_fallthru
      _
    // Predicated region
    $region6: #{tpu_custom_call.1} parent=1 // pred_check
      _
    $region7: #{tpu_custom_call.1} parent=1 // pred_check_branch
      %29 = sbr.rel (0) target = $region9
    $region8: #{tpu_custom_call.1} parent=1 // pred_region
      %s31 = ssub.s32 3072, 3072
      %32 = vsyncadd [#allocation8], %s31
      %s33 = sshll.u32 [#allocation7], 4
      %s34 = int_to_ptr.vmem [resolvable:$true] %s33
      %39 = dma.hbm_to_vmem [thread:$0]  %s1, 3072, %s34, [#allocation8], 192, 192, 12
    $region9: #{tpu_custom_call.1} parent=1 // pred_fallthru
      _
    // Predicated region
    $region10: #{tpu_custom_call.1} parent=1 // pred_check
      _
    $region11: #{tpu_custom_call.1} parent=1 // pred_check_branch
      %41 = sbr.rel (0) target = $region13
    $region12: #{tpu_custom_call.1} parent=1 // pred_region
      %s43 = ssub.s32 3072, 3072
      %44 = vsyncadd [#allocation8], %s43
      %s45 = sshll.u32 [#allocation9], 4
      %s46 = int_to_ptr.vmem [resolvable:$true] %s45
      %51 = dma.hbm_to_vmem [thread:$0]  %s2, 3072, %s46, [#allocation8], 192, 192, 12
    $region13: #{tpu_custom_call.1} parent=1 // pred_fallthru
      _
    // Predicated region
    $region14: #{tpu_custom_call.1} parent=1 // pred_check
      _
    $region15: #{tpu_custom_call.1} parent=1 // pred_check_branch
      %53 = sbr.rel (0) target = $region17
    $region16: #{tpu_custom_call.1} parent=1 // pred_region
      _
    $region17: #{tpu_custom_call.1} parent=1 // pred_fallthru
      _
    // Predicated region
    $region18: #{tpu_custom_call.1} parent=1 // pred_check
      _
    $region19: #{tpu_custom_call.1} parent=1 // pred_check_branch
      %55 = sbr.rel (0) target = $region21
    $region20: #{tpu_custom_call.1} parent=1 // pred_region
      _
    $region21: #{tpu_custom_call.1} parent=1 // pred_fallthru
      _
    // Predicated region
    $region22: #{tpu_custom_call.1} parent=1 // pred_check
      _
    $region23: #{tpu_custom_call.1} parent=1 // pred_check_branch
      %57 = sbr.rel (0) target = $region25
    $region24: #{tpu_custom_call.1} parent=1 // pred_region
      %s59 = ssub.s32 1024, 1024
      %60 = vsyncadd [#allocation11], %s59
      %s61 = sshll.u32 [#allocation10], 4
      %s62 = int_to_ptr.vmem [resolvable:$true] %s61
      %67 = dma.hbm_to_vmem [thread:$0]  %s5, 1024, %s62, [#allocation11], 64, 64, 4
    $region25: #{tpu_custom_call.1} parent=1 // pred_fallthru
      _
    // Predicated region
    $region26: #{tpu_custom_call.1} parent=1 // pred_check
      _
    $region27: #{tpu_custom_call.1} parent=1 // pred_check_branch
      %69 = sbr.rel (0) target = $region29
    $region28: #{tpu_custom_call.1} parent=1 // pred_region
      _
    $region29: #{tpu_custom_call.1} parent=1 // pred_fallthru
      _
    // Predicated region
    $region30: #{tpu_custom_call.1} parent=1 // pred_check
      _
    $region31: #{tpu_custom_call.1} parent=1 // pred_check_branch
      %71 = sbr.rel (0) target = $region33
    $region32: #{tpu_custom_call.1} parent=1 // pred_region
      %72 = dma.done [#allocation5], 512
    $region33: #{tpu_custom_call.1} parent=1 // pred_fallthru
      _
    // Predicated region
    $region34: #{tpu_custom_call.1} parent=1 // pred_check
      _
    $region35: #{tpu_custom_call.1} parent=1 // pred_check_branch
      %74 = sbr.rel (0) target = $region37
    $region36: #{tpu_custom_call.1} parent=1 // pred_region
      %75 = dma.done [#allocation8], 3072
    $region37: #{tpu_custom_call.1} parent=1 // pred_fallthru
      _
    // Predicated region
    $region38: #{tpu_custom_call.1} parent=1 // pred_check
      _
    $region39: #{tpu_custom_call.1} parent=1 // pred_check_branch
      %77 = sbr.rel (0) target = $region41
    $region40: #{tpu_custom_call.1} parent=1 // pred_region
      %78 = dma.done [#allocation8], 3072
    $region41: #{tpu_custom_call.1} parent=1 // pred_fallthru
      _
    // Predicated region
    $region42: #{tpu_custom_call.1} parent=1 // pred_check
      _
    $region43: #{tpu_custom_call.1} parent=1 // pred_check_branch
      %80 = sbr.rel (0) target = $region45
    $region44: #{tpu_custom_call.1} parent=1 // pred_region
      %81 = dma.done [#allocation11], 1024
    $region45: #{tpu_custom_call.1} parent=1 // pred_fallthru
      _
    %p83 = scmp.eq.s32.totalorder 0, 0
    // Predicated region
    $region46: #{tpu_custom_call.1} parent=1 // pred_check
      %p84 = pneg %p83
    $region47: #{tpu_custom_call.1} parent=1 // pred_check_branch
      %86 = sbr.rel (%p84) target = $region49
    $region48: #{tpu_custom_call.1} parent=1 // pred_region
      %87 = vst [vmem:[#allocation3] sm:$0xff] 0.0
    $region49: #{tpu_custom_call.1} parent=1 // pred_fallthru
      _
    %v88 = vld [vmem:[#allocation4] sm:$0xf]
    %v89 = vld [vmem:[#allocation4 + $0x4] sm:$0xf]
    %v90 = vld [vmem:[#allocation4 + $0x8] sm:$0xf]
    %v91 = vld [vmem:[#allocation4 + $0xc] sm:$0xf]
    %v92 = vld [vmem:[#allocation4 + $0x10] sm:$0xf]
    %v93 = vld [vmem:[#allocation4 + $0x14] sm:$0xf]
    %v94 = vld [vmem:[#allocation4 + $0x18] sm:$0xf]
    %v95 = vld [vmem:[#allocation4 + $0x1c] sm:$0xf]
    %v96 = vld [vmem:[#allocation7] sm:$0xff]
    %v97 = vld [vmem:[#allocation7 + $0x8] sm:$0xf]
    %v98 = vld [vmem:[#allocation7 + $0xc] sm:$0xff]
    %v99 = vld [vmem:[#allocation7 + $0x14] sm:$0xf]
    %v100 = vld [vmem:[#allocation7 + $0x18] sm:$0xff]
    %v101 = vld [vmem:[#allocation7 + $0x20] sm:$0xf]
    %v102 = vld [vmem:[#allocation7 + $0x24] sm:$0xff]
    %v103 = vld [vmem:[#allocation7 + $0x2c] sm:$0xf]
    %v104 = vld [vmem:[#allocation7 + $0x30] sm:$0xff]
    %v105 = vld [vmem:[#allocation7 + $0x38] sm:$0xf]
    %v106 = vld [vmem:[#allocation7 + $0x3c] sm:$0xff]
    %v107 = vld [vmem:[#allocation7 + $0x44] sm:$0xf]
    %v108 = vld [vmem:[#allocation7 + $0x48] sm:$0xff]
    %v109 = vld [vmem:[#allocation7 + $0x50] sm:$0xf]
    %v110 = vld [vmem:[#allocation7 + $0x54] sm:$0xff]
    %v111 = vld [vmem:[#allocation7 + $0x5c] sm:$0xf]
    %v112 = vld [vmem:[#allocation7 + $0x60] sm:$0xff]
    %v113 = vld [vmem:[#allocation7 + $0x68] sm:$0xf]
    %v114 = vld [vmem:[#allocation7 + $0x6c] sm:$0xff]
    %v115 = vld [vmem:[#allocation7 + $0x74] sm:$0xf]
    %v116 = vld [vmem:[#allocation7 + $0x78] sm:$0xff]
    %v117 = vld [vmem:[#allocation7 + $0x80] sm:$0xf]
    %v118 = vld [vmem:[#allocation7 + $0x84] sm:$0xff]
    %v119 = vld [vmem:[#allocation7 + $0x8c] sm:$0xf]
    %v120 = vld [vmem:[#allocation7 + $0x90] sm:$0xff]
    %v121 = vld [vmem:[#allocation7 + $0x98] sm:$0xf]
    %v122 = vld [vmem:[#allocation7 + $0x9c] sm:$0xff]
    %v123 = vld [vmem:[#allocation7 + $0xa4] sm:$0xf]
    %v124 = vld [vmem:[#allocation7 + $0xa8] sm:$0xff]
    %v125 = vld [vmem:[#allocation7 + $0xb0] sm:$0xf]
    %v126 = vld [vmem:[#allocation7 + $0xb4] sm:$0xff]
    %v127 = vld [vmem:[#allocation7 + $0xbc] sm:$0xf]
    %v128 = vld [vmem:[%s3] sm:$0x7]
    %v130 = vlaneseq
    %v131 = vshrl.u32 %v130, 7
    %v132 = vsub.s32 0, %v131
    %v133 = vrot.slane %v128, %v132
    %v134 = vlaneseq
    %v135 = vshrl.u32 %v134, 7
    %v136 = vsub.s32 1, %v135
    %v137 = vrot.slane %v128, %v136
    %v138 = vlaneseq
    %v139 = vshrl.u32 %v138, 7
    %v140 = vsub.s32 2, %v139
    %v141 = vrot.slane %v128, %v140
    %v153 = vunpack.c.l.b16 %v88
    %v154 = vunpack.c.l.b16 %v89
    %v155 = vunpack.c.l.b16 %v90
    %v156 = vunpack.c.l.b16 %v91
    %v157 = vunpack.c.l.b16 %v92
    %v158 = vunpack.c.l.b16 %v93
    %v159 = vunpack.c.l.b16 %v94
    %v160 = vunpack.c.l.b16 %v95
    %v161 = vpack.c.b16 %v154, %v153
    %v162 = vpack.c.b16 %v156, %v155
    %v163 = vpack.c.b16 %v158, %v157
    %v164 = vpack.c.b16 %v160, %v159
    %v201 = vunpack.c.l.b16 %v96
    %v202 = vunpack.c.h.b16 %v96
    %v203 = vunpack.c.l.b16 %v97
    %v204 = vunpack.c.l.b16 %v98
    %v205 = vunpack.c.h.b16 %v98
    %v206 = vunpack.c.l.b16 %v99
    %v207 = vunpack.c.l.b16 %v100
    %v208 = vunpack.c.h.b16 %v100
    %v209 = vunpack.c.l.b16 %v101
    %v210 = vunpack.c.l.b16 %v102
    %v211 = vunpack.c.h.b16 %v102
    %v212 = vunpack.c.l.b16 %v103
    %v213 = vunpack.c.l.b16 %v104
    %v214 = vunpack.c.h.b16 %v104
    %v215 = vunpack.c.l.b16 %v105
    %v216 = vunpack.c.l.b16 %v106
    %v217 = vunpack.c.h.b16 %v106
    %v218 = vunpack.c.l.b16 %v107
    %v219 = vunpack.c.l.b16 %v108
    %v220 = vunpack.c.h.b16 %v108
    %v221 = vunpack.c.l.b16 %v109
    %v222 = vunpack.c.l.b16 %v110
    %v223 = vunpack.c.h.b16 %v110
    %v224 = vunpack.c.l.b16 %v111
    %v225 = vunpack.c.l.b16 %v112
    %v226 = vunpack.c.h.b16 %v112
    %v227 = vunpack.c.l.b16 %v113
    %v228 = vunpack.c.l.b16 %v114
    %v229 = vunpack.c.h.b16 %v114
    %v230 = vunpack.c.l.b16 %v115
    %v231 = vunpack.c.l.b16 %v116
    %v232 = vunpack.c.h.b16 %v116
    %v233 = vunpack.c.l.b16 %v117
    %v234 = vunpack.c.l.b16 %v118
    %v235 = vunpack.c.h.b16 %v118
    %v236 = vunpack.c.l.b16 %v119
    %v237 = vunpack.c.l.b16 %v120
    %v238 = vunpack.c.h.b16 %v120
    %v239 = vunpack.c.l.b16 %v121
    %v240 = vunpack.c.l.b16 %v122
    %v241 = vunpack.c.h.b16 %v122
    %v242 = vunpack.c.l.b16 %v123
    %v243 = vunpack.c.l.b16 %v124
    %v244 = vunpack.c.h.b16 %v124
    %v245 = vunpack.c.l.b16 %v125
    %v246 = vunpack.c.l.b16 %v126
    %v247 = vunpack.c.h.b16 %v126
    %v248 = vunpack.c.l.b16 %v127
    %v249 = vpack.c.b16 %v204, %v201
    %v250 = vpack.c.b16 %v205, %v202
    %v251 = vpack.c.b16 %v206, %v203
    %v252 = vpack.c.b16 %v210, %v207
    %v253 = vpack.c.b16 %v211, %v208
    %v254 = vpack.c.b16 %v212, %v209
    %v255 = vpack.c.b16 %v216, %v213
    %v256 = vpack.c.b16 %v217, %v214
    %v257 = vpack.c.b16 %v218, %v215
    %v258 = vpack.c.b16 %v222, %v219
    %v259 = vpack.c.b16 %v223, %v220
    %v260 = vpack.c.b16 %v224, %v221
    %v261 = vpack.c.b16 %v228, %v225
    %v262 = vpack.c.b16 %v229, %v226
    %v263 = vpack.c.b16 %v230, %v227
    %v264 = vpack.c.b16 %v234, %v231
    %v265 = vpack.c.b16 %v235, %v232
    %v266 = vpack.c.b16 %v236, %v233
    %v267 = vpack.c.b16 %v240, %v237
    %v268 = vpack.c.b16 %v241, %v238
    %v269 = vpack.c.b16 %v242, %v239
    %v270 = vpack.c.b16 %v246, %v243
    %v271 = vpack.c.b16 %v247, %v244
    %v272 = vpack.c.b16 %v248, %v245
    %297 = vmatprep.subr.bf16.mxu0 %v271
    %298 = vmatpush1.bf16.msra.mxu0 %v270
    %299 = vmatprep.subr.bf16.mxu0 %v268
    %300 = vmatpush1.bf16.msra.mxu0 %v267
    %301 = vmatprep.subr.bf16.mxu0 %v265
    %302 = vmatpush1.bf16.msra.mxu0 %v264
    %303 = vmatprep.subr.bf16.mxu0 %v262
    %304 = vmatpush1.bf16.msra.mxu0 %v261
    %305 = vmatprep.subr.bf16.mxu0 %v259
    %306 = vmatpush1.bf16.msra.mxu0 %v258
    %307 = vmatprep.subr.bf16.mxu0 %v256
    %308 = vmatpush1.bf16.msra.mxu0 %v255
    %309 = vmatprep.subr.bf16.mxu0 %v253
    %310 = vmatpush1.bf16.msra.mxu0 %v252
    %311 = vmatprep.subr.bf16.mxu0 %v250
    %312 = vmatpush1.bf16.msra.mxu0 %v249
    %313 = vmatprep.subr.bf16.mxu0 0
    %314 = vmatpush2.bf16.msra.mxu0 0
    %315 = vmatprep.subr.bf16.mxu0 0
    %316 = vmatpush2.bf16.msra.mxu0 0
    %317 = vmatprep.subr.bf16.mxu0 0
    %318 = vmatpush2.bf16.msra.mxu0 0
    %319 = vmatprep.subr.bf16.mxu0 0
    %320 = vmatpush2.bf16.msra.mxu0 0
    %321 = vmatprep.subr.bf16.mxu0 0
    %322 = vmatpush2.bf16.msra.mxu0 0
    %323 = vmatprep.subr.bf16.mxu0 0
    %324 = vmatpush2.bf16.msra.mxu0 0
    %325 = vmatprep.subr.bf16.mxu0 0
    %326 = vmatpush2.bf16.msra.mxu0 0
    %327 = vmatprep.subr.bf16.mxu0 0
    %328 = vmatpush2.bf16.msra.mxu0 0
    %329 = vmatprep.mubr.bf16.mxu0 0
    %330 = vmatmul.mubr.bf16.gmra.mxu0 %v161
    %v331 = vpop.f32.mrf.mxu0
    %v332 = vadd.f32 %v133, %v331
    %v333 = vpop.f32.mrf.mxu0
    %v334 = vadd.f32 %v137, %v333
    %v335 = vpop.f32.mrf.mxu0
    %v336 = vadd.f32 %v133, %v335
    %v337 = vpop.f32.mrf.mxu0
    %v338 = vadd.f32 %v137, %v337
    %339 = vmatprep.mubr.bf16.mxu0 0
    %340 = vmatmul.mubr.bf16.gmra.mxu0 %v162
    %v341 = vpop.f32.mrf.mxu0
    %v342 = vadd.f32 %v133, %v341
    %v343 = vpop.f32.mrf.mxu0
    %v344 = vadd.f32 %v137, %v343
    %v345 = vpop.f32.mrf.mxu0
    %v346 = vadd.f32 %v133, %v345
    %v347 = vpop.f32.mrf.mxu0
    %v348 = vadd.f32 %v137, %v347
    %349 = vmatprep.mubr.bf16.mxu0 0
    %350 = vmatmul.mubr.bf16.gmra.mxu0 %v163
    %v351 = vpop.f32.mrf.mxu0
    %v352 = vadd.f32 %v133, %v351
    %v353 = vpop.f32.mrf.mxu0
    %v354 = vadd.f32 %v137, %v353
    %v355 = vpop.f32.mrf.mxu0
    %v356 = vadd.f32 %v133, %v355
    %v357 = vpop.f32.mrf.mxu0
    %v358 = vadd.f32 %v137, %v357
    %359 = vmatprep.mubr.bf16.mxu0 0
    %360 = vmatmul.mubr.bf16.gmra.mxu0 %v164
    %v361 = vpop.f32.mrf.mxu0
    %v362 = vadd.f32 %v133, %v361
    %v363 = vpop.f32.mrf.mxu0
    %v364 = vadd.f32 %v137, %v363
    %v365 = vpop.f32.mrf.mxu0
    %v366 = vadd.f32 %v133, %v365
    %v367 = vpop.f32.mrf.mxu0
    %v368 = vadd.f32 %v137, %v367
    %369 = vdwg.mxu0
    %370 = vmatprep.subr.bf16.mxu0 0
    %371 = vmatpush1.bf16.msra.mxu0 %v272
    %372 = vmatprep.subr.bf16.mxu0 0
    %373 = vmatpush1.bf16.msra.mxu0 %v269
    %374 = vmatprep.subr.bf16.mxu0 0
    %375 = vmatpush1.bf16.msra.mxu0 %v266
    %376 = vmatprep.subr.bf16.mxu0 0
    %377 = vmatpush1.bf16.msra.mxu0 %v263
    %378 = vmatprep.subr.bf16.mxu0 0
    %379 = vmatpush1.bf16.msra.mxu0 %v260
    %380 = vmatprep.subr.bf16.mxu0 0
    %381 = vmatpush1.bf16.msra.mxu0 %v257
    %382 = vmatprep.subr.bf16.mxu0 0
    %383 = vmatpush1.bf16.msra.mxu0 %v254
    %384 = vmatprep.subr.bf16.mxu0 0
    %385 = vmatpush1.bf16.msra.mxu0 %v251
    %386 = vmatprep.subr.bf16.mxu0 0
    %387 = vmatpush2.bf16.msra.mxu0 0
    %388 = vmatprep.subr.bf16.mxu0 0
    %389 = vmatpush2.bf16.msra.mxu0 0
    %390 = vmatprep.subr.bf16.mxu0 0
    %391 = vmatpush2.bf16.msra.mxu0 0
    %392 = vmatprep.subr.bf16.mxu0 0
    %393 = vmatpush2.bf16.msra.mxu0 0
    %394 = vmatprep.subr.bf16.mxu0 0
    %395 = vmatpush2.bf16.msra.mxu0 0
    %396 = vmatprep.subr.bf16.mxu0 0
    %397 = vmatpush2.bf16.msra.mxu0 0
    %398 = vmatprep.subr.bf16.mxu0 0
    %399 = vmatpush2.bf16.msra.mxu0 0
    %400 = vmatprep.subr.bf16.mxu0 0
    %401 = vmatpush2.bf16.msra.mxu0 0
    %402 = vmatprep.mubr.bf16.mxu0 0
    %403 = vmatmul.mubr.bf16.gmra.mxu0 %v161
    %v404 = vpop.f32.mrf.mxu0
    %v405 = vadd.f32 %v141, %v404
    %v406 = vpop.f32.mrf.mxu0
    %v407 = vpop.f32.mrf.mxu0
    %v408 = vadd.f32 %v141, %v407
    %v409 = vpop.f32.mrf.mxu0
    %410 = vmatprep.mubr.bf16.mxu0 0
    %411 = vmatmul.mubr.bf16.gmra.mxu0 %v162
    %v412 = vpop.f32.mrf.mxu0
    %v413 = vadd.f32 %v141, %v412
    %v414 = vpop.f32.mrf.mxu0
    %v415 = vpop.f32.mrf.mxu0
    %v416 = vadd.f32 %v141, %v415
    %v417 = vpop.f32.mrf.mxu0
    %418 = vmatprep.mubr.bf16.mxu0 0
    %419 = vmatmul.mubr.bf16.gmra.mxu0 %v163
    %v420 = vpop.f32.mrf.mxu0
    %v421 = vadd.f32 %v141, %v420
    %v422 = vpop.f32.mrf.mxu0
    %v423 = vpop.f32.mrf.mxu0
    %v424 = vadd.f32 %v141, %v423
    %v425 = vpop.f32.mrf.mxu0
    %426 = vmatprep.mubr.bf16.mxu0 0
    %427 = vmatmul.mubr.bf16.gmra.mxu0 %v164
    %v428 = vpop.f32.mrf.mxu0
    %v429 = vadd.f32 %v141, %v428
    %v430 = vpop.f32.mrf.mxu0
    %v431 = vpop.f32.mrf.mxu0
    %v432 = vadd.f32 %v141, %v431
    %v433 = vpop.f32.mrf.mxu0
    %434 = vdwg.mxu0
    %435 = vst [vmem:[#allocation2] sm:$0xff] %v332
    %436 = vst [vmem:[#allocation2 + $0x8] sm:$0xff] %v334
    %437 = vst [vmem:[#allocation2 + $0x10] sm:$0xff] %v405
    %438 = vst [vmem:[#allocation2 + $0x18] sm:$0xff] %v336
    %439 = vst [vmem:[#allocation2 + $0x20] sm:$0xff] %v338
    %440 = vst [vmem:[#allocation2 + $0x28] sm:$0xff] %v408
    %441 = vst [vmem:[#allocation2 + $0x30] sm:$0xff] %v342
    %442 = vst [vmem:[#allocation2 + $0x38] sm:$0xff] %v344
    %443 = vst [vmem:[#allocation2 + $0x40] sm:$0xff] %v413
    %444 = vst [vmem:[#allocation2 + $0x48] sm:$0xff] %v346
    %445 = vst [vmem:[#allocation2 + $0x50] sm:$0xff] %v348
    %446 = vst [vmem:[#allocation2 + $0x58] sm:$0xff] %v416
    %447 = vst [vmem:[#allocation2 + $0x60] sm:$0xff] %v352
    %448 = vst [vmem:[#allocation2 + $0x68] sm:$0xff] %v354
    %449 = vst [vmem:[#allocation2 + $0x70] sm:$0xff] %v421
    %450 = vst [vmem:[#allocation2 + $0x78] sm:$0xff] %v356
    %451 = vst [vmem:[#allocation2 + $0x80] sm:$0xff] %v358
    %452 = vst [vmem:[#allocation2 + $0x88] sm:$0xff] %v424
    %453 = vst [vmem:[#allocation2 + $0x90] sm:$0xff] %v362
    %454 = vst [vmem:[#allocation2 + $0x98] sm:$0xff] %v364
    %455 = vst [vmem:[#allocation2 + $0xa0] sm:$0xff] %v429
    %456 = vst [vmem:[#allocation2 + $0xa8] sm:$0xff] %v366
    %457 = vst [vmem:[#allocation2 + $0xb0] sm:$0xff] %v368
    %458 = vst [vmem:[#allocation2 + $0xb8] sm:$0xff] %v432
    %v459 = vld [vmem:[%s4] sm:$0x7]
    %v461 = vlaneseq
    %v462 = vshrl.u32 %v461, 7
    %v463 = vsub.s32 0, %v462
    %v464 = vrot.slane %v459, %v463
    %v465 = vlaneseq
    %v466 = vshrl.u32 %v465, 7
    %v467 = vsub.s32 1, %v466
    %v468 = vrot.slane %v459, %v467
    %v469 = vlaneseq
    %v470 = vshrl.u32 %v469, 7
    %v471 = vsub.s32 2, %v470
    %v472 = vrot.slane %v459, %v471
    %v476 = vld [vmem:[#allocation3] sm:$0xff]
    %v477 = vld [vmem:[#allocation2] sm:$0xff]
    %v478 = vld [vmem:[#allocation2 + $0x8] sm:$0xff]
    %v479 = vld [vmem:[#allocation2 + $0x10] sm:$0xff]
    %v480 = vpack.c.bf16 %v476, %v476
    %v481 = vld [vmem:[#allocation9] sm:$0xff]
    %v482 = vld [vmem:[#allocation9 + $0x8] sm:$0xf]
    %v483 = vld [vmem:[#allocation9 + $0xc] sm:$0xff]
    %v484 = vld [vmem:[#allocation9 + $0x14] sm:$0xf]
    %v485 = vld [vmem:[#allocation9 + $0x18] sm:$0xff]
    %v486 = vld [vmem:[#allocation9 + $0x20] sm:$0xf]
    %v487 = vld [vmem:[#allocation9 + $0x24] sm:$0xff]
    %v488 = vld [vmem:[#allocation9 + $0x2c] sm:$0xf]
    %v489 = vld [vmem:[#allocation9 + $0x30] sm:$0xff]
    %v490 = vld [vmem:[#allocation9 + $0x38] sm:$0xf]
    %v491 = vld [vmem:[#allocation9 + $0x3c] sm:$0xff]
    %v492 = vld [vmem:[#allocation9 + $0x44] sm:$0xf]
    %v493 = vld [vmem:[#allocation9 + $0x48] sm:$0xff]
    %v494 = vld [vmem:[#allocation9 + $0x50] sm:$0xf]
    %v495 = vld [vmem:[#allocation9 + $0x54] sm:$0xff]
    %v496 = vld [vmem:[#allocation9 + $0x5c] sm:$0xf]
    %v497 = vld [vmem:[#allocation9 + $0x60] sm:$0xff]
    %v498 = vld [vmem:[#allocation9 + $0x68] sm:$0xf]
    %v499 = vld [vmem:[#allocation9 + $0x6c] sm:$0xff]
    %v500 = vld [vmem:[#allocation9 + $0x74] sm:$0xf]
    %v501 = vld [vmem:[#allocation9 + $0x78] sm:$0xff]
    %v502 = vld [vmem:[#allocation9 + $0x80] sm:$0xf]
    %v503 = vld [vmem:[#allocation9 + $0x84] sm:$0xff]
    %v504 = vld [vmem:[#allocation9 + $0x8c] sm:$0xf]
    %v505 = vld [vmem:[#allocation9 + $0x90] sm:$0xff]
    %v506 = vld [vmem:[#allocation9 + $0x98] sm:$0xf]
    %v507 = vld [vmem:[#allocation9 + $0x9c] sm:$0xff]
    %v508 = vld [vmem:[#allocation9 + $0xa4] sm:$0xf]
    %v509 = vld [vmem:[#allocation9 + $0xa8] sm:$0xff]
    %v510 = vld [vmem:[#allocation9 + $0xb0] sm:$0xf]
    %v511 = vld [vmem:[#allocation9 + $0xb4] sm:$0xff]
    %v512 = vld [vmem:[#allocation9 + $0xbc] sm:$0xf]
    %v545 = vunpack.c.l.b16 %v481
    %v546 = vunpack.c.h.b16 %v481
    %v547 = vunpack.c.l.b16 %v482
    %v548 = vunpack.c.l.b16 %v483
    %v549 = vunpack.c.h.b16 %v483
    %v550 = vunpack.c.l.b16 %v484
    %v551 = vunpack.c.l.b16 %v485
    %v552 = vunpack.c.h.b16 %v485
    %v553 = vunpack.c.l.b16 %v486
    %v554 = vunpack.c.l.b16 %v487
    %v555 = vunpack.c.h.b16 %v487
    %v556 = vunpack.c.l.b16 %v488
    %v557 = vunpack.c.l.b16 %v489
    %v558 = vunpack.c.h.b16 %v489
    %v559 = vunpack.c.l.b16 %v490
    %v560 = vunpack.c.l.b16 %v491
    %v561 = vunpack.c.h.b16 %v491
    %v562 = vunpack.c.l.b16 %v492
    %v563 = vunpack.c.l.b16 %v493
    %v564 = vunpack.c.h.b16 %v493
    %v565 = vunpack.c.l.b16 %v494
    %v566 = vunpack.c.l.b16 %v495
    %v567 = vunpack.c.h.b16 %v495
    %v568 = vunpack.c.l.b16 %v496
    %v569 = vunpack.c.l.b16 %v497
    %v570 = vunpack.c.h.b16 %v497
    %v571 = vunpack.c.l.b16 %v498
    %v572 = vunpack.c.l.b16 %v499
    %v573 = vunpack.c.h.b16 %v499
    %v574 = vunpack.c.l.b16 %v500
    %v575 = vunpack.c.l.b16 %v501
    %v576 = vunpack.c.h.b16 %v501
    %v577 = vunpack.c.l.b16 %v502
    %v578 = vunpack.c.l.b16 %v503
    %v579 = vunpack.c.h.b16 %v503
    %v580 = vunpack.c.l.b16 %v504
    %v581 = vunpack.c.l.b16 %v505
    %v582 = vunpack.c.h.b16 %v505
    %v583 = vunpack.c.l.b16 %v506
    %v584 = vunpack.c.l.b16 %v507
    %v585 = vunpack.c.h.b16 %v507
    %v586 = vunpack.c.l.b16 %v508
    %v587 = vunpack.c.l.b16 %v509
    %v588 = vunpack.c.h.b16 %v509
    %v589 = vunpack.c.l.b16 %v510
    %v590 = vunpack.c.l.b16 %v511
    %v591 = vunpack.c.h.b16 %v511
    %v592 = vunpack.c.l.b16 %v512
    %v593 = vpack.c.b16 %v548, %v545
    %v594 = vpack.c.b16 %v549, %v546
    %v595 = vpack.c.b16 %v550, %v547
    %v596 = vpack.c.b16 %v554, %v551
    %v597 = vpack.c.b16 %v555, %v552
    %v598 = vpack.c.b16 %v556, %v553
    %v599 = vpack.c.b16 %v560, %v557
    %v600 = vpack.c.b16 %v561, %v558
    %v601 = vpack.c.b16 %v562, %v559
    %v602 = vpack.c.b16 %v566, %v563
    %v603 = vpack.c.b16 %v567, %v564
    %v604 = vpack.c.b16 %v568, %v565
    %v605 = vpack.c.b16 %v572, %v569
    %v606 = vpack.c.b16 %v573, %v570
    %v607 = vpack.c.b16 %v574, %v571
    %v608 = vpack.c.b16 %v578, %v575
    %v609 = vpack.c.b16 %v579, %v576
    %v610 = vpack.c.b16 %v580, %v577
    %v611 = vpack.c.b16 %v584, %v581
    %v612 = vpack.c.b16 %v585, %v582
    %v613 = vpack.c.b16 %v586, %v583
    %v614 = vpack.c.b16 %v590, %v587
    %v615 = vpack.c.b16 %v591, %v588
    %v616 = vpack.c.b16 %v592, %v589
    %641 = vmatprep.subr.bf16.mxu0 %v615
    %642 = vmatpush1.bf16.msra.mxu0 %v614
    %643 = vmatprep.subr.bf16.mxu0 %v612
    %644 = vmatpush1.bf16.msra.mxu0 %v611
    %645 = vmatprep.subr.bf16.mxu0 %v609
    %646 = vmatpush1.bf16.msra.mxu0 %v608
    %647 = vmatprep.subr.bf16.mxu0 %v606
    %648 = vmatpush1.bf16.msra.mxu0 %v605
    %649 = vmatprep.subr.bf16.mxu0 %v603
    %650 = vmatpush1.bf16.msra.mxu0 %v602
    %651 = vmatprep.subr.bf16.mxu0 %v600
    %652 = vmatpush1.bf16.msra.mxu0 %v599
    %653 = vmatprep.subr.bf16.mxu0 %v597
    %654 = vmatpush1.bf16.msra.mxu0 %v596
    %655 = vmatprep.subr.bf16.mxu0 %v594
    %656 = vmatpush1.bf16.msra.mxu0 %v593
    %657 = vmatprep.subr.bf16.mxu0 0
    %658 = vmatpush2.bf16.msra.mxu0 0
    %659 = vmatprep.subr.bf16.mxu0 0
    %660 = vmatpush2.bf16.msra.mxu0 0
    %661 = vmatprep.subr.bf16.mxu0 0
    %662 = vmatpush2.bf16.msra.mxu0 0
    %663 = vmatprep.subr.bf16.mxu0 0
    %664 = vmatpush2.bf16.msra.mxu0 0
    %665 = vmatprep.subr.bf16.mxu0 0
    %666 = vmatpush2.bf16.msra.mxu0 0
    %667 = vmatprep.subr.bf16.mxu0 0
    %668 = vmatpush2.bf16.msra.mxu0 0
    %669 = vmatprep.subr.bf16.mxu0 0
    %670 = vmatpush2.bf16.msra.mxu0 0
    %671 = vmatprep.subr.bf16.mxu0 0
    %672 = vmatpush2.bf16.msra.mxu0 0
    %673 = vmatprep.mubr.bf16.mxu0 0
    %674 = vmatmul.mubr.bf16.gmra.mxu0 %v480
    %v675 = vpop.f32.mrf.mxu0
    %v676 = vadd.f32 %v464, %v675
    %v677 = vpop.f32.mrf.mxu0
    %v678 = vadd.f32 %v468, %v677
    %v679 = vpop.f32.mrf.mxu0
    %v680 = vpop.f32.mrf.mxu0
    %681 = vdwg.mxu0
    %682 = vmatprep.subr.bf16.mxu0 0
    %683 = vmatpush1.bf16.msra.mxu0 %v616
    %684 = vmatprep.subr.bf16.mxu0 0
    %685 = vmatpush1.bf16.msra.mxu0 %v613
    %686 = vmatprep.subr.bf16.mxu0 0
    %687 = vmatpush1.bf16.msra.mxu0 %v610
    %688 = vmatprep.subr.bf16.mxu0 0
    %689 = vmatpush1.bf16.msra.mxu0 %v607
    %690 = vmatprep.subr.bf16.mxu0 0
    %691 = vmatpush1.bf16.msra.mxu0 %v604
    %692 = vmatprep.subr.bf16.mxu0 0
    %693 = vmatpush1.bf16.msra.mxu0 %v601
    %694 = vmatprep.subr.bf16.mxu0 0
    %695 = vmatpush1.bf16.msra.mxu0 %v598
    %696 = vmatprep.subr.bf16.mxu0 0
    %697 = vmatpush1.bf16.msra.mxu0 %v595
    %698 = vmatprep.subr.bf16.mxu0 0
    %699 = vmatpush2.bf16.msra.mxu0 0
    %700 = vmatprep.subr.bf16.mxu0 0
    %701 = vmatpush2.bf16.msra.mxu0 0
    %702 = vmatprep.subr.bf16.mxu0 0
    %703 = vmatpush2.bf16.msra.mxu0 0
    %704 = vmatprep.subr.bf16.mxu0 0
    %705 = vmatpush2.bf16.msra.mxu0 0
    %706 = vmatprep.subr.bf16.mxu0 0
    %707 = vmatpush2.bf16.msra.mxu0 0
    %708 = vmatprep.subr.bf16.mxu0 0
    %709 = vmatpush2.bf16.msra.mxu0 0
    %710 = vmatprep.subr.bf16.mxu0 0
    %711 = vmatpush2.bf16.msra.mxu0 0
    %712 = vmatprep.subr.bf16.mxu0 0
    %713 = vmatpush2.bf16.msra.mxu0 0
    %714 = vmatprep.mubr.bf16.mxu0 0
    %715 = vmatmul.mubr.bf16.gmra.mxu0 %v480
    %v716 = vpop.f32.mrf.mxu0
    %v717 = vadd.f32 %v472, %v716
    %v718 = vpop.f32.mrf.mxu0
    %v719 = vpop.f32.mrf.mxu0
    %v720 = vpop.f32.mrf.mxu0
    %721 = vdwg.mxu0
    %v722 = vadd.f32 %v477, %v676
    %v723 = vxor.u32 %v722, 2147483648
    %v724 = vmul.f32 %v723, 1.442695
    %v725 = vpow.pop %v724
    %v726 = vadd.f32 %v725, 1.0
    %v727 = vrcp.pop %v726
    %v728 = vmul.f32 1.0, %v727
    %v729 = vadd.f32 %v478, %v678
    %v730 = vxor.u32 %v729, 2147483648
    %v731 = vmul.f32 %v730, 1.442695
    %v732 = vpow.pop %v731
    %v733 = vadd.f32 %v732, 1.0
    %v734 = vrcp.pop %v733
    %v735 = vmul.f32 1.0, %v734
    %v736 = vmul.f32 %v728, %v717
    %v737 = vadd.f32 %v479, %v736
    %v738 = vtanh.pop %v737
    %v739 = vsub.f32 %v476, %v738
    %v740 = vmul.f32 %v735, %v739
    %v741 = vadd.f32 %v738, %v740
    %742 = vst [vmem:[#allocation3] sm:$0xff] %v741
    %v743 = vld [vmem:[#allocation3] sm:$0xff]
    %s744 = scalar_lea.vmem [#allocation2], 24
    %v745 = vld [vmem:[%s744] sm:$0xff]
    %v746 = vld [vmem:[%s744 + $0x8] sm:$0xff]
    %v747 = vld [vmem:[%s744 + $0x10] sm:$0xff]
    %v748 = vpack.c.bf16 %v743, %v743
    %v749 = vld [vmem:[#allocation9] sm:$0xff]
    %v750 = vld [vmem:[#allocation9 + $0x8] sm:$0xf]
    %v751 = vld [vmem:[#allocation9 + $0xc] sm:$0xff]
    %v752 = vld [vmem:[#allocation9 + $0x14] sm:$0xf]
    %v753 = vld [vmem:[#allocation9 + $0x18] sm:$0xff]
    %v754 = vld [vmem:[#allocation9 + $0x20] sm:$0xf]
    %v755 = vld [vmem:[#allocation9 + $0x24] sm:$0xff]
    %v756 = vld [vmem:[#allocation9 + $0x2c] sm:$0xf]
    %v757 = vld [vmem:[#allocation9 + $0x30] sm:$0xff]
    %v758 = vld [vmem:[#allocation9 + $0x38] sm:$0xf]
    %v759 = vld [vmem:[#allocation9 + $0x3c] sm:$0xff]
    %v760 = vld [vmem:[#allocation9 + $0x44] sm:$0xf]
    %v761 = vld [vmem:[#allocation9 + $0x48] sm:$0xff]
    %v762 = vld [vmem:[#allocation9 + $0x50] sm:$0xf]
    %v763 = vld [vmem:[#allocation9 + $0x54] sm:$0xff]
    %v764 = vld [vmem:[#allocation9 + $0x5c] sm:$0xf]
    %v765 = vld [vmem:[#allocation9 + $0x60] sm:$0xff]
    %v766 = vld [vmem:[#allocation9 + $0x68] sm:$0xf]
    %v767 = vld [vmem:[#allocation9 + $0x6c] sm:$0xff]
    %v768 = vld [vmem:[#allocation9 + $0x74] sm:$0xf]
    %v769 = vld [vmem:[#allocation9 + $0x78] sm:$0xff]
    %v770 = vld [vmem:[#allocation9 + $0x80] sm:$0xf]
    %v771 = vld [vmem:[#allocation9 + $0x84] sm:$0xff]
    %v772 = vld [vmem:[#allocation9 + $0x8c] sm:$0xf]
    %v773 = vld [vmem:[#allocation9 + $0x90] sm:$0xff]
    %v774 = vld [vmem:[#allocation9 + $0x98] sm:$0xf]
    %v775 = vld [vmem:[#allocation9 + $0x9c] sm:$0xff]
    %v776 = vld [vmem:[#allocation9 + $0xa4] sm:$0xf]
    %v777 = vld [vmem:[#allocation9 + $0xa8] sm:$0xff]
    %v778 = vld [vmem:[#allocation9 + $0xb0] sm:$0xf]
    %v779 = vld [vmem:[#allocation9 + $0xb4] sm:$0xff]
    %v780 = vld [vmem:[#allocation9 + $0xbc] sm:$0xf]
    %v813 = vunpack.c.l.b16 %v749
    %v814 = vunpack.c.h.b16 %v749
    %v815 = vunpack.c.l.b16 %v750
    %v816 = vunpack.c.l.b16 %v751
    %v817 = vunpack.c.h.b16 %v751
    %v818 = vunpack.c.l.b16 %v752
    %v819 = vunpack.c.l.b16 %v753
    %v820 = vunpack.c.h.b16 %v753
    %v821 = vunpack.c.l.b16 %v754
    %v822 = vunpack.c.l.b16 %v755
    %v823 = vunpack.c.h.b16 %v755
    %v824 = vunpack.c.l.b16 %v756
    %v825 = vunpack.c.l.b16 %v757
    %v826 = vunpack.c.h.b16 %v757
    %v827 = vunpack.c.l.b16 %v758
    %v828 = vunpack.c.l.b16 %v759
    %v829 = vunpack.c.h.b16 %v759
    %v830 = vunpack.c.l.b16 %v760
    %v831 = vunpack.c.l.b16 %v761
    %v832 = vunpack.c.h.b16 %v761
    %v833 = vunpack.c.l.b16 %v762
    %v834 = vunpack.c.l.b16 %v763
    %v835 = vunpack.c.h.b16 %v763
    %v836 = vunpack.c.l.b16 %v764
    %v837 = vunpack.c.l.b16 %v765
    %v838 = vunpack.c.h.b16 %v765
    %v839 = vunpack.c.l.b16 %v766
    %v840 = vunpack.c.l.b16 %v767
    %v841 = vunpack.c.h.b16 %v767
    %v842 = vunpack.c.l.b16 %v768
    %v843 = vunpack.c.l.b16 %v769
    %v844 = vunpack.c.h.b16 %v769
    %v845 = vunpack.c.l.b16 %v770
    %v846 = vunpack.c.l.b16 %v771
    %v847 = vunpack.c.h.b16 %v771
    %v848 = vunpack.c.l.b16 %v772
    %v849 = vunpack.c.l.b16 %v773
    %v850 = vunpack.c.h.b16 %v773
    %v851 = vunpack.c.l.b16 %v774
    %v852 = vunpack.c.l.b16 %v775
    %v853 = vunpack.c.h.b16 %v775
    %v854 = vunpack.c.l.b16 %v776
    %v855 = vunpack.c.l.b16 %v777
    %v856 = vunpack.c.h.b16 %v777
    %v857 = vunpack.c.l.b16 %v778
    %v858 = vunpack.c.l.b16 %v779
    %v859 = vunpack.c.h.b16 %v779
    %v860 = vunpack.c.l.b16 %v780
    %v861 = vpack.c.b16 %v816, %v813
    %v862 = vpack.c.b16 %v817, %v814
    %v863 = vpack.c.b16 %v818, %v815
    %v864 = vpack.c.b16 %v822, %v819
    %v865 = vpack.c.b16 %v823, %v820
    %v866 = vpack.c.b16 %v824, %v821
    %v867 = vpack.c.b16 %v828, %v825
    %v868 = vpack.c.b16 %v829, %v826
    %v869 = vpack.c.b16 %v830, %v827
    %v870 = vpack.c.b16 %v834, %v831
    %v871 = vpack.c.b16 %v835, %v832
    %v872 = vpack.c.b16 %v836, %v833
    %v873 = vpack.c.b16 %v840, %v837
    %v874 = vpack.c.b16 %v841, %v838
    %v875 = vpack.c.b16 %v842, %v839
    %v876 = vpack.c.b16 %v846, %v843
    %v877 = vpack.c.b16 %v847, %v844
    %v878 = vpack.c.b16 %v848, %v845
    %v879 = vpack.c.b16 %v852, %v849
    %v880 = vpack.c.b16 %v853, %v850
    %v881 = vpack.c.b16 %v854, %v851
    %v882 = vpack.c.b16 %v858, %v855
    %v883 = vpack.c.b16 %v859, %v856
    %v884 = vpack.c.b16 %v860, %v857
    %909 = vmatprep.subr.bf16.mxu0 %v883
    %910 = vmatpush1.bf16.msra.mxu0 %v882
    %911 = vmatprep.subr.bf16.mxu0 %v880
    %912 = vmatpush1.bf16.msra.mxu0 %v879
    %913 = vmatprep.subr.bf16.mxu0 %v877
    %914 = vmatpush1.bf16.msra.mxu0 %v876
    %915 = vmatprep.subr.bf16.mxu0 %v874
    %916 = vmatpush1.bf16.msra.mxu0 %v873
    %917 = vmatprep.subr.bf16.mxu0 %v871
    %918 = vmatpush1.bf16.msra.mxu0 %v870
    %919 = vmatprep.subr.bf16.mxu0 %v868
    %920 = vmatpush1.bf16.msra.mxu0 %v867
    %921 = vmatprep.subr.bf16.mxu0 %v865
    %922 = vmatpush1.bf16.msra.mxu0 %v864
    %923 = vmatprep.subr.bf16.mxu0 %v862
    %924 = vmatpush1.bf16.msra.mxu0 %v861
    %925 = vmatprep.subr.bf16.mxu0 0
    %926 = vmatpush2.bf16.msra.mxu0 0
    %927 = vmatprep.subr.bf16.mxu0 0
    %928 = vmatpush2.bf16.msra.mxu0 0
    %929 = vmatprep.subr.bf16.mxu0 0
    %930 = vmatpush2.bf16.msra.mxu0 0
    %931 = vmatprep.subr.bf16.mxu0 0
    %932 = vmatpush2.bf16.msra.mxu0 0
    %933 = vmatprep.subr.bf16.mxu0 0
    %934 = vmatpush2.bf16.msra.mxu0 0
    %935 = vmatprep.subr.bf16.mxu0 0
    %936 = vmatpush2.bf16.msra.mxu0 0
    %937 = vmatprep.subr.bf16.mxu0 0
    %938 = vmatpush2.bf16.msra.mxu0 0
    %939 = vmatprep.subr.bf16.mxu0 0
    %940 = vmatpush2.bf16.msra.mxu0 0
    %941 = vmatprep.mubr.bf16.mxu0 0
    %942 = vmatmul.mubr.bf16.gmra.mxu0 %v748
    %v943 = vpop.f32.mrf.mxu0
    %v944 = vadd.f32 %v464, %v943
    %v945 = vpop.f32.mrf.mxu0
    %v946 = vadd.f32 %v468, %v945
    %v947 = vpop.f32.mrf.mxu0
    %v948 = vpop.f32.mrf.mxu0
    %949 = vdwg.mxu0
    %950 = vmatprep.subr.bf16.mxu0 0
    %951 = vmatpush1.bf16.msra.mxu0 %v884
    %952 = vmatprep.subr.bf16.mxu0 0
    %953 = vmatpush1.bf16.msra.mxu0 %v881
    %954 = vmatprep.subr.bf16.mxu0 0
    %955 = vmatpush1.bf16.msra.mxu0 %v878
    %956 = vmatprep.subr.bf16.mxu0 0
    %957 = vmatpush1.bf16.msra.mxu0 %v875
    %958 = vmatprep.subr.bf16.mxu0 0
    %959 = vmatpush1.bf16.msra.mxu0 %v872
    %960 = vmatprep.subr.bf16.mxu0 0
    %961 = vmatpush1.bf16.msra.mxu0 %v869
    %962 = vmatprep.subr.bf16.mxu0 0
    %963 = vmatpush1.bf16.msra.mxu0 %v866
    %964 = vmatprep.subr.bf16.mxu0 0
    %965 = vmatpush1.bf16.msra.mxu0 %v863
    %966 = vmatprep.subr.bf16.mxu0 0
    %967 = vmatpush2.bf16.msra.mxu0 0
    %968 = vmatprep.subr.bf16.mxu0 0
    %969 = vmatpush2.bf16.msra.mxu0 0
    %970 = vmatprep.subr.bf16.mxu0 0
    %971 = vmatpush2.bf16.msra.mxu0 0
    %972 = vmatprep.subr.bf16.mxu0 0
    %973 = vmatpush2.bf16.msra.mxu0 0
    %974 = vmatprep.subr.bf16.mxu0 0
    %975 = vmatpush2.bf16.msra.mxu0 0
    %976 = vmatprep.subr.bf16.mxu0 0
    %977 = vmatpush2.bf16.msra.mxu0 0
    %978 = vmatprep.subr.bf16.mxu0 0
    %979 = vmatpush2.bf16.msra.mxu0 0
    %980 = vmatprep.subr.bf16.mxu0 0
    %981 = vmatpush2.bf16.msra.mxu0 0
    %982 = vmatprep.mubr.bf16.mxu0 0
    %983 = vmatmul.mubr.bf16.gmra.mxu0 %v748
    %v984 = vpop.f32.mrf.mxu0
    %v985 = vadd.f32 %v472, %v984
    %v986 = vpop.f32.mrf.mxu0
    %v987 = vpop.f32.mrf.mxu0
    %v988 = vpop.f32.mrf.mxu0
    %989 = vdwg.mxu0
    %v990 = vadd.f32 %v745, %v944
    %v991 = vxor.u32 %v990, 2147483648
    %v992 = vmul.f32 %v991, 1.442695
    %v993 = vpow.pop %v992
    %v994 = vadd.f32 %v993, 1.0
    %v995 = vrcp.pop %v994
    %v996 = vmul.f32 1.0, %v995
    %v997 = vadd.f32 %v746, %v946
    %v998 = vxor.u32 %v997, 2147483648
    %v999 = vmul.f32 %v998, 1.442695
    %v1000 = vpow.pop %v999
    %v1001 = vadd.f32 %v1000, 1.0
    %v1002 = vrcp.pop %v1001
    %v1003 = vmul.f32 1.0, %v1002
    %v1004 = vmul.f32 %v996, %v985
    %v1005 = vadd.f32 %v747, %v1004
    %v1006 = vtanh.pop %v1005
    %v1007 = vsub.f32 %v743, %v1006
    %v1008 = vmul.f32 %v1003, %v1007
    %v1009 = vadd.f32 %v1006, %v1008
    %1010 = vst [vmem:[#allocation3] sm:$0xff] %v1009
    %v1011 = vld [vmem:[#allocation3] sm:$0xff]
    %s1012 = scalar_lea.vmem [#allocation2], 48
    %v1013 = vld [vmem:[%s1012] sm:$0xff]
    %v1014 = vld [vmem:[%s1012 + $0x8] sm:$0xff]
    %v1015 = vld [vmem:[%s1012 + $0x10] sm:$0xff]
    %v1016 = vpack.c.bf16 %v1011, %v1011
    %v1017 = vld [vmem:[#allocation9] sm:$0xff]
    %v1018 = vld [vmem:[#allocation9 + $0x8] sm:$0xf]
    %v1019 = vld [vmem:[#allocation9 + $0xc] sm:$0xff]
    %v1020 = vld [vmem:[#allocation9 + $0x14] sm:$0xf]
    %v1021 = vld [vmem:[#allocation9 + $0x18] sm:$0xff]
    %v1022 = vld [vmem:[#allocation9 + $0x20] sm:$0xf]
    %v1023 = vld [vmem:[#allocation9 + $0x24] sm:$0xff]
    %v1024 = vld [vmem:[#allocation9 + $0x2c] sm:$0xf]
    %v1025 = vld [vmem:[#allocation9 + $0x30] sm:$0xff]
    %v1026 = vld [vmem:[#allocation9 + $0x38] sm:$0xf]
    %v1027 = vld [vmem:[#allocation9 + $0x3c] sm:$0xff]
    %v1028 = vld [vmem:[#allocation9 + $0x44] sm:$0xf]
    %v1029 = vld [vmem:[#allocation9 + $0x48] sm:$0xff]
    %v1030 = vld [vmem:[#allocation9 + $0x50] sm:$0xf]
    %v1031 = vld [vmem:[#allocation9 + $0x54] sm:$0xff]
    %v1032 = vld [vmem:[#allocation9 + $0x5c] sm:$0xf]
    %v1033 = vld [vmem:[#allocation9 + $0x60] sm:$0xff]
    %v1034 = vld [vmem:[#allocation9 + $0x68] sm:$0xf]
    %v1035 = vld [vmem:[#allocation9 + $0x6c] sm:$0xff]
    %v1036 = vld [vmem:[#allocation9 + $0x74] sm:$0xf]
    %v1037 = vld [vmem:[#allocation9 + $0x78] sm:$0xff]
    %v1038 = vld [vmem:[#allocation9 + $0x80] sm:$0xf]
    %v1039 = vld [vmem:[#allocation9 + $0x84] sm:$0xff]
    %v1040 = vld [vmem:[#allocation9 + $0x8c] sm:$0xf]
    %v1041 = vld [vmem:[#allocation9 + $0x90] sm:$0xff]
    %v1042 = vld [vmem:[#allocation9 + $0x98] sm:$0xf]
    %v1043 = vld [vmem:[#allocation9 + $0x9c] sm:$0xff]
    %v1044 = vld [vmem:[#allocation9 + $0xa4] sm:$0xf]
    %v1045 = vld [vmem:[#allocation9 + $0xa8] sm:$0xff]
    %v1046 = vld [vmem:[#allocation9 + $0xb0] sm:$0xf]
    %v1047 = vld [vmem:[#allocation9 + $0xb4] sm:$0xff]
    %v1048 = vld [vmem:[#allocation9 + $0xbc] sm:$0xf]
    %v1081 = vunpack.c.l.b16 %v1017
    %v1082 = vunpack.c.h.b16 %v1017
    %v1083 = vunpack.c.l.b16 %v1018
    %v1084 = vunpack.c.l.b16 %v1019
    %v1085 = vunpack.c.h.b16 %v1019
    %v1086 = vunpack.c.l.b16 %v1020
    %v1087 = vunpack.c.l.b16 %v1021
    %v1088 = vunpack.c.h.b16 %v1021
    %v1089 = vunpack.c.l.b16 %v1022
    %v1090 = vunpack.c.l.b16 %v1023
    %v1091 = vunpack.c.h.b16 %v1023
    %v1092 = vunpack.c.l.b16 %v1024
    %v1093 = vunpack.c.l.b16 %v1025
    %v1094 = vunpack.c.h.b16 %v1025
    %v1095 = vunpack.c.l.b16 %v1026
    %v1096 = vunpack.c.l.b16 %v1027
    %v1097 = vunpack.c.h.b16 %v1027
    %v1098 = vunpack.c.l.b16 %v1028
    %v1099 = vunpack.c.l.b16 %v1029
    %v1100 = vunpack.c.h.b16 %v1029
    %v1101 = vunpack.c.l.b16 %v1030
    %v1102 = vunpack.c.l.b16 %v1031
    %v1103 = vunpack.c.h.b16 %v1031
    %v1104 = vunpack.c.l.b16 %v1032
    %v1105 = vunpack.c.l.b16 %v1033
    %v1106 = vunpack.c.h.b16 %v1033
    %v1107 = vunpack.c.l.b16 %v1034
    %v1108 = vunpack.c.l.b16 %v1035
    %v1109 = vunpack.c.h.b16 %v1035
    %v1110 = vunpack.c.l.b16 %v1036
    %v1111 = vunpack.c.l.b16 %v1037
    %v1112 = vunpack.c.h.b16 %v1037
    %v1113 = vunpack.c.l.b16 %v1038
    %v1114 = vunpack.c.l.b16 %v1039
    %v1115 = vunpack.c.h.b16 %v1039
    %v1116 = vunpack.c.l.b16 %v1040
    %v1117 = vunpack.c.l.b16 %v1041
    %v1118 = vunpack.c.h.b16 %v1041
    %v1119 = vunpack.c.l.b16 %v1042
    %v1120 = vunpack.c.l.b16 %v1043
    %v1121 = vunpack.c.h.b16 %v1043
    %v1122 = vunpack.c.l.b16 %v1044
    %v1123 = vunpack.c.l.b16 %v1045
    %v1124 = vunpack.c.h.b16 %v1045
    %v1125 = vunpack.c.l.b16 %v1046
    %v1126 = vunpack.c.l.b16 %v1047
    %v1127 = vunpack.c.h.b16 %v1047
    %v1128 = vunpack.c.l.b16 %v1048
    %v1129 = vpack.c.b16 %v1084, %v1081
    %v1130 = vpack.c.b16 %v1085, %v1082
    %v1131 = vpack.c.b16 %v1086, %v1083
    %v1132 = vpack.c.b16 %v1090, %v1087
    %v1133 = vpack.c.b16 %v1091, %v1088
    %v1134 = vpack.c.b16 %v1092, %v1089
    %v1135 = vpack.c.b16 %v1096, %v1093
    %v1136 = vpack.c.b16 %v1097, %v1094
    %v1137 = vpack.c.b16 %v1098, %v1095
    %v1138 = vpack.c.b16 %v1102, %v1099
    %v1139 = vpack.c.b16 %v1103, %v1100
    %v1140 = vpack.c.b16 %v1104, %v1101
    %v1141 = vpack.c.b16 %v1108, %v1105
    %v1142 = vpack.c.b16 %v1109, %v1106
    %v1143 = vpack.c.b16 %v1110, %v1107
    %v1144 = vpack.c.b16 %v1114, %v1111
    %v1145 = vpack.c.b16 %v1115, %v1112
    %v1146 = vpack.c.b16 %v1116, %v1113
    %v1147 = vpack.c.b16 %v1120, %v1117
    %v1148 = vpack.c.b16 %v1121, %v1118
    %v1149 = vpack.c.b16 %v1122, %v1119
    %v1150 = vpack.c.b16 %v1126, %v1123
    %v1151 = vpack.c.b16 %v1127, %v1124
    %v1152 = vpack.c.b16 %v1128, %v1125
    %1177 = vmatprep.subr.bf16.mxu0 %v1151
    %1178 = vmatpush1.bf16.msra.mxu0 %v1150
    %1179 = vmatprep.subr.bf16.mxu0 %v1148
    %1180 = vmatpush1.bf16.msra.mxu0 %v1147
    %1181 = vmatprep.subr.bf16.mxu0 %v1145
    %1182 = vmatpush1.bf16.msra.mxu0 %v1144
    %1183 = vmatprep.subr.bf16.mxu0 %v1142
    %1184 = vmatpush1.bf16.msra.mxu0 %v1141
    %1185 = vmatprep.subr.bf16.mxu0 %v1139
    %1186 = vmatpush1.bf16.msra.mxu0 %v1138
    %1187 = vmatprep.subr.bf16.mxu0 %v1136
    %1188 = vmatpush1.bf16.msra.mxu0 %v1135
    %1189 = vmatprep.subr.bf16.mxu0 %v1133
    %1190 = vmatpush1.bf16.msra.mxu0 %v1132
    %1191 = vmatprep.subr.bf16.mxu0 %v1130
    %1192 = vmatpush1.bf16.msra.mxu0 %v1129
    %1193 = vmatprep.subr.bf16.mxu0 0
    %1194 = vmatpush2.bf16.msra.mxu0 0
    %1195 = vmatprep.subr.bf16.mxu0 0
    %1196 = vmatpush2.bf16.msra.mxu0 0
    %1197 = vmatprep.subr.bf16.mxu0 0
    %1198 = vmatpush2.bf16.msra.mxu0 0
    %1199 = vmatprep.subr.bf16.mxu0 0
    %1200 = vmatpush2.bf16.msra.mxu0 0
    %1201 = vmatprep.subr.bf16.mxu0 0
    %1202 = vmatpush2.bf16.msra.mxu0 0
    %1203 = vmatprep.subr.bf16.mxu0 0
    %1204 = vmatpush2.bf16.msra.mxu0 0
    %1205 = vmatprep.subr.bf16.mxu0 0
    %1206 = vmatpush2.bf16.msra.mxu0 0
    %1207 = vmatprep.subr.bf16.mxu0 0
    %1208 = vmatpush2.bf16.msra.mxu0 0
    %1209 = vmatprep.mubr.bf16.mxu0 0
    %1210 = vmatmul.mubr.bf16.gmra.mxu0 %v1016
    %v1211 = vpop.f32.mrf.mxu0
    %v1212 = vadd.f32 %v464, %v1211
    %v1213 = vpop.f32.mrf.mxu0
    %v1214 = vadd.f32 %v468, %v1213
    %v1215 = vpop.f32.mrf.mxu0
    %v1216 = vpop.f32.mrf.mxu0
    %1217 = vdwg.mxu0
    %1218 = vmatprep.subr.bf16.mxu0 0
    %1219 = vmatpush1.bf16.msra.mxu0 %v1152
    %1220 = vmatprep.subr.bf16.mxu0 0
    %1221 = vmatpush1.bf16.msra.mxu0 %v1149
    %1222 = vmatprep.subr.bf16.mxu0 0
    %1223 = vmatpush1.bf16.msra.mxu0 %v1146
    %1224 = vmatprep.subr.bf16.mxu0 0
    %1225 = vmatpush1.bf16.msra.mxu0 %v1143
    %1226 = vmatprep.subr.bf16.mxu0 0
    %1227 = vmatpush1.bf16.msra.mxu0 %v1140
    %1228 = vmatprep.subr.bf16.mxu0 0
    %1229 = vmatpush1.bf16.msra.mxu0 %v1137
    %1230 = vmatprep.subr.bf16.mxu0 0
    %1231 = vmatpush1.bf16.msra.mxu0 %v1134
    %1232 = vmatprep.subr.bf16.mxu0 0
    %1233 = vmatpush1.bf16.msra.mxu0 %v1131
    %1234 = vmatprep.subr.bf16.mxu0 0
    %1235 = vmatpush2.bf16.msra.mxu0 0
    %1236 = vmatprep.subr.bf16.mxu0 0
    %1237 = vmatpush2.bf16.msra.mxu0 0
    %1238 = vmatprep.subr.bf16.mxu0 0
    %1239 = vmatpush2.bf16.msra.mxu0 0
    %1240 = vmatprep.subr.bf16.mxu0 0
    %1241 = vmatpush2.bf16.msra.mxu0 0
    %1242 = vmatprep.subr.bf16.mxu0 0
    %1243 = vmatpush2.bf16.msra.mxu0 0
    %1244 = vmatprep.subr.bf16.mxu0 0
    %1245 = vmatpush2.bf16.msra.mxu0 0
    %1246 = vmatprep.subr.bf16.mxu0 0
    %1247 = vmatpush2.bf16.msra.mxu0 0
    %1248 = vmatprep.subr.bf16.mxu0 0
    %1249 = vmatpush2.bf16.msra.mxu0 0
    %1250 = vmatprep.mubr.bf16.mxu0 0
    %1251 = vmatmul.mubr.bf16.gmra.mxu0 %v1016
    %v1252 = vpop.f32.mrf.mxu0
    %v1253 = vadd.f32 %v472, %v1252
    %v1254 = vpop.f32.mrf.mxu0
    %v1255 = vpop.f32.mrf.mxu0
    %v1256 = vpop.f32.mrf.mxu0
    %1257 = vdwg.mxu0
    %v1258 = vadd.f32 %v1013, %v1212
    %v1259 = vxor.u32 %v1258, 2147483648
    %v1260 = vmul.f32 %v1259, 1.442695
    %v1261 = vpow.pop %v1260
    %v1262 = vadd.f32 %v1261, 1.0
    %v1263 = vrcp.pop %v1262
    %v1264 = vmul.f32 1.0, %v1263
    %v1265 = vadd.f32 %v1014, %v1214
    %v1266 = vxor.u32 %v1265, 2147483648
    %v1267 = vmul.f32 %v1266, 1.442695
    %v1268 = vpow.pop %v1267
    %v1269 = vadd.f32 %v1268, 1.0
    %v1270 = vrcp.pop %v1269
    %v1271 = vmul.f32 1.0, %v1270
    %v1272 = vmul.f32 %v1264, %v1253
    %v1273 = vadd.f32 %v1015, %v1272
    %v1274 = vtanh.pop %v1273
    %v1275 = vsub.f32 %v1011, %v1274
    %v1276 = vmul.f32 %v1271, %v1275
    %v1277 = vadd.f32 %v1274, %v1276
    %1278 = vst [vmem:[#allocation3] sm:$0xff] %v1277
    %v1279 = vld [vmem:[#allocation3] sm:$0xff]
    %s1280 = scalar_lea.vmem [#allocation2], 72
    %v1281 = vld [vmem:[%s1280] sm:$0xff]
    %v1282 = vld [vmem:[%s1280 + $0x8] sm:$0xff]
    %v1283 = vld [vmem:[%s1280 + $0x10] sm:$0xff]
    %v1284 = vpack.c.bf16 %v1279, %v1279
    %v1285 = vld [vmem:[#allocation9] sm:$0xff]
    %v1286 = vld [vmem:[#allocation9 + $0x8] sm:$0xf]
    %v1287 = vld [vmem:[#allocation9 + $0xc] sm:$0xff]
    %v1288 = vld [vmem:[#allocation9 + $0x14] sm:$0xf]
    %v1289 = vld [vmem:[#allocation9 + $0x18] sm:$0xff]
    %v1290 = vld [vmem:[#allocation9 + $0x20] sm:$0xf]
    %v1291 = vld [vmem:[#allocation9 + $0x24] sm:$0xff]
    %v1292 = vld [vmem:[#allocation9 + $0x2c] sm:$0xf]
    %v1293 = vld [vmem:[#allocation9 + $0x30] sm:$0xff]
    %v1294 = vld [vmem:[#allocation9 + $0x38] sm:$0xf]
    %v1295 = vld [vmem:[#allocation9 + $0x3c] sm:$0xff]
    %v1296 = vld [vmem:[#allocation9 + $0x44] sm:$0xf]
    %v1297 = vld [vmem:[#allocation9 + $0x48] sm:$0xff]
    %v1298 = vld [vmem:[#allocation9 + $0x50] sm:$0xf]
    %v1299 = vld [vmem:[#allocation9 + $0x54] sm:$0xff]
    %v1300 = vld [vmem:[#allocation9 + $0x5c] sm:$0xf]
    %v1301 = vld [vmem:[#allocation9 + $0x60] sm:$0xff]
    %v1302 = vld [vmem:[#allocation9 + $0x68] sm:$0xf]
    %v1303 = vld [vmem:[#allocation9 + $0x6c] sm:$0xff]
    %v1304 = vld [vmem:[#allocation9 + $0x74] sm:$0xf]
    %v1305 = vld [vmem:[#allocation9 + $0x78] sm:$0xff]
    %v1306 = vld [vmem:[#allocation9 + $0x80] sm:$0xf]
    %v1307 = vld [vmem:[#allocation9 + $0x84] sm:$0xff]
    %v1308 = vld [vmem:[#allocation9 + $0x8c] sm:$0xf]
    %v1309 = vld [vmem:[#allocation9 + $0x90] sm:$0xff]
    %v1310 = vld [vmem:[#allocation9 + $0x98] sm:$0xf]
    %v1311 = vld [vmem:[#allocation9 + $0x9c] sm:$0xff]
    %v1312 = vld [vmem:[#allocation9 + $0xa4] sm:$0xf]
    %v1313 = vld [vmem:[#allocation9 + $0xa8] sm:$0xff]
    %v1314 = vld [vmem:[#allocation9 + $0xb0] sm:$0xf]
    %v1315 = vld [vmem:[#allocation9 + $0xb4] sm:$0xff]
    %v1316 = vld [vmem:[#allocation9 + $0xbc] sm:$0xf]
    %v1349 = vunpack.c.l.b16 %v1285
    %v1350 = vunpack.c.h.b16 %v1285
    %v1351 = vunpack.c.l.b16 %v1286
    %v1352 = vunpack.c.l.b16 %v1287
    %v1353 = vunpack.c.h.b16 %v1287
    %v1354 = vunpack.c.l.b16 %v1288
    %v1355 = vunpack.c.l.b16 %v1289
    %v1356 = vunpack.c.h.b16 %v1289
    %v1357 = vunpack.c.l.b16 %v1290
    %v1358 = vunpack.c.l.b16 %v1291
    %v1359 = vunpack.c.h.b16 %v1291
    %v1360 = vunpack.c.l.b16 %v1292
    %v1361 = vunpack.c.l.b16 %v1293
    %v1362 = vunpack.c.h.b16 %v1293
    %v1363 = vunpack.c.l.b16 %v1294
    %v1364 = vunpack.c.l.b16 %v1295
    %v1365 = vunpack.c.h.b16 %v1295
    %v1366 = vunpack.c.l.b16 %v1296
    %v1367 = vunpack.c.l.b16 %v1297
    %v1368 = vunpack.c.h.b16 %v1297
    %v1369 = vunpack.c.l.b16 %v1298
    %v1370 = vunpack.c.l.b16 %v1299
    %v1371 = vunpack.c.h.b16 %v1299
    %v1372 = vunpack.c.l.b16 %v1300
    %v1373 = vunpack.c.l.b16 %v1301
    %v1374 = vunpack.c.h.b16 %v1301
    %v1375 = vunpack.c.l.b16 %v1302
    %v1376 = vunpack.c.l.b16 %v1303
    %v1377 = vunpack.c.h.b16 %v1303
    %v1378 = vunpack.c.l.b16 %v1304
    %v1379 = vunpack.c.l.b16 %v1305
    %v1380 = vunpack.c.h.b16 %v1305
    %v1381 = vunpack.c.l.b16 %v1306
    %v1382 = vunpack.c.l.b16 %v1307
    %v1383 = vunpack.c.h.b16 %v1307
    %v1384 = vunpack.c.l.b16 %v1308
    %v1385 = vunpack.c.l.b16 %v1309
    %v1386 = vunpack.c.h.b16 %v1309
    %v1387 = vunpack.c.l.b16 %v1310
    %v1388 = vunpack.c.l.b16 %v1311
    %v1389 = vunpack.c.h.b16 %v1311
    %v1390 = vunpack.c.l.b16 %v1312
    %v1391 = vunpack.c.l.b16 %v1313
    %v1392 = vunpack.c.h.b16 %v1313
    %v1393 = vunpack.c.l.b16 %v1314
    %v1394 = vunpack.c.l.b16 %v1315
    %v1395 = vunpack.c.h.b16 %v1315
    %v1396 = vunpack.c.l.b16 %v1316
    %v1397 = vpack.c.b16 %v1352, %v1349
    %v1398 = vpack.c.b16 %v1353, %v1350
    %v1399 = vpack.c.b16 %v1354, %v1351
    %v1400 = vpack.c.b16 %v1358, %v1355
    %v1401 = vpack.c.b16 %v1359, %v1356
    %v1402 = vpack.c.b16 %v1360, %v1357
    %v1403 = vpack.c.b16 %v1364, %v1361
    %v1404 = vpack.c.b16 %v1365, %v1362
    %v1405 = vpack.c.b16 %v1366, %v1363
    %v1406 = vpack.c.b16 %v1370, %v1367
    %v1407 = vpack.c.b16 %v1371, %v1368
    %v1408 = vpack.c.b16 %v1372, %v1369
    %v1409 = vpack.c.b16 %v1376, %v1373
    %v1410 = vpack.c.b16 %v1377, %v1374
    %v1411 = vpack.c.b16 %v1378, %v1375
    %v1412 = vpack.c.b16 %v1382, %v1379
    %v1413 = vpack.c.b16 %v1383, %v1380
    %v1414 = vpack.c.b16 %v1384, %v1381
    %v1415 = vpack.c.b16 %v1388, %v1385
    %v1416 = vpack.c.b16 %v1389, %v1386
    %v1417 = vpack.c.b16 %v1390, %v1387
    %v1418 = vpack.c.b16 %v1394, %v1391
    %v1419 = vpack.c.b16 %v1395, %v1392
    %v1420 = vpack.c.b16 %v1396, %v1393
    %1445 = vmatprep.subr.bf16.mxu0 %v1419
    %1446 = vmatpush1.bf16.msra.mxu0 %v1418
    %1447 = vmatprep.subr.bf16.mxu0 %v1416
    %1448 = vmatpush1.bf16.msra.mxu0 %v1415
    %1449 = vmatprep.subr.bf16.mxu0 %v1413
    %1450 = vmatpush1.bf16.msra.mxu0 %v1412
    %1451 = vmatprep.subr.bf16.mxu0 %v1410
    %1452 = vmatpush1.bf16.msra.mxu0 %v1409
    %1453 = vmatprep.subr.bf16.mxu0 %v1407
    %1454 = vmatpush1.bf16.msra.mxu0 %v1406
    %1455 = vmatprep.subr.bf16.mxu0 %v1404
    %1456 = vmatpush1.bf16.msra.mxu0 %v1403
    %1457 = vmatprep.subr.bf16.mxu0 %v1401
    %1458 = vmatpush1.bf16.msra.mxu0 %v1400
    %1459 = vmatprep.subr.bf16.mxu0 %v1398
    %1460 = vmatpush1.bf16.msra.mxu0 %v1397
    %1461 = vmatprep.subr.bf16.mxu0 0
    %1462 = vmatpush2.bf16.msra.mxu0 0
    %1463 = vmatprep.subr.bf16.mxu0 0
    %1464 = vmatpush2.bf16.msra.mxu0 0
    %1465 = vmatprep.subr.bf16.mxu0 0
    %1466 = vmatpush2.bf16.msra.mxu0 0
    %1467 = vmatprep.subr.bf16.mxu0 0
    %1468 = vmatpush2.bf16.msra.mxu0 0
    %1469 = vmatprep.subr.bf16.mxu0 0
    %1470 = vmatpush2.bf16.msra.mxu0 0
    %1471 = vmatprep.subr.bf16.mxu0 0
    %1472 = vmatpush2.bf16.msra.mxu0 0
    %1473 = vmatprep.subr.bf16.mxu0 0
    %1474 = vmatpush2.bf16.msra.mxu0 0
    %1475 = vmatprep.subr.bf16.mxu0 0
    %1476 = vmatpush2.bf16.msra.mxu0 0
    %1477 = vmatprep.mubr.bf16.mxu0 0
    %1478 = vmatmul.mubr.bf16.gmra.mxu0 %v1284
    %v1479 = vpop.f32.mrf.mxu0
    %v1480 = vadd.f32 %v464, %v1479
    %v1481 = vpop.f32.mrf.mxu0
    %v1482 = vadd.f32 %v468, %v1481
    %v1483 = vpop.f32.mrf.mxu0
    %v1484 = vpop.f32.mrf.mxu0
    %1485 = vdwg.mxu0
    %1486 = vmatprep.subr.bf16.mxu0 0
    %1487 = vmatpush1.bf16.msra.mxu0 %v1420
    %1488 = vmatprep.subr.bf16.mxu0 0
    %1489 = vmatpush1.bf16.msra.mxu0 %v1417
    %1490 = vmatprep.subr.bf16.mxu0 0
    %1491 = vmatpush1.bf16.msra.mxu0 %v1414
    %1492 = vmatprep.subr.bf16.mxu0 0
    %1493 = vmatpush1.bf16.msra.mxu0 %v1411
    %1494 = vmatprep.subr.bf16.mxu0 0
    %1495 = vmatpush1.bf16.msra.mxu0 %v1408
    %1496 = vmatprep.subr.bf16.mxu0 0
    %1497 = vmatpush1.bf16.msra.mxu0 %v1405
    %1498 = vmatprep.subr.bf16.mxu0 0
    %1499 = vmatpush1.bf16.msra.mxu0 %v1402
    %1500 = vmatprep.subr.bf16.mxu0 0
    %1501 = vmatpush1.bf16.msra.mxu0 %v1399
    %1502 = vmatprep.subr.bf16.mxu0 0
    %1503 = vmatpush2.bf16.msra.mxu0 0
    %1504 = vmatprep.subr.bf16.mxu0 0
    %1505 = vmatpush2.bf16.msra.mxu0 0
    %1506 = vmatprep.subr.bf16.mxu0 0
    %1507 = vmatpush2.bf16.msra.mxu0 0
    %1508 = vmatprep.subr.bf16.mxu0 0
    %1509 = vmatpush2.bf16.msra.mxu0 0
    %1510 = vmatprep.subr.bf16.mxu0 0
    %1511 = vmatpush2.bf16.msra.mxu0 0
    %1512 = vmatprep.subr.bf16.mxu0 0
    %1513 = vmatpush2.bf16.msra.mxu0 0
    %1514 = vmatprep.subr.bf16.mxu0 0
    %1515 = vmatpush2.bf16.msra.mxu0 0
    %1516 = vmatprep.subr.bf16.mxu0 0
    %1517 = vmatpush2.bf16.msra.mxu0 0
    %1518 = vmatprep.mubr.bf16.mxu0 0
    %1519 = vmatmul.mubr.bf16.gmra.mxu0 %v1284
    %v1520 = vpop.f32.mrf.mxu0
    %v1521 = vadd.f32 %v472, %v1520
    %v1522 = vpop.f32.mrf.mxu0
    %v1523 = vpop.f32.mrf.mxu0
    %v1524 = vpop.f32.mrf.mxu0
    %1525 = vdwg.mxu0
    %v1526 = vadd.f32 %v1281, %v1480
    %v1527 = vxor.u32 %v1526, 2147483648
    %v1528 = vmul.f32 %v1527, 1.442695
    %v1529 = vpow.pop %v1528
    %v1530 = vadd.f32 %v1529, 1.0
    %v1531 = vrcp.pop %v1530
    %v1532 = vmul.f32 1.0, %v1531
    %v1533 = vadd.f32 %v1282, %v1482
    %v1534 = vxor.u32 %v1533, 2147483648
    %v1535 = vmul.f32 %v1534, 1.442695
    %v1536 = vpow.pop %v1535
    %v1537 = vadd.f32 %v1536, 1.0
    %v1538 = vrcp.pop %v1537
    %v1539 = vmul.f32 1.0, %v1538
    %v1540 = vmul.f32 %v1532, %v1521
    %v1541 = vadd.f32 %v1283, %v1540
    %v1542 = vtanh.pop %v1541
    %v1543 = vsub.f32 %v1279, %v1542
    %v1544 = vmul.f32 %v1539, %v1543
    %v1545 = vadd.f32 %v1542, %v1544
    %1546 = vst [vmem:[#allocation3] sm:$0xff] %v1545
    %v1547 = vld [vmem:[#allocation3] sm:$0xff]
    %s1548 = scalar_lea.vmem [#allocation2], 96
    %v1549 = vld [vmem:[%s1548] sm:$0xff]
    %v1550 = vld [vmem:[%s1548 + $0x8] sm:$0xff]
    %v1551 = vld [vmem:[%s1548 + $0x10] sm:$0xff]
    %v1552 = vpack.c.bf16 %v1547, %v1547
    %v1553 = vld [vmem:[#allocation9] sm:$0xff]
    %v1554 = vld [vmem:[#allocation9 + $0x8] sm:$0xf]
    %v1555 = vld [vmem:[#allocation9 + $0xc] sm:$0xff]
    %v1556 = vld [vmem:[#allocation9 + $0x14] sm:$0xf]
    %v1557 = vld [vmem:[#allocation9 + $0x18] sm:$0xff]
    %v1558 = vld [vmem:[#allocation9 + $0x20] sm:$0xf]
    %v1559 = vld [vmem:[#allocation9 + $0x24] sm:$0xff]
    %v1560 = vld [vmem:[#allocation9 + $0x2c] sm:$0xf]
    %v1561 = vld [vmem:[#allocation9 + $0x30] sm:$0xff]
    %v1562 = vld [vmem:[#allocation9 + $0x38] sm:$0xf]
    %v1563 = vld [vmem:[#allocation9 + $0x3c] sm:$0xff]
    %v1564 = vld [vmem:[#allocation9 + $0x44] sm:$0xf]
    %v1565 = vld [vmem:[#allocation9 + $0x48] sm:$0xff]
    %v1566 = vld [vmem:[#allocation9 + $0x50] sm:$0xf]
    %v1567 = vld [vmem:[#allocation9 + $0x54] sm:$0xff]
    %v1568 = vld [vmem:[#allocation9 + $0x5c] sm:$0xf]
    %v1569 = vld [vmem:[#allocation9 + $0x60] sm:$0xff]
    %v1570 = vld [vmem:[#allocation9 + $0x68] sm:$0xf]
    %v1571 = vld [vmem:[#allocation9 + $0x6c] sm:$0xff]
    %v1572 = vld [vmem:[#allocation9 + $0x74] sm:$0xf]
    %v1573 = vld [vmem:[#allocation9 + $0x78] sm:$0xff]
    %v1574 = vld [vmem:[#allocation9 + $0x80] sm:$0xf]
    %v1575 = vld [vmem:[#allocation9 + $0x84] sm:$0xff]
    %v1576 = vld [vmem:[#allocation9 + $0x8c] sm:$0xf]
    %v1577 = vld [vmem:[#allocation9 + $0x90] sm:$0xff]
    %v1578 = vld [vmem:[#allocation9 + $0x98] sm:$0xf]
    %v1579 = vld [vmem:[#allocation9 + $0x9c] sm:$0xff]
    %v1580 = vld [vmem:[#allocation9 + $0xa4] sm:$0xf]
    %v1581 = vld [vmem:[#allocation9 + $0xa8] sm:$0xff]
    %v1582 = vld [vmem:[#allocation9 + $0xb0] sm:$0xf]
    %v1583 = vld [vmem:[#allocation9 + $0xb4] sm:$0xff]
    %v1584 = vld [vmem:[#allocation9 + $0xbc] sm:$0xf]
    %v1617 = vunpack.c.l.b16 %v1553
    %v1618 = vunpack.c.h.b16 %v1553
    %v1619 = vunpack.c.l.b16 %v1554
    %v1620 = vunpack.c.l.b16 %v1555
    %v1621 = vunpack.c.h.b16 %v1555
    %v1622 = vunpack.c.l.b16 %v1556
    %v1623 = vunpack.c.l.b16 %v1557
    %v1624 = vunpack.c.h.b16 %v1557
    %v1625 = vunpack.c.l.b16 %v1558
    %v1626 = vunpack.c.l.b16 %v1559
    %v1627 = vunpack.c.h.b16 %v1559
    %v1628 = vunpack.c.l.b16 %v1560
    %v1629 = vunpack.c.l.b16 %v1561
    %v1630 = vunpack.c.h.b16 %v1561
    %v1631 = vunpack.c.l.b16 %v1562
    %v1632 = vunpack.c.l.b16 %v1563
    %v1633 = vunpack.c.h.b16 %v1563
    %v1634 = vunpack.c.l.b16 %v1564
    %v1635 = vunpack.c.l.b16 %v1565
    %v1636 = vunpack.c.h.b16 %v1565
    %v1637 = vunpack.c.l.b16 %v1566
    %v1638 = vunpack.c.l.b16 %v1567
    %v1639 = vunpack.c.h.b16 %v1567
    %v1640 = vunpack.c.l.b16 %v1568
    %v1641 = vunpack.c.l.b16 %v1569
    %v1642 = vunpack.c.h.b16 %v1569
    %v1643 = vunpack.c.l.b16 %v1570
    %v1644 = vunpack.c.l.b16 %v1571
    %v1645 = vunpack.c.h.b16 %v1571
    %v1646 = vunpack.c.l.b16 %v1572
    %v1647 = vunpack.c.l.b16 %v1573
    %v1648 = vunpack.c.h.b16 %v1573
    %v1649 = vunpack.c.l.b16 %v1574
    %v1650 = vunpack.c.l.b16 %v1575
    %v1651 = vunpack.c.h.b16 %v1575
    %v1652 = vunpack.c.l.b16 %v1576
    %v1653 = vunpack.c.l.b16 %v1577
    %v1654 = vunpack.c.h.b16 %v1577
    %v1655 = vunpack.c.l.b16 %v1578
    %v1656 = vunpack.c.l.b16 %v1579
    %v1657 = vunpack.c.h.b16 %v1579
    %v1658 = vunpack.c.l.b16 %v1580
    %v1659 = vunpack.c.l.b16 %v1581
    %v1660 = vunpack.c.h.b16 %v1581
    %v1661 = vunpack.c.l.b16 %v1582
    %v1662 = vunpack.c.l.b16 %v1583
    %v1663 = vunpack.c.h.b16 %v1583
    %v1664 = vunpack.c.l.b16 %v1584
    %v1665 = vpack.c.b16 %v1620, %v1617
    %v1666 = vpack.c.b16 %v1621, %v1618
    %v1667 = vpack.c.b16 %v1622, %v1619
    %v1668 = vpack.c.b16 %v1626, %v1623
    %v1669 = vpack.c.b16 %v1627, %v1624
    %v1670 = vpack.c.b16 %v1628, %v1625
    %v1671 = vpack.c.b16 %v1632, %v1629
    %v1672 = vpack.c.b16 %v1633, %v1630
    %v1673 = vpack.c.b16 %v1634, %v1631
    %v1674 = vpack.c.b16 %v1638, %v1635
    %v1675 = vpack.c.b16 %v1639, %v1636
    %v1676 = vpack.c.b16 %v1640, %v1637
    %v1677 = vpack.c.b16 %v1644, %v1641
    %v1678 = vpack.c.b16 %v1645, %v1642
    %v1679 = vpack.c.b16 %v1646, %v1643
    %v1680 = vpack.c.b16 %v1650, %v1647
    %v1681 = vpack.c.b16 %v1651, %v1648
    %v1682 = vpack.c.b16 %v1652, %v1649
    %v1683 = vpack.c.b16 %v1656, %v1653
    %v1684 = vpack.c.b16 %v1657, %v1654
    %v1685 = vpack.c.b16 %v1658, %v1655
    %v1686 = vpack.c.b16 %v1662, %v1659
    %v1687 = vpack.c.b16 %v1663, %v1660
    %v1688 = vpack.c.b16 %v1664, %v1661
    %1713 = vmatprep.subr.bf16.mxu0 %v1687
    %1714 = vmatpush1.bf16.msra.mxu0 %v1686
    %1715 = vmatprep.subr.bf16.mxu0 %v1684
    %1716 = vmatpush1.bf16.msra.mxu0 %v1683
    %1717 = vmatprep.subr.bf16.mxu0 %v1681
    %1718 = vmatpush1.bf16.msra.mxu0 %v1680
    %1719 = vmatprep.subr.bf16.mxu0 %v1678
    %1720 = vmatpush1.bf16.msra.mxu0 %v1677
    %1721 = vmatprep.subr.bf16.mxu0 %v1675
    %1722 = vmatpush1.bf16.msra.mxu0 %v1674
    %1723 = vmatprep.subr.bf16.mxu0 %v1672
    %1724 = vmatpush1.bf16.msra.mxu0 %v1671
    %1725 = vmatprep.subr.bf16.mxu0 %v1669
    %1726 = vmatpush1.bf16.msra.mxu0 %v1668
    %1727 = vmatprep.subr.bf16.mxu0 %v1666
    %1728 = vmatpush1.bf16.msra.mxu0 %v1665
    %1729 = vmatprep.subr.bf16.mxu0 0
    %1730 = vmatpush2.bf16.msra.mxu0 0
    %1731 = vmatprep.subr.bf16.mxu0 0
    %1732 = vmatpush2.bf16.msra.mxu0 0
    %1733 = vmatprep.subr.bf16.mxu0 0
    %1734 = vmatpush2.bf16.msra.mxu0 0
    %1735 = vmatprep.subr.bf16.mxu0 0
    %1736 = vmatpush2.bf16.msra.mxu0 0
    %1737 = vmatprep.subr.bf16.mxu0 0
    %1738 = vmatpush2.bf16.msra.mxu0 0
    %1739 = vmatprep.subr.bf16.mxu0 0
    %1740 = vmatpush2.bf16.msra.mxu0 0
    %1741 = vmatprep.subr.bf16.mxu0 0
    %1742 = vmatpush2.bf16.msra.mxu0 0
    %1743 = vmatprep.subr.bf16.mxu0 0
    %1744 = vmatpush2.bf16.msra.mxu0 0
    %1745 = vmatprep.mubr.bf16.mxu0 0
    %1746 = vmatmul.mubr.bf16.gmra.mxu0 %v1552
    %v1747 = vpop.f32.mrf.mxu0
    %v1748 = vadd.f32 %v464, %v1747
    %v1749 = vpop.f32.mrf.mxu0
    %v1750 = vadd.f32 %v468, %v1749
    %v1751 = vpop.f32.mrf.mxu0
    %v1752 = vpop.f32.mrf.mxu0
    %1753 = vdwg.mxu0
    %1754 = vmatprep.subr.bf16.mxu0 0
    %1755 = vmatpush1.bf16.msra.mxu0 %v1688
    %1756 = vmatprep.subr.bf16.mxu0 0
    %1757 = vmatpush1.bf16.msra.mxu0 %v1685
    %1758 = vmatprep.subr.bf16.mxu0 0
    %1759 = vmatpush1.bf16.msra.mxu0 %v1682
    %1760 = vmatprep.subr.bf16.mxu0 0
    %1761 = vmatpush1.bf16.msra.mxu0 %v1679
    %1762 = vmatprep.subr.bf16.mxu0 0
    %1763 = vmatpush1.bf16.msra.mxu0 %v1676
    %1764 = vmatprep.subr.bf16.mxu0 0
    %1765 = vmatpush1.bf16.msra.mxu0 %v1673
    %1766 = vmatprep.subr.bf16.mxu0 0
    %1767 = vmatpush1.bf16.msra.mxu0 %v1670
    %1768 = vmatprep.subr.bf16.mxu0 0
    %1769 = vmatpush1.bf16.msra.mxu0 %v1667
    %1770 = vmatprep.subr.bf16.mxu0 0
    %1771 = vmatpush2.bf16.msra.mxu0 0
    %1772 = vmatprep.subr.bf16.mxu0 0
    %1773 = vmatpush2.bf16.msra.mxu0 0
    %1774 = vmatprep.subr.bf16.mxu0 0
    %1775 = vmatpush2.bf16.msra.mxu0 0
    %1776 = vmatprep.subr.bf16.mxu0 0
    %1777 = vmatpush2.bf16.msra.mxu0 0
    %1778 = vmatprep.subr.bf16.mxu0 0
    %1779 = vmatpush2.bf16.msra.mxu0 0
    %1780 = vmatprep.subr.bf16.mxu0 0
    %1781 = vmatpush2.bf16.msra.mxu0 0
    %1782 = vmatprep.subr.bf16.mxu0 0
    %1783 = vmatpush2.bf16.msra.mxu0 0
    %1784 = vmatprep.subr.bf16.mxu0 0
    %1785 = vmatpush2.bf16.msra.mxu0 0
    %1786 = vmatprep.mubr.bf16.mxu0 0
    %1787 = vmatmul.mubr.bf16.gmra.mxu0 %v1552
    %v1788 = vpop.f32.mrf.mxu0
    %v1789 = vadd.f32 %v472, %v1788
    %v1790 = vpop.f32.mrf.mxu0
    %v1791 = vpop.f32.mrf.mxu0
    %v1792 = vpop.f32.mrf.mxu0
    %1793 = vdwg.mxu0
    %v1794 = vadd.f32 %v1549, %v1748
    %v1795 = vxor.u32 %v1794, 2147483648
    %v1796 = vmul.f32 %v1795, 1.442695
    %v1797 = vpow.pop %v1796
    %v1798 = vadd.f32 %v1797, 1.0
    %v1799 = vrcp.pop %v1798
    %v1800 = vmul.f32 1.0, %v1799
    %v1801 = vadd.f32 %v1550, %v1750
    %v1802 = vxor.u32 %v1801, 2147483648
    %v1803 = vmul.f32 %v1802, 1.442695
    %v1804 = vpow.pop %v1803
    %v1805 = vadd.f32 %v1804, 1.0
    %v1806 = vrcp.pop %v1805
    %v1807 = vmul.f32 1.0, %v1806
    %v1808 = vmul.f32 %v1800, %v1789
    %v1809 = vadd.f32 %v1551, %v1808
    %v1810 = vtanh.pop %v1809
    %v1811 = vsub.f32 %v1547, %v1810
    %v1812 = vmul.f32 %v1807, %v1811
    %v1813 = vadd.f32 %v1810, %v1812
    %1814 = vst [vmem:[#allocation3] sm:$0xff] %v1813
    %v1815 = vld [vmem:[#allocation3] sm:$0xff]
    %s1816 = scalar_lea.vmem [#allocation2], 120
    %v1817 = vld [vmem:[%s1816] sm:$0xff]
    %v1818 = vld [vmem:[%s1816 + $0x8] sm:$0xff]
    %v1819 = vld [vmem:[%s1816 + $0x10] sm:$0xff]
    %v1820 = vpack.c.bf16 %v1815, %v1815
    %v1821 = vld [vmem:[#allocation9] sm:$0xff]
    %v1822 = vld [vmem:[#allocation9 + $0x8] sm:$0xf]
    %v1823 = vld [vmem:[#allocation9 + $0xc] sm:$0xff]
    %v1824 = vld [vmem:[#allocation9 + $0x14] sm:$0xf]
    %v1825 = vld [vmem:[#allocation9 + $0x18] sm:$0xff]
    %v1826 = vld [vmem:[#allocation9 + $0x20] sm:$0xf]
    %v1827 = vld [vmem:[#allocation9 + $0x24] sm:$0xff]
    %v1828 = vld [vmem:[#allocation9 + $0x2c] sm:$0xf]
    %v1829 = vld [vmem:[#allocation9 + $0x30] sm:$0xff]
    %v1830 = vld [vmem:[#allocation9 + $0x38] sm:$0xf]
    %v1831 = vld [vmem:[#allocation9 + $0x3c] sm:$0xff]
    %v1832 = vld [vmem:[#allocation9 + $0x44] sm:$0xf]
    %v1833 = vld [vmem:[#allocation9 + $0x48] sm:$0xff]
    %v1834 = vld [vmem:[#allocation9 + $0x50] sm:$0xf]
    %v1835 = vld [vmem:[#allocation9 + $0x54] sm:$0xff]
    %v1836 = vld [vmem:[#allocation9 + $0x5c] sm:$0xf]
    %v1837 = vld [vmem:[#allocation9 + $0x60] sm:$0xff]
    %v1838 = vld [vmem:[#allocation9 + $0x68] sm:$0xf]
    %v1839 = vld [vmem:[#allocation9 + $0x6c] sm:$0xff]
    %v1840 = vld [vmem:[#allocation9 + $0x74] sm:$0xf]
    %v1841 = vld [vmem:[#allocation9 + $0x78] sm:$0xff]
    %v1842 = vld [vmem:[#allocation9 + $0x80] sm:$0xf]
    %v1843 = vld [vmem:[#allocation9 + $0x84] sm:$0xff]
    %v1844 = vld [vmem:[#allocation9 + $0x8c] sm:$0xf]
    %v1845 = vld [vmem:[#allocation9 + $0x90] sm:$0xff]
    %v1846 = vld [vmem:[#allocation9 + $0x98] sm:$0xf]
    %v1847 = vld [vmem:[#allocation9 + $0x9c] sm:$0xff]
    %v1848 = vld [vmem:[#allocation9 + $0xa4] sm:$0xf]
    %v1849 = vld [vmem:[#allocation9 + $0xa8] sm:$0xff]
    %v1850 = vld [vmem:[#allocation9 + $0xb0] sm:$0xf]
    %v1851 = vld [vmem:[#allocation9 + $0xb4] sm:$0xff]
    %v1852 = vld [vmem:[#allocation9 + $0xbc] sm:$0xf]
    %v1885 = vunpack.c.l.b16 %v1821
    %v1886 = vunpack.c.h.b16 %v1821
    %v1887 = vunpack.c.l.b16 %v1822
    %v1888 = vunpack.c.l.b16 %v1823
    %v1889 = vunpack.c.h.b16 %v1823
    %v1890 = vunpack.c.l.b16 %v1824
    %v1891 = vunpack.c.l.b16 %v1825
    %v1892 = vunpack.c.h.b16 %v1825
    %v1893 = vunpack.c.l.b16 %v1826
    %v1894 = vunpack.c.l.b16 %v1827
    %v1895 = vunpack.c.h.b16 %v1827
    %v1896 = vunpack.c.l.b16 %v1828
    %v1897 = vunpack.c.l.b16 %v1829
    %v1898 = vunpack.c.h.b16 %v1829
    %v1899 = vunpack.c.l.b16 %v1830
    %v1900 = vunpack.c.l.b16 %v1831
    %v1901 = vunpack.c.h.b16 %v1831
    %v1902 = vunpack.c.l.b16 %v1832
    %v1903 = vunpack.c.l.b16 %v1833
    %v1904 = vunpack.c.h.b16 %v1833
    %v1905 = vunpack.c.l.b16 %v1834
    %v1906 = vunpack.c.l.b16 %v1835
    %v1907 = vunpack.c.h.b16 %v1835
    %v1908 = vunpack.c.l.b16 %v1836
    %v1909 = vunpack.c.l.b16 %v1837
    %v1910 = vunpack.c.h.b16 %v1837
    %v1911 = vunpack.c.l.b16 %v1838
    %v1912 = vunpack.c.l.b16 %v1839
    %v1913 = vunpack.c.h.b16 %v1839
    %v1914 = vunpack.c.l.b16 %v1840
    %v1915 = vunpack.c.l.b16 %v1841
    %v1916 = vunpack.c.h.b16 %v1841
    %v1917 = vunpack.c.l.b16 %v1842
    %v1918 = vunpack.c.l.b16 %v1843
    %v1919 = vunpack.c.h.b16 %v1843
    %v1920 = vunpack.c.l.b16 %v1844
    %v1921 = vunpack.c.l.b16 %v1845
    %v1922 = vunpack.c.h.b16 %v1845
    %v1923 = vunpack.c.l.b16 %v1846
    %v1924 = vunpack.c.l.b16 %v1847
    %v1925 = vunpack.c.h.b16 %v1847
    %v1926 = vunpack.c.l.b16 %v1848
    %v1927 = vunpack.c.l.b16 %v1849
    %v1928 = vunpack.c.h.b16 %v1849
    %v1929 = vunpack.c.l.b16 %v1850
    %v1930 = vunpack.c.l.b16 %v1851
    %v1931 = vunpack.c.h.b16 %v1851
    %v1932 = vunpack.c.l.b16 %v1852
    %v1933 = vpack.c.b16 %v1888, %v1885
    %v1934 = vpack.c.b16 %v1889, %v1886
    %v1935 = vpack.c.b16 %v1890, %v1887
    %v1936 = vpack.c.b16 %v1894, %v1891
    %v1937 = vpack.c.b16 %v1895, %v1892
    %v1938 = vpack.c.b16 %v1896, %v1893
    %v1939 = vpack.c.b16 %v1900, %v1897
    %v1940 = vpack.c.b16 %v1901, %v1898
    %v1941 = vpack.c.b16 %v1902, %v1899
    %v1942 = vpack.c.b16 %v1906, %v1903
    %v1943 = vpack.c.b16 %v1907, %v1904
    %v1944 = vpack.c.b16 %v1908, %v1905
    %v1945 = vpack.c.b16 %v1912, %v1909
    %v1946 = vpack.c.b16 %v1913, %v1910
    %v1947 = vpack.c.b16 %v1914, %v1911
    %v1948 = vpack.c.b16 %v1918, %v1915
    %v1949 = vpack.c.b16 %v1919, %v1916
    %v1950 = vpack.c.b16 %v1920, %v1917
    %v1951 = vpack.c.b16 %v1924, %v1921
    %v1952 = vpack.c.b16 %v1925, %v1922
    %v1953 = vpack.c.b16 %v1926, %v1923
    %v1954 = vpack.c.b16 %v1930, %v1927
    %v1955 = vpack.c.b16 %v1931, %v1928
    %v1956 = vpack.c.b16 %v1932, %v1929
    %1981 = vmatprep.subr.bf16.mxu0 %v1955
    %1982 = vmatpush1.bf16.msra.mxu0 %v1954
    %1983 = vmatprep.subr.bf16.mxu0 %v1952
    %1984 = vmatpush1.bf16.msra.mxu0 %v1951
    %1985 = vmatprep.subr.bf16.mxu0 %v1949
    %1986 = vmatpush1.bf16.msra.mxu0 %v1948
    %1987 = vmatprep.subr.bf16.mxu0 %v1946
    %1988 = vmatpush1.bf16.msra.mxu0 %v1945
    %1989 = vmatprep.subr.bf16.mxu0 %v1943
    %1990 = vmatpush1.bf16.msra.mxu0 %v1942
    %1991 = vmatprep.subr.bf16.mxu0 %v1940
    %1992 = vmatpush1.bf16.msra.mxu0 %v1939
    %1993 = vmatprep.subr.bf16.mxu0 %v1937
    %1994 = vmatpush1.bf16.msra.mxu0 %v1936
    %1995 = vmatprep.subr.bf16.mxu0 %v1934
    %1996 = vmatpush1.bf16.msra.mxu0 %v1933
    %1997 = vmatprep.subr.bf16.mxu0 0
    %1998 = vmatpush2.bf16.msra.mxu0 0
    %1999 = vmatprep.subr.bf16.mxu0 0
    %2000 = vmatpush2.bf16.msra.mxu0 0
    %2001 = vmatprep.subr.bf16.mxu0 0
    %2002 = vmatpush2.bf16.msra.mxu0 0
    %2003 = vmatprep.subr.bf16.mxu0 0
    %2004 = vmatpush2.bf16.msra.mxu0 0
    %2005 = vmatprep.subr.bf16.mxu0 0
    %2006 = vmatpush2.bf16.msra.mxu0 0
    %2007 = vmatprep.subr.bf16.mxu0 0
    %2008 = vmatpush2.bf16.msra.mxu0 0
    %2009 = vmatprep.subr.bf16.mxu0 0
    %2010 = vmatpush2.bf16.msra.mxu0 0
    %2011 = vmatprep.subr.bf16.mxu0 0
    %2012 = vmatpush2.bf16.msra.mxu0 0
    %2013 = vmatprep.mubr.bf16.mxu0 0
    %2014 = vmatmul.mubr.bf16.gmra.mxu0 %v1820
    %v2015 = vpop.f32.mrf.mxu0
    %v2016 = vadd.f32 %v464, %v2015
    %v2017 = vpop.f32.mrf.mxu0
    %v2018 = vadd.f32 %v468, %v2017
    %v2019 = vpop.f32.mrf.mxu0
    %v2020 = vpop.f32.mrf.mxu0
    %2021 = vdwg.mxu0
    %2022 = vmatprep.subr.bf16.mxu0 0
    %2023 = vmatpush1.bf16.msra.mxu0 %v1956
    %2024 = vmatprep.subr.bf16.mxu0 0
    %2025 = vmatpush1.bf16.msra.mxu0 %v1953
    %2026 = vmatprep.subr.bf16.mxu0 0
    %2027 = vmatpush1.bf16.msra.mxu0 %v1950
    %2028 = vmatprep.subr.bf16.mxu0 0
    %2029 = vmatpush1.bf16.msra.mxu0 %v1947
    %2030 = vmatprep.subr.bf16.mxu0 0
    %2031 = vmatpush1.bf16.msra.mxu0 %v1944
    %2032 = vmatprep.subr.bf16.mxu0 0
    %2033 = vmatpush1.bf16.msra.mxu0 %v1941
    %2034 = vmatprep.subr.bf16.mxu0 0
    %2035 = vmatpush1.bf16.msra.mxu0 %v1938
    %2036 = vmatprep.subr.bf16.mxu0 0
    %2037 = vmatpush1.bf16.msra.mxu0 %v1935
    %2038 = vmatprep.subr.bf16.mxu0 0
    %2039 = vmatpush2.bf16.msra.mxu0 0
    %2040 = vmatprep.subr.bf16.mxu0 0
    %2041 = vmatpush2.bf16.msra.mxu0 0
    %2042 = vmatprep.subr.bf16.mxu0 0
    %2043 = vmatpush2.bf16.msra.mxu0 0
    %2044 = vmatprep.subr.bf16.mxu0 0
    %2045 = vmatpush2.bf16.msra.mxu0 0
    %2046 = vmatprep.subr.bf16.mxu0 0
    %2047 = vmatpush2.bf16.msra.mxu0 0
    %2048 = vmatprep.subr.bf16.mxu0 0
    %2049 = vmatpush2.bf16.msra.mxu0 0
    %2050 = vmatprep.subr.bf16.mxu0 0
    %2051 = vmatpush2.bf16.msra.mxu0 0
    %2052 = vmatprep.subr.bf16.mxu0 0
    %2053 = vmatpush2.bf16.msra.mxu0 0
    %2054 = vmatprep.mubr.bf16.mxu0 0
    %2055 = vmatmul.mubr.bf16.gmra.mxu0 %v1820
    %v2056 = vpop.f32.mrf.mxu0
    %v2057 = vadd.f32 %v472, %v2056
    %v2058 = vpop.f32.mrf.mxu0
    %v2059 = vpop.f32.mrf.mxu0
    %v2060 = vpop.f32.mrf.mxu0
    %2061 = vdwg.mxu0
    %v2062 = vadd.f32 %v1817, %v2016
    %v2063 = vxor.u32 %v2062, 2147483648
    %v2064 = vmul.f32 %v2063, 1.442695
    %v2065 = vpow.pop %v2064
    %v2066 = vadd.f32 %v2065, 1.0
    %v2067 = vrcp.pop %v2066
    %v2068 = vmul.f32 1.0, %v2067
    %v2069 = vadd.f32 %v1818, %v2018
    %v2070 = vxor.u32 %v2069, 2147483648
    %v2071 = vmul.f32 %v2070, 1.442695
    %v2072 = vpow.pop %v2071
    %v2073 = vadd.f32 %v2072, 1.0
    %v2074 = vrcp.pop %v2073
    %v2075 = vmul.f32 1.0, %v2074
    %v2076 = vmul.f32 %v2068, %v2057
    %v2077 = vadd.f32 %v1819, %v2076
    %v2078 = vtanh.pop %v2077
    %v2079 = vsub.f32 %v1815, %v2078
    %v2080 = vmul.f32 %v2075, %v2079
    %v2081 = vadd.f32 %v2078, %v2080
    %2082 = vst [vmem:[#allocation3] sm:$0xff] %v2081
    %v2083 = vld [vmem:[#allocation3] sm:$0xff]
    %s2084 = scalar_lea.vmem [#allocation2], 144
    %v2085 = vld [vmem:[%s2084] sm:$0xff]
    %v2086 = vld [vmem:[%s2084 + $0x8] sm:$0xff]
    %v2087 = vld [vmem:[%s2084 + $0x10] sm:$0xff]
    %v2088 = vpack.c.bf16 %v2083, %v2083
    %v2089 = vld [vmem:[#allocation9] sm:$0xff]
    %v2090 = vld [vmem:[#allocation9 + $0x8] sm:$0xf]
    %v2091 = vld [vmem:[#allocation9 + $0xc] sm:$0xff]
    %v2092 = vld [vmem:[#allocation9 + $0x14] sm:$0xf]
    %v2093 = vld [vmem:[#allocation9 + $0x18] sm:$0xff]
    %v2094 = vld [vmem:[#allocation9 + $0x20] sm:$0xf]
    %v2095 = vld [vmem:[#allocation9 + $0x24] sm:$0xff]
    %v2096 = vld [vmem:[#allocation9 + $0x2c] sm:$0xf]
    %v2097 = vld [vmem:[#allocation9 + $0x30] sm:$0xff]
    %v2098 = vld [vmem:[#allocation9 + $0x38] sm:$0xf]
    %v2099 = vld [vmem:[#allocation9 + $0x3c] sm:$0xff]
    %v2100 = vld [vmem:[#allocation9 + $0x44] sm:$0xf]
    %v2101 = vld [vmem:[#allocation9 + $0x48] sm:$0xff]
    %v2102 = vld [vmem:[#allocation9 + $0x50] sm:$0xf]
    %v2103 = vld [vmem:[#allocation9 + $0x54] sm:$0xff]
    %v2104 = vld [vmem:[#allocation9 + $0x5c] sm:$0xf]
    %v2105 = vld [vmem:[#allocation9 + $0x60] sm:$0xff]
    %v2106 = vld [vmem:[#allocation9 + $0x68] sm:$0xf]
    %v2107 = vld [vmem:[#allocation9 + $0x6c] sm:$0xff]
    %v2108 = vld [vmem:[#allocation9 + $0x74] sm:$0xf]
    %v2109 = vld [vmem:[#allocation9 + $0x78] sm:$0xff]
    %v2110 = vld [vmem:[#allocation9 + $0x80] sm:$0xf]
    %v2111 = vld [vmem:[#allocation9 + $0x84] sm:$0xff]
    %v2112 = vld [vmem:[#allocation9 + $0x8c] sm:$0xf]
    %v2113 = vld [vmem:[#allocation9 + $0x90] sm:$0xff]
    %v2114 = vld [vmem:[#allocation9 + $0x98] sm:$0xf]
    %v2115 = vld [vmem:[#allocation9 + $0x9c] sm:$0xff]
    %v2116 = vld [vmem:[#allocation9 + $0xa4] sm:$0xf]
    %v2117 = vld [vmem:[#allocation9 + $0xa8] sm:$0xff]
    %v2118 = vld [vmem:[#allocation9 + $0xb0] sm:$0xf]
    %v2119 = vld [vmem:[#allocation9 + $0xb4] sm:$0xff]
    %v2120 = vld [vmem:[#allocation9 + $0xbc] sm:$0xf]
    %v2153 = vunpack.c.l.b16 %v2089
    %v2154 = vunpack.c.h.b16 %v2089
    %v2155 = vunpack.c.l.b16 %v2090
    %v2156 = vunpack.c.l.b16 %v2091
    %v2157 = vunpack.c.h.b16 %v2091
    %v2158 = vunpack.c.l.b16 %v2092
    %v2159 = vunpack.c.l.b16 %v2093
    %v2160 = vunpack.c.h.b16 %v2093
    %v2161 = vunpack.c.l.b16 %v2094
    %v2162 = vunpack.c.l.b16 %v2095
    %v2163 = vunpack.c.h.b16 %v2095
    %v2164 = vunpack.c.l.b16 %v2096
    %v2165 = vunpack.c.l.b16 %v2097
    %v2166 = vunpack.c.h.b16 %v2097
    %v2167 = vunpack.c.l.b16 %v2098
    %v2168 = vunpack.c.l.b16 %v2099
    %v2169 = vunpack.c.h.b16 %v2099
    %v2170 = vunpack.c.l.b16 %v2100
    %v2171 = vunpack.c.l.b16 %v2101
    %v2172 = vunpack.c.h.b16 %v2101
    %v2173 = vunpack.c.l.b16 %v2102
    %v2174 = vunpack.c.l.b16 %v2103
    %v2175 = vunpack.c.h.b16 %v2103
    %v2176 = vunpack.c.l.b16 %v2104
    %v2177 = vunpack.c.l.b16 %v2105
    %v2178 = vunpack.c.h.b16 %v2105
    %v2179 = vunpack.c.l.b16 %v2106
    %v2180 = vunpack.c.l.b16 %v2107
    %v2181 = vunpack.c.h.b16 %v2107
    %v2182 = vunpack.c.l.b16 %v2108
    %v2183 = vunpack.c.l.b16 %v2109
    %v2184 = vunpack.c.h.b16 %v2109
    %v2185 = vunpack.c.l.b16 %v2110
    %v2186 = vunpack.c.l.b16 %v2111
    %v2187 = vunpack.c.h.b16 %v2111
    %v2188 = vunpack.c.l.b16 %v2112
    %v2189 = vunpack.c.l.b16 %v2113
    %v2190 = vunpack.c.h.b16 %v2113
    %v2191 = vunpack.c.l.b16 %v2114
    %v2192 = vunpack.c.l.b16 %v2115
    %v2193 = vunpack.c.h.b16 %v2115
    %v2194 = vunpack.c.l.b16 %v2116
    %v2195 = vunpack.c.l.b16 %v2117
    %v2196 = vunpack.c.h.b16 %v2117
    %v2197 = vunpack.c.l.b16 %v2118
    %v2198 = vunpack.c.l.b16 %v2119
    %v2199 = vunpack.c.h.b16 %v2119
    %v2200 = vunpack.c.l.b16 %v2120
    %v2201 = vpack.c.b16 %v2156, %v2153
    %v2202 = vpack.c.b16 %v2157, %v2154
    %v2203 = vpack.c.b16 %v2158, %v2155
    %v2204 = vpack.c.b16 %v2162, %v2159
    %v2205 = vpack.c.b16 %v2163, %v2160
    %v2206 = vpack.c.b16 %v2164, %v2161
    %v2207 = vpack.c.b16 %v2168, %v2165
    %v2208 = vpack.c.b16 %v2169, %v2166
    %v2209 = vpack.c.b16 %v2170, %v2167
    %v2210 = vpack.c.b16 %v2174, %v2171
    %v2211 = vpack.c.b16 %v2175, %v2172
    %v2212 = vpack.c.b16 %v2176, %v2173
    %v2213 = vpack.c.b16 %v2180, %v2177
    %v2214 = vpack.c.b16 %v2181, %v2178
    %v2215 = vpack.c.b16 %v2182, %v2179
    %v2216 = vpack.c.b16 %v2186, %v2183
    %v2217 = vpack.c.b16 %v2187, %v2184
    %v2218 = vpack.c.b16 %v2188, %v2185
    %v2219 = vpack.c.b16 %v2192, %v2189
    %v2220 = vpack.c.b16 %v2193, %v2190
    %v2221 = vpack.c.b16 %v2194, %v2191
    %v2222 = vpack.c.b16 %v2198, %v2195
    %v2223 = vpack.c.b16 %v2199, %v2196
    %v2224 = vpack.c.b16 %v2200, %v2197
    %2249 = vmatprep.subr.bf16.mxu0 %v2223
    %2250 = vmatpush1.bf16.msra.mxu0 %v2222
    %2251 = vmatprep.subr.bf16.mxu0 %v2220
    %2252 = vmatpush1.bf16.msra.mxu0 %v2219
    %2253 = vmatprep.subr.bf16.mxu0 %v2217
    %2254 = vmatpush1.bf16.msra.mxu0 %v2216
    %2255 = vmatprep.subr.bf16.mxu0 %v2214
    %2256 = vmatpush1.bf16.msra.mxu0 %v2213
    %2257 = vmatprep.subr.bf16.mxu0 %v2211
    %2258 = vmatpush1.bf16.msra.mxu0 %v2210
    %2259 = vmatprep.subr.bf16.mxu0 %v2208
    %2260 = vmatpush1.bf16.msra.mxu0 %v2207
    %2261 = vmatprep.subr.bf16.mxu0 %v2205
    %2262 = vmatpush1.bf16.msra.mxu0 %v2204
    %2263 = vmatprep.subr.bf16.mxu0 %v2202
    %2264 = vmatpush1.bf16.msra.mxu0 %v2201
    %2265 = vmatprep.subr.bf16.mxu0 0
    %2266 = vmatpush2.bf16.msra.mxu0 0
    %2267 = vmatprep.subr.bf16.mxu0 0
    %2268 = vmatpush2.bf16.msra.mxu0 0
    %2269 = vmatprep.subr.bf16.mxu0 0
    %2270 = vmatpush2.bf16.msra.mxu0 0
    %2271 = vmatprep.subr.bf16.mxu0 0
    %2272 = vmatpush2.bf16.msra.mxu0 0
    %2273 = vmatprep.subr.bf16.mxu0 0
    %2274 = vmatpush2.bf16.msra.mxu0 0
    %2275 = vmatprep.subr.bf16.mxu0 0
    %2276 = vmatpush2.bf16.msra.mxu0 0
    %2277 = vmatprep.subr.bf16.mxu0 0
    %2278 = vmatpush2.bf16.msra.mxu0 0
    %2279 = vmatprep.subr.bf16.mxu0 0
    %2280 = vmatpush2.bf16.msra.mxu0 0
    %2281 = vmatprep.mubr.bf16.mxu0 0
    %2282 = vmatmul.mubr.bf16.gmra.mxu0 %v2088
    %v2283 = vpop.f32.mrf.mxu0
    %v2284 = vadd.f32 %v464, %v2283
    %v2285 = vpop.f32.mrf.mxu0
    %v2286 = vadd.f32 %v468, %v2285
    %v2287 = vpop.f32.mrf.mxu0
    %v2288 = vpop.f32.mrf.mxu0
    %2289 = vdwg.mxu0
    %2290 = vmatprep.subr.bf16.mxu0 0
    %2291 = vmatpush1.bf16.msra.mxu0 %v2224
    %2292 = vmatprep.subr.bf16.mxu0 0
    %2293 = vmatpush1.bf16.msra.mxu0 %v2221
    %2294 = vmatprep.subr.bf16.mxu0 0
    %2295 = vmatpush1.bf16.msra.mxu0 %v2218
    %2296 = vmatprep.subr.bf16.mxu0 0
    %2297 = vmatpush1.bf16.msra.mxu0 %v2215
    %2298 = vmatprep.subr.bf16.mxu0 0
    %2299 = vmatpush1.bf16.msra.mxu0 %v2212
    %2300 = vmatprep.subr.bf16.mxu0 0
    %2301 = vmatpush1.bf16.msra.mxu0 %v2209
    %2302 = vmatprep.subr.bf16.mxu0 0
    %2303 = vmatpush1.bf16.msra.mxu0 %v2206
    %2304 = vmatprep.subr.bf16.mxu0 0
    %2305 = vmatpush1.bf16.msra.mxu0 %v2203
    %2306 = vmatprep.subr.bf16.mxu0 0
    %2307 = vmatpush2.bf16.msra.mxu0 0
    %2308 = vmatprep.subr.bf16.mxu0 0
    %2309 = vmatpush2.bf16.msra.mxu0 0
    %2310 = vmatprep.subr.bf16.mxu0 0
    %2311 = vmatpush2.bf16.msra.mxu0 0
    %2312 = vmatprep.subr.bf16.mxu0 0
    %2313 = vmatpush2.bf16.msra.mxu0 0
    %2314 = vmatprep.subr.bf16.mxu0 0
    %2315 = vmatpush2.bf16.msra.mxu0 0
    %2316 = vmatprep.subr.bf16.mxu0 0
    %2317 = vmatpush2.bf16.msra.mxu0 0
    %2318 = vmatprep.subr.bf16.mxu0 0
    %2319 = vmatpush2.bf16.msra.mxu0 0
    %2320 = vmatprep.subr.bf16.mxu0 0
    %2321 = vmatpush2.bf16.msra.mxu0 0
    %2322 = vmatprep.mubr.bf16.mxu0 0
    %2323 = vmatmul.mubr.bf16.gmra.mxu0 %v2088
    %v2324 = vpop.f32.mrf.mxu0
    %v2325 = vadd.f32 %v472, %v2324
    %v2326 = vpop.f32.mrf.mxu0
    %v2327 = vpop.f32.mrf.mxu0
    %v2328 = vpop.f32.mrf.mxu0
    %2329 = vdwg.mxu0
    %v2330 = vadd.f32 %v2085, %v2284
    %v2331 = vxor.u32 %v2330, 2147483648
    %v2332 = vmul.f32 %v2331, 1.442695
    %v2333 = vpow.pop %v2332
    %v2334 = vadd.f32 %v2333, 1.0
    %v2335 = vrcp.pop %v2334
    %v2336 = vmul.f32 1.0, %v2335
    %v2337 = vadd.f32 %v2086, %v2286
    %v2338 = vxor.u32 %v2337, 2147483648
    %v2339 = vmul.f32 %v2338, 1.442695
    %v2340 = vpow.pop %v2339
    %v2341 = vadd.f32 %v2340, 1.0
    %v2342 = vrcp.pop %v2341
    %v2343 = vmul.f32 1.0, %v2342
    %v2344 = vmul.f32 %v2336, %v2325
    %v2345 = vadd.f32 %v2087, %v2344
    %v2346 = vtanh.pop %v2345
    %v2347 = vsub.f32 %v2083, %v2346
    %v2348 = vmul.f32 %v2343, %v2347
    %v2349 = vadd.f32 %v2346, %v2348
    %2350 = vst [vmem:[#allocation3] sm:$0xff] %v2349
    %v2351 = vld [vmem:[#allocation3] sm:$0xff]
    %s2352 = scalar_lea.vmem [#allocation2], 168
    %v2353 = vld [vmem:[%s2352] sm:$0xff]
    %v2354 = vld [vmem:[%s2352 + $0x8] sm:$0xff]
    %v2355 = vld [vmem:[%s2352 + $0x10] sm:$0xff]
    %v2356 = vpack.c.bf16 %v2351, %v2351
    %v2357 = vld [vmem:[#allocation9] sm:$0xff]
    %v2358 = vld [vmem:[#allocation9 + $0x8] sm:$0xf]
    %v2359 = vld [vmem:[#allocation9 + $0xc] sm:$0xff]
    %v2360 = vld [vmem:[#allocation9 + $0x14] sm:$0xf]
    %v2361 = vld [vmem:[#allocation9 + $0x18] sm:$0xff]
    %v2362 = vld [vmem:[#allocation9 + $0x20] sm:$0xf]
    %v2363 = vld [vmem:[#allocation9 + $0x24] sm:$0xff]
    %v2364 = vld [vmem:[#allocation9 + $0x2c] sm:$0xf]
    %v2365 = vld [vmem:[#allocation9 + $0x30] sm:$0xff]
    %v2366 = vld [vmem:[#allocation9 + $0x38] sm:$0xf]
    %v2367 = vld [vmem:[#allocation9 + $0x3c] sm:$0xff]
    %v2368 = vld [vmem:[#allocation9 + $0x44] sm:$0xf]
    %v2369 = vld [vmem:[#allocation9 + $0x48] sm:$0xff]
    %v2370 = vld [vmem:[#allocation9 + $0x50] sm:$0xf]
    %v2371 = vld [vmem:[#allocation9 + $0x54] sm:$0xff]
    %v2372 = vld [vmem:[#allocation9 + $0x5c] sm:$0xf]
    %v2373 = vld [vmem:[#allocation9 + $0x60] sm:$0xff]
    %v2374 = vld [vmem:[#allocation9 + $0x68] sm:$0xf]
    %v2375 = vld [vmem:[#allocation9 + $0x6c] sm:$0xff]
    %v2376 = vld [vmem:[#allocation9 + $0x74] sm:$0xf]
    %v2377 = vld [vmem:[#allocation9 + $0x78] sm:$0xff]
    %v2378 = vld [vmem:[#allocation9 + $0x80] sm:$0xf]
    %v2379 = vld [vmem:[#allocation9 + $0x84] sm:$0xff]
    %v2380 = vld [vmem:[#allocation9 + $0x8c] sm:$0xf]
    %v2381 = vld [vmem:[#allocation9 + $0x90] sm:$0xff]
    %v2382 = vld [vmem:[#allocation9 + $0x98] sm:$0xf]
    %v2383 = vld [vmem:[#allocation9 + $0x9c] sm:$0xff]
    %v2384 = vld [vmem:[#allocation9 + $0xa4] sm:$0xf]
    %v2385 = vld [vmem:[#allocation9 + $0xa8] sm:$0xff]
    %v2386 = vld [vmem:[#allocation9 + $0xb0] sm:$0xf]
    %v2387 = vld [vmem:[#allocation9 + $0xb4] sm:$0xff]
    %v2388 = vld [vmem:[#allocation9 + $0xbc] sm:$0xf]
    %v2421 = vunpack.c.l.b16 %v2357
    %v2422 = vunpack.c.h.b16 %v2357
    %v2423 = vunpack.c.l.b16 %v2358
    %v2424 = vunpack.c.l.b16 %v2359
    %v2425 = vunpack.c.h.b16 %v2359
    %v2426 = vunpack.c.l.b16 %v2360
    %v2427 = vunpack.c.l.b16 %v2361
    %v2428 = vunpack.c.h.b16 %v2361
    %v2429 = vunpack.c.l.b16 %v2362
    %v2430 = vunpack.c.l.b16 %v2363
    %v2431 = vunpack.c.h.b16 %v2363
    %v2432 = vunpack.c.l.b16 %v2364
    %v2433 = vunpack.c.l.b16 %v2365
    %v2434 = vunpack.c.h.b16 %v2365
    %v2435 = vunpack.c.l.b16 %v2366
    %v2436 = vunpack.c.l.b16 %v2367
    %v2437 = vunpack.c.h.b16 %v2367
    %v2438 = vunpack.c.l.b16 %v2368
    %v2439 = vunpack.c.l.b16 %v2369
    %v2440 = vunpack.c.h.b16 %v2369
    %v2441 = vunpack.c.l.b16 %v2370
    %v2442 = vunpack.c.l.b16 %v2371
    %v2443 = vunpack.c.h.b16 %v2371
    %v2444 = vunpack.c.l.b16 %v2372
    %v2445 = vunpack.c.l.b16 %v2373
    %v2446 = vunpack.c.h.b16 %v2373
    %v2447 = vunpack.c.l.b16 %v2374
    %v2448 = vunpack.c.l.b16 %v2375
    %v2449 = vunpack.c.h.b16 %v2375
    %v2450 = vunpack.c.l.b16 %v2376
    %v2451 = vunpack.c.l.b16 %v2377
    %v2452 = vunpack.c.h.b16 %v2377
    %v2453 = vunpack.c.l.b16 %v2378
    %v2454 = vunpack.c.l.b16 %v2379
    %v2455 = vunpack.c.h.b16 %v2379
    %v2456 = vunpack.c.l.b16 %v2380
    %v2457 = vunpack.c.l.b16 %v2381
    %v2458 = vunpack.c.h.b16 %v2381
    %v2459 = vunpack.c.l.b16 %v2382
    %v2460 = vunpack.c.l.b16 %v2383
    %v2461 = vunpack.c.h.b16 %v2383
    %v2462 = vunpack.c.l.b16 %v2384
    %v2463 = vunpack.c.l.b16 %v2385
    %v2464 = vunpack.c.h.b16 %v2385
    %v2465 = vunpack.c.l.b16 %v2386
    %v2466 = vunpack.c.l.b16 %v2387
    %v2467 = vunpack.c.h.b16 %v2387
    %v2468 = vunpack.c.l.b16 %v2388
    %v2469 = vpack.c.b16 %v2424, %v2421
    %v2470 = vpack.c.b16 %v2425, %v2422
    %v2471 = vpack.c.b16 %v2426, %v2423
    %v2472 = vpack.c.b16 %v2430, %v2427
    %v2473 = vpack.c.b16 %v2431, %v2428
    %v2474 = vpack.c.b16 %v2432, %v2429
    %v2475 = vpack.c.b16 %v2436, %v2433
    %v2476 = vpack.c.b16 %v2437, %v2434
    %v2477 = vpack.c.b16 %v2438, %v2435
    %v2478 = vpack.c.b16 %v2442, %v2439
    %v2479 = vpack.c.b16 %v2443, %v2440
    %v2480 = vpack.c.b16 %v2444, %v2441
    %v2481 = vpack.c.b16 %v2448, %v2445
    %v2482 = vpack.c.b16 %v2449, %v2446
    %v2483 = vpack.c.b16 %v2450, %v2447
    %v2484 = vpack.c.b16 %v2454, %v2451
    %v2485 = vpack.c.b16 %v2455, %v2452
    %v2486 = vpack.c.b16 %v2456, %v2453
    %v2487 = vpack.c.b16 %v2460, %v2457
    %v2488 = vpack.c.b16 %v2461, %v2458
    %v2489 = vpack.c.b16 %v2462, %v2459
    %v2490 = vpack.c.b16 %v2466, %v2463
    %v2491 = vpack.c.b16 %v2467, %v2464
    %v2492 = vpack.c.b16 %v2468, %v2465
    %2517 = vmatprep.subr.bf16.mxu0 %v2491
    %2518 = vmatpush1.bf16.msra.mxu0 %v2490
    %2519 = vmatprep.subr.bf16.mxu0 %v2488
    %2520 = vmatpush1.bf16.msra.mxu0 %v2487
    %2521 = vmatprep.subr.bf16.mxu0 %v2485
    %2522 = vmatpush1.bf16.msra.mxu0 %v2484
    %2523 = vmatprep.subr.bf16.mxu0 %v2482
    %2524 = vmatpush1.bf16.msra.mxu0 %v2481
    %2525 = vmatprep.subr.bf16.mxu0 %v2479
    %2526 = vmatpush1.bf16.msra.mxu0 %v2478
    %2527 = vmatprep.subr.bf16.mxu0 %v2476
    %2528 = vmatpush1.bf16.msra.mxu0 %v2475
    %2529 = vmatprep.subr.bf16.mxu0 %v2473
    %2530 = vmatpush1.bf16.msra.mxu0 %v2472
    %2531 = vmatprep.subr.bf16.mxu0 %v2470
    %2532 = vmatpush1.bf16.msra.mxu0 %v2469
    %2533 = vmatprep.subr.bf16.mxu0 0
    %2534 = vmatpush2.bf16.msra.mxu0 0
    %2535 = vmatprep.subr.bf16.mxu0 0
    %2536 = vmatpush2.bf16.msra.mxu0 0
    %2537 = vmatprep.subr.bf16.mxu0 0
    %2538 = vmatpush2.bf16.msra.mxu0 0
    %2539 = vmatprep.subr.bf16.mxu0 0
    %2540 = vmatpush2.bf16.msra.mxu0 0
    %2541 = vmatprep.subr.bf16.mxu0 0
    %2542 = vmatpush2.bf16.msra.mxu0 0
    %2543 = vmatprep.subr.bf16.mxu0 0
    %2544 = vmatpush2.bf16.msra.mxu0 0
    %2545 = vmatprep.subr.bf16.mxu0 0
    %2546 = vmatpush2.bf16.msra.mxu0 0
    %2547 = vmatprep.subr.bf16.mxu0 0
    %2548 = vmatpush2.bf16.msra.mxu0 0
    %2549 = vmatprep.mubr.bf16.mxu0 0
    %2550 = vmatmul.mubr.bf16.gmra.mxu0 %v2356
    %v2551 = vpop.f32.mrf.mxu0
    %v2552 = vadd.f32 %v464, %v2551
    %v2553 = vpop.f32.mrf.mxu0
    %v2554 = vadd.f32 %v468, %v2553
    %v2555 = vpop.f32.mrf.mxu0
    %v2556 = vpop.f32.mrf.mxu0
    %2557 = vdwg.mxu0
    %2558 = vmatprep.subr.bf16.mxu0 0
    %2559 = vmatpush1.bf16.msra.mxu0 %v2492
    %2560 = vmatprep.subr.bf16.mxu0 0
    %2561 = vmatpush1.bf16.msra.mxu0 %v2489
    %2562 = vmatprep.subr.bf16.mxu0 0
    %2563 = vmatpush1.bf16.msra.mxu0 %v2486
    %2564 = vmatprep.subr.bf16.mxu0 0
    %2565 = vmatpush1.bf16.msra.mxu0 %v2483
    %2566 = vmatprep.subr.bf16.mxu0 0
    %2567 = vmatpush1.bf16.msra.mxu0 %v2480
    %2568 = vmatprep.subr.bf16.mxu0 0
    %2569 = vmatpush1.bf16.msra.mxu0 %v2477
    %2570 = vmatprep.subr.bf16.mxu0 0
    %2571 = vmatpush1.bf16.msra.mxu0 %v2474
    %2572 = vmatprep.subr.bf16.mxu0 0
    %2573 = vmatpush1.bf16.msra.mxu0 %v2471
    %2574 = vmatprep.subr.bf16.mxu0 0
    %2575 = vmatpush2.bf16.msra.mxu0 0
    %2576 = vmatprep.subr.bf16.mxu0 0
    %2577 = vmatpush2.bf16.msra.mxu0 0
    %2578 = vmatprep.subr.bf16.mxu0 0
    %2579 = vmatpush2.bf16.msra.mxu0 0
    %2580 = vmatprep.subr.bf16.mxu0 0
    %2581 = vmatpush2.bf16.msra.mxu0 0
    %2582 = vmatprep.subr.bf16.mxu0 0
    %2583 = vmatpush2.bf16.msra.mxu0 0
    %2584 = vmatprep.subr.bf16.mxu0 0
    %2585 = vmatpush2.bf16.msra.mxu0 0
    %2586 = vmatprep.subr.bf16.mxu0 0
    %2587 = vmatpush2.bf16.msra.mxu0 0
    %2588 = vmatprep.subr.bf16.mxu0 0
    %2589 = vmatpush2.bf16.msra.mxu0 0
    %2590 = vmatprep.mubr.bf16.mxu0 0
    %2591 = vmatmul.mubr.bf16.gmra.mxu0 %v2356
    %v2592 = vpop.f32.mrf.mxu0
    %v2593 = vadd.f32 %v472, %v2592
    %v2594 = vpop.f32.mrf.mxu0
    %v2595 = vpop.f32.mrf.mxu0
    %v2596 = vpop.f32.mrf.mxu0
    %2597 = vdwg.mxu0
    %v2598 = vadd.f32 %v2353, %v2552
    %v2599 = vxor.u32 %v2598, 2147483648
    %v2600 = vmul.f32 %v2599, 1.442695
    %v2601 = vpow.pop %v2600
    %v2602 = vadd.f32 %v2601, 1.0
    %v2603 = vrcp.pop %v2602
    %v2604 = vmul.f32 1.0, %v2603
    %v2605 = vadd.f32 %v2354, %v2554
    %v2606 = vxor.u32 %v2605, 2147483648
    %v2607 = vmul.f32 %v2606, 1.442695
    %v2608 = vpow.pop %v2607
    %v2609 = vadd.f32 %v2608, 1.0
    %v2610 = vrcp.pop %v2609
    %v2611 = vmul.f32 1.0, %v2610
    %v2612 = vmul.f32 %v2604, %v2593
    %v2613 = vadd.f32 %v2355, %v2612
    %v2614 = vtanh.pop %v2613
    %v2615 = vsub.f32 %v2351, %v2614
    %v2616 = vmul.f32 %v2611, %v2615
    %v2617 = vadd.f32 %v2614, %v2616
    %2618 = vst [vmem:[#allocation3] sm:$0xff] %v2617
    // Predicated region
    $region50: #{tpu_custom_call.1} parent=1 // pred_check
      %p2619 = pneg %p83
    $region51: #{tpu_custom_call.1} parent=1 // pred_check_branch
      %2621 = sbr.rel (%p2619) target = $region53
    $region52: #{tpu_custom_call.1} parent=1 // pred_region
      %v2622 = vld [vmem:[#allocation3] sm:$0xff]
      %v2623 = vpack.c.bf16 %v2622, %v2622
      %v2624 = vld [vmem:[#allocation10] sm:$0xf]
      %v2625 = vld [vmem:[#allocation10 + $0x4] sm:$0xf]
      %v2626 = vld [vmem:[#allocation10 + $0x8] sm:$0xf]
      %v2627 = vld [vmem:[#allocation10 + $0xc] sm:$0xf]
      %v2628 = vld [vmem:[#allocation10 + $0x10] sm:$0xf]
      %v2629 = vld [vmem:[#allocation10 + $0x14] sm:$0xf]
      %v2630 = vld [vmem:[#allocation10 + $0x18] sm:$0xf]
      %v2631 = vld [vmem:[#allocation10 + $0x1c] sm:$0xf]
      %v2632 = vld [vmem:[#allocation10 + $0x20] sm:$0xf]
      %v2633 = vld [vmem:[#allocation10 + $0x24] sm:$0xf]
      %v2634 = vld [vmem:[#allocation10 + $0x28] sm:$0xf]
      %v2635 = vld [vmem:[#allocation10 + $0x2c] sm:$0xf]
      %v2636 = vld [vmem:[#allocation10 + $0x30] sm:$0xf]
      %v2637 = vld [vmem:[#allocation10 + $0x34] sm:$0xf]
      %v2638 = vld [vmem:[#allocation10 + $0x38] sm:$0xf]
      %v2639 = vld [vmem:[#allocation10 + $0x3c] sm:$0xf]
      %v2640 = vld [vmem:[%s6] sm:$0x1]
      %v2642 = vlaneseq
      %v2643 = vshrl.u32 %v2642, 7
      %v2644 = vsub.s32 0, %v2643
      %v2645 = vrot.slane %v2640, %v2644
      %v2663 = vunpack.c.l.b16 %v2624
      %v2664 = vunpack.c.l.b16 %v2625
      %v2665 = vunpack.c.l.b16 %v2626
      %v2666 = vunpack.c.l.b16 %v2627
      %v2667 = vunpack.c.l.b16 %v2628
      %v2668 = vunpack.c.l.b16 %v2629
      %v2669 = vunpack.c.l.b16 %v2630
      %v2670 = vunpack.c.l.b16 %v2631
      %v2671 = vunpack.c.l.b16 %v2632
      %v2672 = vunpack.c.l.b16 %v2633
      %v2673 = vunpack.c.l.b16 %v2634
      %v2674 = vunpack.c.l.b16 %v2635
      %v2675 = vunpack.c.l.b16 %v2636
      %v2676 = vunpack.c.l.b16 %v2637
      %v2677 = vunpack.c.l.b16 %v2638
      %v2678 = vunpack.c.l.b16 %v2639
      %v2679 = vpack.c.b16 %v2664, %v2663
      %v2680 = vpack.c.b16 %v2666, %v2665
      %v2681 = vpack.c.b16 %v2668, %v2667
      %v2682 = vpack.c.b16 %v2670, %v2669
      %v2683 = vpack.c.b16 %v2672, %v2671
      %v2684 = vpack.c.b16 %v2674, %v2673
      %v2685 = vpack.c.b16 %v2676, %v2675
      %v2686 = vpack.c.b16 %v2678, %v2677
      %2695 = vmatprep.subr.bf16.mxu0 0
      %2696 = vmatpush1.bf16.msra.mxu0 %v2686
      %2697 = vmatprep.subr.bf16.mxu0 0
      %2698 = vmatpush1.bf16.msra.mxu0 %v2685
      %2699 = vmatprep.subr.bf16.mxu0 0
      %2700 = vmatpush1.bf16.msra.mxu0 %v2684
      %2701 = vmatprep.subr.bf16.mxu0 0
      %2702 = vmatpush1.bf16.msra.mxu0 %v2683
      %2703 = vmatprep.subr.bf16.mxu0 0
      %2704 = vmatpush1.bf16.msra.mxu0 %v2682
      %2705 = vmatprep.subr.bf16.mxu0 0
      %2706 = vmatpush1.bf16.msra.mxu0 %v2681
      %2707 = vmatprep.subr.bf16.mxu0 0
      %2708 = vmatpush1.bf16.msra.mxu0 %v2680
      %2709 = vmatprep.subr.bf16.mxu0 0
      %2710 = vmatpush1.bf16.msra.mxu0 %v2679
      %2711 = vmatprep.subr.bf16.mxu0 0
      %2712 = vmatpush2.bf16.msra.mxu0 0
      %2713 = vmatprep.subr.bf16.mxu0 0
      %2714 = vmatpush2.bf16.msra.mxu0 0
      %2715 = vmatprep.subr.bf16.mxu0 0
      %2716 = vmatpush2.bf16.msra.mxu0 0
      %2717 = vmatprep.subr.bf16.mxu0 0
      %2718 = vmatpush2.bf16.msra.mxu0 0
      %2719 = vmatprep.subr.bf16.mxu0 0
      %2720 = vmatpush2.bf16.msra.mxu0 0
      %2721 = vmatprep.subr.bf16.mxu0 0
      %2722 = vmatpush2.bf16.msra.mxu0 0
      %2723 = vmatprep.subr.bf16.mxu0 0
      %2724 = vmatpush2.bf16.msra.mxu0 0
      %2725 = vmatprep.subr.bf16.mxu0 0
      %2726 = vmatpush2.bf16.msra.mxu0 0
      %2727 = vmatprep.mubr.bf16.mxu0 0
      %2728 = vmatmul.mubr.bf16.gmra.mxu0 %v2623
      %v2729 = vpop.f32.mrf.mxu0
      %v2730 = vadd.f32 %v2645, %v2729
      %v2731 = vpop.f32.mrf.mxu0
      %v2732 = vpop.f32.mrf.mxu0
      %v2733 = vpop.f32.mrf.mxu0
      %2734 = vdwg.mxu0
      %2735 = vst [vmem:[#allocation12] sm:$0xff] %v2730
    $region53: #{tpu_custom_call.1} parent=1 // pred_fallthru
      _
    // Predicated region
    $region54: #{tpu_custom_call.1} parent=1 // pred_check
      _
    $region55: #{tpu_custom_call.1} parent=1 // pred_check_branch
      %2737 = sbr.rel (0) target = $region57
    $region56: #{tpu_custom_call.1} parent=1 // pred_region
      %s2739 = ssub.s32 128, 128
      %2740 = vsyncadd [#allocation6], %s2739
      %s2742 = sshll.u32 [#allocation12], 4
      %s2743 = int_to_ptr.vmem [resolvable:$true] %s2742
      %2745 = dma.vmem_to_hbm [thread:$0]  %s2743, 128, %s7, [#allocation6]
    $region57: #{tpu_custom_call.1} parent=1 // pred_fallthru
      _
    // Predicated region
    $region58: #{tpu_custom_call.1} parent=1 // pred_check
      _
    $region59: #{tpu_custom_call.1} parent=1 // pred_check_branch
      %2747 = sbr.rel (0) target = $region61
    $region60: #{tpu_custom_call.1} parent=1 // pred_region
      %2748 = dma.done [#allocation6], 128
    $region61: #{tpu_custom_call.1} parent=1 // pred_fallthru
      _
    %2749 = vsyncpa [#allocation5], 1
    %2750 = vsyncpa [#allocation8], 1
    %2751 = vsyncpa [#allocation11], 1
    %2752 = vsyncpa [#allocation6], 1

</llo_original>
